<compile_context>
chip_gen: v5e
topology: v5e:2x2
jax: 0.10.0
libtpu: 0.0.40
codegen_flags: <defaults>
</compile_context>

<pallas_src>
import math
import numpy as np
import jax
import jax.numpy as jnp
from jax.experimental import pallas as pl
from jax.experimental.pallas import tpu as pltpu

# ---------------------------------------------------------------------------
# Model dimensions (GNNTransformerModel defaults at small demo sizes)
# ---------------------------------------------------------------------------
BATCH = 2             # sequences per forward pass (batch_size)
SEQ = 8               # timesteps (seq_length)
NODES = 16            # keypoints per pose graph
IN_CH = 2             # (x, y) keypoint coordinates
GNN_HID = 64          # gnn_hidden_channels default
D_MODEL = 128         # gnn_out_channels == transformer_dim default
N_HEADS = 4
HEAD_DIM = D_MODEL // N_HEADS
FF_DIM = 256
N_LAYERS = 4
N_CLASSES = 2
N_GRAPHS = BATCH * SEQ          # graphs per forward pass
TOTAL_NODES = N_GRAPHS * NODES  # 256 -> exact MXU-friendly row count
LN_EPS = 1e-5

assert D_MODEL % N_HEADS == 0


# ---------------------------------------------------------------------------
# Fused kernel: GNN prologue (step 0) + transformer layers + pool + classifier
# ---------------------------------------------------------------------------
def _fused_kernel(nodes_ref, adj_ref, gvec_ref, w2_ref, w3_ref, pos_ref,
                  wq_ref, wk_ref, wv_ref, wo_ref,
                  wff1_ref, bff1_ref, wff2_ref, vec_ref, cls_ref,
                  logits_ref, state_ref):
    """One grid step == one TransformerEncoderLayer.  Step 0 additionally runs the
    GNN over all B*T graphs (block-diagonal adjacency) into the state scratch;
    the last step applies the temporal mean pool and the classifier MLP."""
    layer = pl.program_id(0)

    # ----------------------- GNN prologue (grid step 0) -----------------------
    @pl.when(layer == 0)
    def _():
        adj = adj_ref[...]                       # [G*n, G*n] block-diag A_hat
        gv = gvec_ref[...]                       # [8,128]: s1,t1,s2,t2,s3,t3,w1r0,w1r1

        def affine_relu(z, row):                 # folded eval-BatchNorm1d + bias, ReLU
            c = z.shape[-1]
            return jnp.maximum(z * gv[row:row + 1, :c] + gv[row + 1:row + 2, :c], 0.0)

        x = nodes_ref[...]                       # [G*n, 2] keypoint coords
        # Layer 1: X @ W1 with K=2 done on the VPU (broadcast MACs), then A_hat @ (.)
        xw = x[:, 0:1] * gv[6:7, :GNN_HID] + x[:, 1:2] * gv[7:8, :GNN_HID]
        h = affine_relu(jnp.dot(adj, xw, preferred_element_type=jnp.float32), 0)
        # Layers 2 & 3: (A_hat @ h) @ W  (C_in <= C_out -> cheaper association)
        h = jnp.dot(adj, h, preferred_element_type=jnp.float32)
        h = affine_relu(jnp.dot(h, w2_ref[...], preferred_element_type=jnp.float32), 2)
        h = jnp.dot(adj, h, preferred_element_type=jnp.float32)
        h = affine_relu(jnp.dot(h, w3_ref[...], preferred_element_type=jnp.float32), 4)
        # global_mean_pool over nodes, then add positional encoding (pre-tiled).
        emb = jnp.mean(h.reshape(N_GRAPHS, NODES, D_MODEL), axis=1)      # [B*T, D]
        state_ref[...] = emb + pos_ref[...]

    # --------------------- one TransformerEncoderLayer ------------------------
    x = state_ref[...]                           # [B*T, D]
    vec = vec_ref[0]                             # [9,128] packed per-layer vectors
    b_q, b_k, b_v, b_o = vec[0:1], vec[1:2], vec[2:3], vec[3:4]
    ln1_g, ln1_b = vec[4:5], vec[5:6]
    b_ff2 = vec[6:7]
    ln2_g, ln2_b = vec[7:8], vec[8:9]

    def layer_norm(z, g, b):
        mu = jnp.mean(z, axis=-1, keepdims=True)
        var = jnp.mean(jnp.square(z - mu), axis=-1, keepdims=True)
        return (z - mu) * jax.lax.rsqrt(var + LN_EPS) * g + b

    # bf16 weights in HBM -> upcast in-kernel; accumulation stays f32.
    wq = wq_ref[0].astype(jnp.float32)
    wk = wk_ref[0].astype(jnp.float32)
    wv = wv_ref[0].astype(jnp.float32)
    wo = wo_ref[0].astype(jnp.float32)
    q = jnp.dot(x, wq, preferred_element_type=jnp.float32) + b_q
    k = jnp.dot(x, wk, preferred_element_type=jnp.float32) + b_k
    v = jnp.dot(x, wv, preferred_element_type=jnp.float32) + b_v

    def split_heads(t):                          # [B*T, D] -> (H*B, T, Hd)
        return jnp.concatenate(
            [t[:, h * HEAD_DIM:(h + 1) * HEAD_DIM].reshape(BATCH, SEQ, HEAD_DIM)
             for h in range(N_HEADS)], axis=0)

    qh, kh, vh = split_heads(q), split_heads(k), split_heads(v)
    s = jnp.einsum('bqc,bkc->bqk', qh, kh,
                   preferred_element_type=jnp.float32) * (1.0 / math.sqrt(HEAD_DIM))
    s = s - jnp.max(s, axis=-1, keepdims=True)
    p = jnp.exp(s)
    p = p * pl.reciprocal(jnp.sum(p, axis=-1, keepdims=True), approx=False)
    o = jnp.einsum('bqk,bkc->bqc', p, vh, preferred_element_type=jnp.float32)
    # Reassemble heads along lanes, then ONE K=128 output projection.
    o = o.reshape(N_HEADS, BATCH * SEQ, HEAD_DIM)
    o_cat = jnp.concatenate([o[h] for h in range(N_HEADS)], axis=-1)     # [B*T, D]
    attn = jnp.dot(o_cat, wo, preferred_element_type=jnp.float32) + b_o

    y = layer_norm(x + attn, ln1_g, ln1_b)       # post-LN (norm_first=False)
    ff = jnp.maximum(
        jnp.dot(y, wff1_ref[0].astype(jnp.float32),
                preferred_element_type=jnp.float32) + bff1_ref[0], 0.0)
    ff = jnp.dot(ff, wff2_ref[0].astype(jnp.float32),
                 preferred_element_type=jnp.float32) + b_ff2
    z = layer_norm(y + ff, ln2_g, ln2_b)
    state_ref[...] = z

    # ----------------- temporal avg-pool + classifier (last step) -------------
    @pl.when(layer == pl.num_programs(0) - 1)
    def _():
        cls = cls_ref[...]                       # [258,128] packed classifier params
        pooled = jnp.mean(z.reshape(BATCH, SEQ, D_MODEL), axis=1)        # [B, D]
        hid = jnp.maximum(
            jnp.dot(pooled, cls[0:D_MODEL], preferred_element_type=jnp.float32)
            + cls[2 * D_MODEL:2 * D_MODEL + 1], 0.0)                     # [B,128]
        logits = (jnp.dot(hid, cls[D_MODEL:2 * D_MODEL],
                          preferred_element_type=jnp.float32)
                  + cls[2 * D_MODEL + 1:2 * D_MODEL + 2])                # [B,128]
        logits_ref[...] = logits[:, :N_CLASSES]


def fused_forward(nodes_flat, adj_bd, gnn_p, pos_bt, tparams, cls_pack):
    """nodes_flat: [B*T*n, 2] keypoints, adj_bd: [B*T*n, B*T*n] block-diag A_hat
    -> [B, N_CLASSES] logits, in one pallas_call."""
    const2 = lambda l: (0, 0)
    per_layer = lambda l: (l, 0, 0)
    in_specs = [
        pl.BlockSpec(nodes_flat.shape, const2),            # keypoint coordinates
        pl.BlockSpec(adj_bd.shape, const2),                 # block-diag adjacency
        pl.BlockSpec(gnn_p["gvec"].shape, const2),          # packed BN/bias + W1 rows
        pl.BlockSpec(gnn_p["w2"].shape, const2),
        pl.BlockSpec(gnn_p["w3"].shape, const2),
        pl.BlockSpec(pos_bt.shape, const2),                 # positional encoding
        pl.BlockSpec((1, D_MODEL, D_MODEL), per_layer),     # wq (bf16)
        pl.BlockSpec((1, D_MODEL, D_MODEL), per_layer),     # wk (bf16)
        pl.BlockSpec((1, D_MODEL, D_MODEL), per_layer),     # wv (bf16)
        pl.BlockSpec((1, D_MODEL, D_MODEL), per_layer),     # wo (bf16)
        pl.BlockSpec((1, D_MODEL, FF_DIM), per_layer),      # wff1 (bf16)
        pl.BlockSpec((1, 1, FF_DIM), per_layer),            # bff1 (f32)
        pl.BlockSpec((1, FF_DIM, D_MODEL), per_layer),      # wff2 (bf16)
        pl.BlockSpec((1, 9, 128), per_layer),               # packed biases/LN params
        pl.BlockSpec(cls_pack.shape, const2),               # packed classifier params
    ]
    return pl.pallas_call(
        _fused_kernel,
        out_shape=jax.ShapeDtypeStruct((BATCH, N_CLASSES), jnp.float32),
        grid=(N_LAYERS,),
        in_specs=in_specs,
        out_specs=pl.BlockSpec((BATCH, N_CLASSES), const2),
        scratch_shapes=[pltpu.VMEM((BATCH * SEQ, D_MODEL), jnp.float32)],
        compiler_params=pltpu.CompilerParams(
            dimension_semantics=("arbitrary",),             # layers are sequential
            vmem_limit_bytes=32 * 1024 * 1024,
        ),
    )(nodes_flat, adj_bd, gnn_p["gvec"], gnn_p["w2"], gnn_p["w3"], pos_bt,
      tparams["wq"], tparams["wk"], tparams["wv"], tparams["wo"],
      tparams["wff1"], tparams["bff1"], tparams["wff2"], tparams["vec"],
      cls_pack)


# ---------------------------------------------------------------------------
# Parameter / graph construction + pure-JAX reference
# ---------------------------------------------------------------------------
def build_chain_adjacency(n):
    """Chain pose skeleton -> D^-1/2 (A + I) D^-1/2 (PyG GCNConv normalization)."""
    a = np.zeros((n, n), dtype=np.float32)
    for i in range(n - 1):
        a[i, i + 1] = 1.0
        a[i + 1, i] = 1.0
    a += np.eye(n, dtype=np.float32)
    d_inv_sqrt = 1.0 / np.sqrt(a.sum(axis=1))
    return jnp.asarray(d_inv_sqrt[:, None] * a * d_inv_sqrt[None, :])


def init_params(key):
    keys = iter(jax.random.split(key, 64))
    nk = lambda: next(keys)

    def dense(shape, scale):
        return scale * jax.random.normal(nk(), shape, dtype=jnp.float32)

    # ---- GNN: GCNConv weight/bias + eval-mode BatchNorm1d folded to scale/shift ----
    def gcn_layer(cin, cout):
        w = dense((cin, cout), 0.3)
        bias = dense((cout,), 0.1)
        gamma = 1.0 + dense((cout,), 0.1)
        beta = dense((cout,), 0.1)
        mean = dense((cout,), 0.05)
        var = 1.0 + 0.1 * jax.random.uniform(nk(), (cout,), dtype=jnp.float32)
        scale = gamma / jnp.sqrt(var + 1e-5)
        shift = (bias - mean) * scale + beta
        return w, scale, shift

    w1, s1, t1 = gcn_layer(IN_CH, GNN_HID)
    w2, s2, t2 = gcn_layer(GNN_HID, GNN_HID)
    w3, s3, t3 = gcn_layer(GNN_HID, D_MODEL)
    pad = lambda v: jnp.pad(v, (0, D_MODEL - v.shape[0]))
    # packed GNN vectors: [s1,t1,s2,t2,s3,t3, w1_row0, w1_row1]  -> one [8,128] DMA
    gvec = jnp.stack([pad(s1), pad(t1), pad(s2), pad(t2), s3, t3,
                      pad(w1[0]), pad(w1[1])], axis=0)
    gnn_kernel_p = dict(gvec=gvec, w2=w2, w3=w3)
    gnn_ref_p = dict(w=[w1, w2, w3], s=[s1, s2, s3], t=[t1, t2, t3])

    # ---- Transformer encoder layers (stacked on a leading layer axis) ----
    wq = dense((N_LAYERS, D_MODEL, D_MODEL), 0.06)
    wk = dense((N_LAYERS, D_MODEL, D_MODEL), 0.06)
    wv = dense((N_LAYERS, D_MODEL, D_MODEL), 0.06)
    wo = dense((N_LAYERS, D_MODEL, D_MODEL), 0.06)
    wff1 = dense((N_LAYERS, D_MODEL, FF_DIM), 0.06)
    bff1 = dense((N_LAYERS, 1, FF_DIM), 0.05)
    wff2 = dense((N_LAYERS, FF_DIM, D_MODEL), 0.06)
    b_q = dense((N_LAYERS, D_MODEL), 0.05)
    b_k = dense((N_LAYERS, D_MODEL), 0.05)
    b_v = dense((N_LAYERS, D_MODEL), 0.05)
    b_o = dense((N_LAYERS, D_MODEL), 0.05)
    ln1_g = 1.0 + dense((N_LAYERS, D_MODEL), 0.05)
    ln1_b = dense((N_LAYERS, D_MODEL), 0.05)
    b_ff2 = dense((N_LAYERS, D_MODEL), 0.05)
    ln2_g = 1.0 + dense((N_LAYERS, D_MODEL), 0.05)
    ln2_b = dense((N_LAYERS, D_MODEL), 0.05)
    # packed per-layer vectors: [b_q, b_k, b_v, b_o, ln1_g, ln1_b, b_ff2, ln2_g, ln2_b]
    vec = jnp.stack([b_q, b_k, b_v, b_o, ln1_g, ln1_b, b_ff2, ln2_g, ln2_b], axis=1)
    tparams_ref = dict(wq=wq, wk=wk, wv=wv, wo=wo,
                       wff1=wff1, bff1=bff1, wff2=wff2, vec=vec)
    bf16 = lambda a: a.astype(jnp.bfloat16)      # halve weight-DMA bytes
    tparams_kernel = dict(wq=bf16(wq), wk=bf16(wk), wv=bf16(wv), wo=bf16(wo),
                          wff1=bf16(wff1), bff1=bff1, wff2=bf16(wff2), vec=vec)

    pos = 0.02 * jax.random.normal(nk(), (SEQ, D_MODEL), dtype=jnp.float32)

    # ---- Classifier: keep f32 params, pack into one 128-lane-padded operand ----
    wc1 = dense((D_MODEL, D_MODEL // 2), 0.1)
    bc1 = dense((D_MODEL // 2,), 0.05)
    wc2 = dense((D_MODEL // 2, N_CLASSES), 0.1)
    bc2 = dense((N_CLASSES,), 0.05)
    cparams_ref = dict(wc1=wc1, bc1=bc1, wc2=wc2, bc2=bc2)
    cls_pack = jnp.zeros((2 * D_MODEL + 2, 128), jnp.float32)
    cls_pack = cls_pack.at[0:D_MODEL, 0:D_MODEL // 2].set(wc1)
    cls_pack = cls_pack.at[D_MODEL:D_MODEL + D_MODEL // 2, 0:N_CLASSES].set(wc2)
    cls_pack = cls_pack.at[2 * D_MODEL, 0:D_MODEL // 2].set(bc1)
    cls_pack = cls_pack.at[2 * D_MODEL + 1, 0:N_CLASSES].set(bc2)

    return (gnn_kernel_p, gnn_ref_p, tparams_kernel, tparams_ref,
            cparams_ref, cls_pack, pos)


def reference_forward(x_nodes, adj, gnn_ref, tparams, cparams, pos):
    """Pure-JAX f32 reference with PyTorch/PyG semantics (eval mode)."""
    bsz, seq, n, cin = x_nodes.shape
    h = x_nodes.reshape(bsz * seq, n, cin)
    for w, s, t in zip(gnn_ref["w"], gnn_ref["s"], gnn_ref["t"]):
        h = jnp.einsum('gnc,ch->gnh', h, w)            # GCNConv: X @ W ...
        h = jnp.einsum('ij,gjc->gic', adj, h)          # ... then A_hat @ (XW)
        h = jnp.maximum(h * s + t, 0.0)                # folded BN + ReLU
    x = h.mean(axis=1).reshape(bsz, seq, D_MODEL) + pos[None]

    def ln(z, g, b):
        mu = z.mean(-1, keepdims=True)
        var = jnp.mean(jnp.square(z - mu), -1, keepdims=True)
        return (z - mu) / jnp.sqrt(var + LN_EPS) * g + b

    for l in range(N_LAYERS):
        vec = tparams["vec"][l]
        q = x @ tparams["wq"][l] + vec[0]
        k = x @ tparams["wk"][l] + vec[1]
        v = x @ tparams["wv"][l] + vec[2]
        q = q.reshape(bsz, seq, N_HEADS, HEAD_DIM)
        k = k.reshape(bsz, seq, N_HEADS, HEAD_DIM)
        v = v.reshape(bsz, seq, N_HEADS, HEAD_DIM)
        s = jnp.einsum('bqhc,bkhc->bhqk', q, k) / math.sqrt(HEAD_DIM)
        p = jax.nn.softmax(s, axis=-1)
        o = jnp.einsum('bhqk,bkhc->bqhc', p, v).reshape(bsz, seq, D_MODEL)
        attn = o @ tparams["wo"][l] + vec[3]
        y = ln(x + attn, vec[4], vec[5])
        ff = jnp.maximum(y @ tparams["wff1"][l] + tparams["bff1"][l, 0], 0.0)
        ff = ff @ tparams["wff2"][l] + vec[6]
        x = ln(y + ff, vec[7], vec[8])
    pooled = x.mean(axis=1)
    hid = jnp.maximum(pooled @ cparams["wc1"] + cparams["bc1"], 0.0)
    return hid @ cparams["wc2"] + cparams["bc2"]


# ---------------------------------------------------------------------------
if __name__ == "__main__":
    root = jax.random.PRNGKey(0)
    data_key, param_key = jax.random.split(root)

    # keypoint coordinates: B sequences x T timesteps x n joints x (x, y)
    x_nodes = jax.random.normal(data_key, (BATCH, SEQ, NODES, IN_CH),
                                dtype=jnp.float32)

    adj = build_chain_adjacency(NODES)                    # shared pose skeleton
    # Block-diagonal normalized adjacency for all B*T graphs (built once on host).
    adj_bd = jnp.asarray(np.kron(np.eye(N_GRAPHS, dtype=np.float32),
                                 np.asarray(adj)))

    (gnn_p, gnn_ref_p, tp_kernel, tp_ref,
     cparams_ref, cls_pack, pos) = init_params(param_key)
    pos_bt = jnp.tile(pos, (BATCH, 1))                    # row b*T + t -> pos[t]

    @jax.jit
    def forward(x_nodes, adj_bd, gnn_p, pos_bt, tp_kernel, cls_pack):
        nodes_flat = x_nodes.reshape(TOTAL_NODES, IN_CH)  # (b,t,node) -> flat rows
        return fused_forward(nodes_flat, adj_bd, gnn_p, pos_bt, tp_kernel, cls_pack)

    logits = jax.block_until_ready(
        forward(x_nodes, adj_bd, gnn_p, pos_bt, tp_kernel, cls_pack))

    ref = reference_forward(x_nodes, adj, gnn_ref_p, tp_ref, cparams_ref, pos)
    # Tolerance relaxed from 5e-4 (pure f32) to 3e-2 because the transformer
    # weight stacks are stored in bf16 in HBM (per the perf review).
    np.testing.assert_allclose(np.asarray(logits), np.asarray(ref),
                               rtol=3e-2, atol=3e-2)

    print("KERNEL_OK")
</pallas_src>

<mosaic_0001>
module attributes {stable_mosaic.version = 11 : i64} {
  func.func @_fused_kernel(%arg0: i32, %arg1: memref<256x2xf32, #tpu.memory_space<vmem>>, %arg2: memref<256x256xf32, #tpu.memory_space<vmem>>, %arg3: memref<8x128xf32, #tpu.memory_space<vmem>>, %arg4: memref<64x64xf32, #tpu.memory_space<vmem>>, %arg5: memref<64x128xf32, #tpu.memory_space<vmem>>, %arg6: memref<16x128xf32, #tpu.memory_space<vmem>>, %arg7: memref<1x128x128xbf16, #tpu.memory_space<vmem>>, %arg8: memref<1x128x128xbf16, #tpu.memory_space<vmem>>, %arg9: memref<1x128x128xbf16, #tpu.memory_space<vmem>>, %arg10: memref<1x128x128xbf16, #tpu.memory_space<vmem>>, %arg11: memref<1x128x256xbf16, #tpu.memory_space<vmem>>, %arg12: memref<1x1x256xf32, #tpu.memory_space<vmem>>, %arg13: memref<1x256x128xbf16, #tpu.memory_space<vmem>>, %arg14: memref<1x9x128xf32, #tpu.memory_space<vmem>>, %arg15: memref<258x128xf32, #tpu.memory_space<vmem>>, %arg16: memref<2x2xf32, #tpu.memory_space<vmem>>, %arg17: memref<16x128xf32, #tpu.memory_space<vmem>>) attributes {dimension_semantics = [#tpu.dimension_semantics<arbitrary>], iteration_bounds = array<i64: 4>, scalar_prefetch = 0 : i64, scratch_operands = 1 : i64, tpu.core_type = #tpu.core_type<tc>, window_params = [{pipeline_mode = #tpu.pipeline_mode<synchronous>, transform_indices = @transform_0, window_bounds = array<i64: 256, 2>}, {pipeline_mode = #tpu.pipeline_mode<synchronous>, transform_indices = @transform_1, window_bounds = array<i64: 256, 256>}, {pipeline_mode = #tpu.pipeline_mode<synchronous>, transform_indices = @transform_2, window_bounds = array<i64: 8, 128>}, {pipeline_mode = #tpu.pipeline_mode<synchronous>, transform_indices = @transform_3, window_bounds = array<i64: 64, 64>}, {pipeline_mode = #tpu.pipeline_mode<synchronous>, transform_indices = @transform_4, window_bounds = array<i64: 64, 128>}, {pipeline_mode = #tpu.pipeline_mode<synchronous>, transform_indices = @transform_5, window_bounds = array<i64: 16, 128>}, {transform_indices = @transform_6, window_bounds = array<i64: 1, 128, 128>}, {transform_indices = @transform_7, window_bounds = array<i64: 1, 128, 128>}, {transform_indices = @transform_8, window_bounds = array<i64: 1, 128, 128>}, {transform_indices = @transform_9, window_bounds = array<i64: 1, 128, 128>}, {transform_indices = @transform_10, window_bounds = array<i64: 1, 128, 256>}, {transform_indices = @transform_11, window_bounds = array<i64: 1, 1, 256>}, {transform_indices = @transform_12, window_bounds = array<i64: 1, 256, 128>}, {transform_indices = @transform_13, window_bounds = array<i64: 1, 9, 128>}, {pipeline_mode = #tpu.pipeline_mode<synchronous>, transform_indices = @transform_14, window_bounds = array<i64: 258, 128>}, {pipeline_mode = #tpu.pipeline_mode<synchronous>, transform_indices = @transform_15, window_bounds = array<i64: 2, 2>}]} {
    %c0_i32 = arith.constant 0 : i32
    %0 = arith.cmpi eq, %arg0, %c0_i32 : i32
    %1 = arith.extui %0 : i1 to i32
    %c0_i32_0 = arith.constant 0 : i32
    %2 = arith.cmpi ne, %1, %c0_i32_0 : i32
    scf.if %2 {
      %c0_50 = arith.constant 0 : index
      %c0_51 = arith.constant 0 : index
      %156 = vector.load %arg2[%c0_50, %c0_51] : memref<256x256xf32, #tpu.memory_space<vmem>>, vector<256x256xf32>
      %c0_52 = arith.constant 0 : index
      %c0_53 = arith.constant 0 : index
      %157 = vector.load %arg3[%c0_52, %c0_53] : memref<8x128xf32, #tpu.memory_space<vmem>>, vector<8x128xf32>
      %c0_54 = arith.constant 0 : index
      %c0_55 = arith.constant 0 : index
      %158 = vector.load %arg1[%c0_54, %c0_55] : memref<256x2xf32, #tpu.memory_space<vmem>>, vector<256x2xf32>
      %159 = vector.extract_strided_slice %158 {offsets = [0, 0], sizes = [256, 1], strides = [1, 1]} : vector<256x2xf32> to vector<256x1xf32>
      %160 = vector.extract_strided_slice %157 {offsets = [6, 0], sizes = [1, 64], strides = [1, 1]} : vector<8x128xf32> to vector<1x64xf32>
      %161 = vector.broadcast %159 : vector<256x1xf32> to vector<256x64xf32>
      %162 = vector.broadcast %160 : vector<1x64xf32> to vector<256x64xf32>
      %163 = arith.mulf %161, %162 : vector<256x64xf32>
      %164 = vector.extract_strided_slice %158 {offsets = [0, 1], sizes = [256, 1], strides = [1, 1]} : vector<256x2xf32> to vector<256x1xf32>
      %165 = vector.extract_strided_slice %157 {offsets = [7, 0], sizes = [1, 64], strides = [1, 1]} : vector<8x128xf32> to vector<1x64xf32>
      %166 = vector.broadcast %164 : vector<256x1xf32> to vector<256x64xf32>
      %167 = vector.broadcast %165 : vector<1x64xf32> to vector<256x64xf32>
      %168 = arith.mulf %166, %167 : vector<256x64xf32>
      %169 = arith.addf %163, %168 : vector<256x64xf32>
      %cst_56 = arith.constant dense<0.000000e+00> : vector<256x64xf32>
      %170 = tpu.matmul %156, %169, %cst_56 {dimension_numbers = #tpu.dot_dimension_numbers<[1], [0], [0], [1], [0, 0, 1, 1], [], []>} : vector<256x256xf32>, vector<256x64xf32>, vector<256x64xf32> -> vector<256x64xf32>
      %171 = vector.extract_strided_slice %157 {offsets = [0, 0], sizes = [1, 64], strides = [1, 1]} : vector<8x128xf32> to vector<1x64xf32>
      %172 = vector.broadcast %171 : vector<1x64xf32> to vector<256x64xf32>
      %173 = arith.mulf %170, %172 : vector<256x64xf32>
      %174 = vector.extract_strided_slice %157 {offsets = [1, 0], sizes = [1, 64], strides = [1, 1]} : vector<8x128xf32> to vector<1x64xf32>
      %175 = vector.broadcast %174 : vector<1x64xf32> to vector<256x64xf32>
      %176 = arith.addf %173, %175 : vector<256x64xf32>
      %cst_57 = arith.constant 0.000000e+00 : f32
      %177 = vector.broadcast %cst_57 : f32 to vector<256x64xf32>
      %178 = arith.maximumf %176, %177 : vector<256x64xf32>
      %cst_58 = arith.constant dense<0.000000e+00> : vector<256x64xf32>
      %179 = tpu.matmul %156, %178, %cst_58 {dimension_numbers = #tpu.dot_dimension_numbers<[1], [0], [0], [1], [0, 0, 1, 1], [], []>} : vector<256x256xf32>, vector<256x64xf32>, vector<256x64xf32> -> vector<256x64xf32>
      %c0_59 = arith.constant 0 : index
      %c0_60 = arith.constant 0 : index
      %180 = vector.load %arg4[%c0_59, %c0_60] : memref<64x64xf32, #tpu.memory_space<vmem>>, vector<64x64xf32>
      %cst_61 = arith.constant dense<0.000000e+00> : vector<256x64xf32>
      %181 = tpu.matmul %179, %180, %cst_61 {dimension_numbers = #tpu.dot_dimension_numbers<[1], [0], [0], [1], [0, 0, 1, 1], [], []>} : vector<256x64xf32>, vector<64x64xf32>, vector<256x64xf32> -> vector<256x64xf32>
      %182 = vector.extract_strided_slice %157 {offsets = [2, 0], sizes = [1, 64], strides = [1, 1]} : vector<8x128xf32> to vector<1x64xf32>
      %183 = vector.broadcast %182 : vector<1x64xf32> to vector<256x64xf32>
      %184 = arith.mulf %181, %183 : vector<256x64xf32>
      %185 = vector.extract_strided_slice %157 {offsets = [3, 0], sizes = [1, 64], strides = [1, 1]} : vector<8x128xf32> to vector<1x64xf32>
      %186 = vector.broadcast %185 : vector<1x64xf32> to vector<256x64xf32>
      %187 = arith.addf %184, %186 : vector<256x64xf32>
      %cst_62 = arith.constant 0.000000e+00 : f32
      %188 = vector.broadcast %cst_62 : f32 to vector<256x64xf32>
      %189 = arith.maximumf %187, %188 : vector<256x64xf32>
      %cst_63 = arith.constant dense<0.000000e+00> : vector<256x64xf32>
      %190 = tpu.matmul %156, %189, %cst_63 {dimension_numbers = #tpu.dot_dimension_numbers<[1], [0], [0], [1], [0, 0, 1, 1], [], []>} : vector<256x256xf32>, vector<256x64xf32>, vector<256x64xf32> -> vector<256x64xf32>
      %c0_64 = arith.constant 0 : index
      %c0_65 = arith.constant 0 : index
      %191 = vector.load %arg5[%c0_64, %c0_65] : memref<64x128xf32, #tpu.memory_space<vmem>>, vector<64x128xf32>
      %cst_66 = arith.constant dense<0.000000e+00> : vector<256x128xf32>
      %192 = tpu.matmul %190, %191, %cst_66 {dimension_numbers = #tpu.dot_dimension_numbers<[1], [0], [0], [1], [0, 0, 1, 1], [], []>} : vector<256x64xf32>, vector<64x128xf32>, vector<256x128xf32> -> vector<256x128xf32>
      %193 = vector.extract_strided_slice %157 {offsets = [4, 0], sizes = [1, 128], strides = [1, 1]} : vector<8x128xf32> to vector<1x128xf32>
      %194 = vector.broadcast %193 : vector<1x128xf32> to vector<256x128xf32>
      %195 = arith.mulf %192, %194 : vector<256x128xf32>
      %196 = vector.extract_strided_slice %157 {offsets = [5, 0], sizes = [1, 128], strides = [1, 1]} : vector<8x128xf32> to vector<1x128xf32>
      %197 = vector.broadcast %196 : vector<1x128xf32> to vector<256x128xf32>
      %198 = arith.addf %195, %197 : vector<256x128xf32>
      %cst_67 = arith.constant 0.000000e+00 : f32
      %199 = vector.broadcast %cst_67 : f32 to vector<256x128xf32>
      %200 = arith.maximumf %198, %199 : vector<256x128xf32>
      %201 = vector.shape_cast %200 : vector<256x128xf32> to vector<16x16x128xf32>
      %cst_68 = arith.constant dense<0.000000e+00> : vector<16x128xf32>
      %202 = vector.multi_reduction <add>, %201, %cst_68 [1] : vector<16x16x128xf32> to vector<16x128xf32>
      %cst_69 = arith.constant 1.600000e+01 : f32
      %203 = vector.broadcast %cst_69 : f32 to vector<16x128xf32>
      %204 = arith.divf %202, %203 : vector<16x128xf32>
      %c0_70 = arith.constant 0 : index
      %c0_71 = arith.constant 0 : index
      %205 = vector.load %arg6[%c0_70, %c0_71] : memref<16x128xf32, #tpu.memory_space<vmem>>, vector<16x128xf32>
      %206 = arith.addf %204, %205 : vector<16x128xf32>
      %c0_72 = arith.constant 0 : index
      %c0_73 = arith.constant 0 : index
      %207 = vector.load %arg17[%c0_72, %c0_73] : memref<16x128xf32, #tpu.memory_space<vmem>>, vector<16x128xf32>
      tpu.vector_store %arg17[%c0_72, %c0_73], %206 {strides = array<i32>} : memref<16x128xf32, #tpu.memory_space<vmem>>, vector<16x128xf32>,
    } else {
    }
    %c0 = arith.constant 0 : index
    %c0_1 = arith.constant 0 : index
    %3 = vector.load %arg17[%c0, %c0_1] : memref<16x128xf32, #tpu.memory_space<vmem>>, vector<16x128xf32>
    %c0_2 = arith.constant 0 : index
    %c0_3 = arith.constant 0 : index
    %c0_4 = arith.constant 0 : index
    %4 = vector.load %arg14[%c0_2, %c0_3, %c0_4] : memref<1x9x128xf32, #tpu.memory_space<vmem>>, vector<1x9x128xf32>
    %5 = vector.shape_cast %4 : vector<1x9x128xf32> to vector<9x128xf32>
    %6 = vector.extract_strided_slice %5 {offsets = [0, 0], sizes = [1, 128], strides = [1, 1]} : vector<9x128xf32> to vector<1x128xf32>
    %7 = vector.extract_strided_slice %5 {offsets = [1, 0], sizes = [1, 128], strides = [1, 1]} : vector<9x128xf32> to vector<1x128xf32>
    %8 = vector.extract_strided_slice %5 {offsets = [2, 0], sizes = [1, 128], strides = [1, 1]} : vector<9x128xf32> to vector<1x128xf32>
    %9 = vector.extract_strided_slice %5 {offsets = [3, 0], sizes = [1, 128], strides = [1, 1]} : vector<9x128xf32> to vector<1x128xf32>
    %10 = vector.extract_strided_slice %5 {offsets = [4, 0], sizes = [1, 128], strides = [1, 1]} : vector<9x128xf32> to vector<1x128xf32>
    %11 = vector.extract_strided_slice %5 {offsets = [5, 0], sizes = [1, 128], strides = [1, 1]} : vector<9x128xf32> to vector<1x128xf32>
    %12 = vector.extract_strided_slice %5 {offsets = [6, 0], sizes = [1, 128], strides = [1, 1]} : vector<9x128xf32> to vector<1x128xf32>
    %13 = vector.extract_strided_slice %5 {offsets = [7, 0], sizes = [1, 128], strides = [1, 1]} : vector<9x128xf32> to vector<1x128xf32>
    %14 = vector.extract_strided_slice %5 {offsets = [8, 0], sizes = [1, 128], strides = [1, 1]} : vector<9x128xf32> to vector<1x128xf32>
    %c0_5 = arith.constant 0 : index
    %c0_6 = arith.constant 0 : index
    %c0_7 = arith.constant 0 : index
    %15 = vector.load %arg7[%c0_5, %c0_6, %c0_7] : memref<1x128x128xbf16, #tpu.memory_space<vmem>>, vector<1x128x128xbf16>
    %16 = vector.shape_cast %15 : vector<1x128x128xbf16> to vector<128x128xbf16>
    %17 = arith.extf %16 : vector<128x128xbf16> to vector<128x128xf32>
    %c0_8 = arith.constant 0 : index
    %c0_9 = arith.constant 0 : index
    %c0_10 = arith.constant 0 : index
    %18 = vector.load %arg8[%c0_8, %c0_9, %c0_10] : memref<1x128x128xbf16, #tpu.memory_space<vmem>>, vector<1x128x128xbf16>
    %19 = vector.shape_cast %18 : vector<1x128x128xbf16> to vector<128x128xbf16>
    %20 = arith.extf %19 : vector<128x128xbf16> to vector<128x128xf32>
    %c0_11 = arith.constant 0 : index
    %c0_12 = arith.constant 0 : index
    %c0_13 = arith.constant 0 : index
    %21 = vector.load %arg9[%c0_11, %c0_12, %c0_13] : memref<1x128x128xbf16, #tpu.memory_space<vmem>>, vector<1x128x128xbf16>
    %22 = vector.shape_cast %21 : vector<1x128x128xbf16> to vector<128x128xbf16>
    %23 = arith.extf %22 : vector<128x128xbf16> to vector<128x128xf32>
    %c0_14 = arith.constant 0 : index
    %c0_15 = arith.constant 0 : index
    %c0_16 = arith.constant 0 : index
    %24 = vector.load %arg10[%c0_14, %c0_15, %c0_16] : memref<1x128x128xbf16, #tpu.memory_space<vmem>>, vector<1x128x128xbf16>
    %25 = vector.shape_cast %24 : vector<1x128x128xbf16> to vector<128x128xbf16>
    %26 = arith.extf %25 : vector<128x128xbf16> to vector<128x128xf32>
    %cst = arith.constant dense<0.000000e+00> : vector<16x128xf32>
    %27 = tpu.matmul %3, %17, %cst {dimension_numbers = #tpu.dot_dimension_numbers<[1], [0], [0], [1], [0, 0, 1, 1], [], []>} : vector<16x128xf32>, vector<128x128xf32>, vector<16x128xf32> -> vector<16x128xf32>
    %28 = vector.broadcast %6 : vector<1x128xf32> to vector<16x128xf32>
    %29 = arith.addf %27, %28 : vector<16x128xf32>
    %cst_17 = arith.constant dense<0.000000e+00> : vector<16x128xf32>
    %30 = tpu.matmul %3, %20, %cst_17 {dimension_numbers = #tpu.dot_dimension_numbers<[1], [0], [0], [1], [0, 0, 1, 1], [], []>} : vector<16x128xf32>, vector<128x128xf32>, vector<16x128xf32> -> vector<16x128xf32>
    %31 = vector.broadcast %7 : vector<1x128xf32> to vector<16x128xf32>
    %32 = arith.addf %30, %31 : vector<16x128xf32>
    %cst_18 = arith.constant dense<0.000000e+00> : vector<16x128xf32>
    %33 = tpu.matmul %3, %23, %cst_18 {dimension_numbers = #tpu.dot_dimension_numbers<[1], [0], [0], [1], [0, 0, 1, 1], [], []>} : vector<16x128xf32>, vector<128x128xf32>, vector<16x128xf32> -> vector<16x128xf32>
    %34 = vector.broadcast %8 : vector<1x128xf32> to vector<16x128xf32>
    %35 = arith.addf %33, %34 : vector<16x128xf32>
    %36 = vector.extract_strided_slice %29 {offsets = [0, 0], sizes = [16, 32], strides = [1, 1]} : vector<16x128xf32> to vector<16x32xf32>
    %37 = vector.shape_cast %36 : vector<16x32xf32> to vector<2x8x32xf32>
    %38 = vector.extract_strided_slice %29 {offsets = [0, 32], sizes = [16, 32], strides = [1, 1]} : vector<16x128xf32> to vector<16x32xf32>
    %39 = vector.shape_cast %38 : vector<16x32xf32> to vector<2x8x32xf32>
    %40 = vector.extract_strided_slice %29 {offsets = [0, 64], sizes = [16, 32], strides = [1, 1]} : vector<16x128xf32> to vector<16x32xf32>
    %41 = vector.shape_cast %40 : vector<16x32xf32> to vector<2x8x32xf32>
    %42 = vector.extract_strided_slice %29 {offsets = [0, 96], sizes = [16, 32], strides = [1, 1]} : vector<16x128xf32> to vector<16x32xf32>
    %43 = vector.shape_cast %42 : vector<16x32xf32> to vector<2x8x32xf32>
    %44 = tpu.concatenate %37, %39, %41, %43 in 0 : vector<2x8x32xf32>, vector<2x8x32xf32>, vector<2x8x32xf32>, vector<2x8x32xf32> -> vector<8x8x32xf32>
    %45 = vector.extract_strided_slice %32 {offsets = [0, 0], sizes = [16, 32], strides = [1, 1]} : vector<16x128xf32> to vector<16x32xf32>
    %46 = vector.shape_cast %45 : vector<16x32xf32> to vector<2x8x32xf32>
    %47 = vector.extract_strided_slice %32 {offsets = [0, 32], sizes = [16, 32], strides = [1, 1]} : vector<16x128xf32> to vector<16x32xf32>
    %48 = vector.shape_cast %47 : vector<16x32xf32> to vector<2x8x32xf32>
    %49 = vector.extract_strided_slice %32 {offsets = [0, 64], sizes = [16, 32], strides = [1, 1]} : vector<16x128xf32> to vector<16x32xf32>
    %50 = vector.shape_cast %49 : vector<16x32xf32> to vector<2x8x32xf32>
    %51 = vector.extract_strided_slice %32 {offsets = [0, 96], sizes = [16, 32], strides = [1, 1]} : vector<16x128xf32> to vector<16x32xf32>
    %52 = vector.shape_cast %51 : vector<16x32xf32> to vector<2x8x32xf32>
    %53 = tpu.concatenate %46, %48, %50, %52 in 0 : vector<2x8x32xf32>, vector<2x8x32xf32>, vector<2x8x32xf32>, vector<2x8x32xf32> -> vector<8x8x32xf32>
    %54 = vector.extract_strided_slice %35 {offsets = [0, 0], sizes = [16, 32], strides = [1, 1]} : vector<16x128xf32> to vector<16x32xf32>
    %55 = vector.shape_cast %54 : vector<16x32xf32> to vector<2x8x32xf32>
    %56 = vector.extract_strided_slice %35 {offsets = [0, 32], sizes = [16, 32], strides = [1, 1]} : vector<16x128xf32> to vector<16x32xf32>
    %57 = vector.shape_cast %56 : vector<16x32xf32> to vector<2x8x32xf32>
    %58 = vector.extract_strided_slice %35 {offsets = [0, 64], sizes = [16, 32], strides = [1, 1]} : vector<16x128xf32> to vector<16x32xf32>
    %59 = vector.shape_cast %58 : vector<16x32xf32> to vector<2x8x32xf32>
    %60 = vector.extract_strided_slice %35 {offsets = [0, 96], sizes = [16, 32], strides = [1, 1]} : vector<16x128xf32> to vector<16x32xf32>
    %61 = vector.shape_cast %60 : vector<16x32xf32> to vector<2x8x32xf32>
    %62 = tpu.concatenate %55, %57, %59, %61 in 0 : vector<2x8x32xf32>, vector<2x8x32xf32>, vector<2x8x32xf32>, vector<2x8x32xf32> -> vector<8x8x32xf32>
    "tpu.trace_start"() <{level = 10 : i32, message = "bqc,bkc->bqk"}> : () -> ()
    %cst_19 = arith.constant dense<0.000000e+00> : vector<8x8x8xf32>
    %63 = tpu.matmul %44, %53, %cst_19 {dimension_numbers = #tpu.dot_dimension_numbers<[2], [2], [1], [1], [0, 0, 0, 1, 1, 1], [0], [0]>} : vector<8x8x32xf32>, vector<8x8x32xf32>, vector<8x8x8xf32> -> vector<8x8x8xf32>
    "tpu.trace_stop"() : () -> ()
    %cst_20 = arith.constant 0.176776692 : f32
    %64 = vector.broadcast %cst_20 : f32 to vector<8x8x8xf32>
    %65 = arith.mulf %63, %64 : vector<8x8x8xf32>
    %cst_21 = arith.constant dense<0xFF800000> : vector<8x8xf32>
    %66 = vector.multi_reduction <maximumf>, %65, %cst_21 [2] : vector<8x8x8xf32> to vector<8x8xf32>
    %67 = vector.shape_cast %66 : vector<8x8xf32> to vector<8x8x1xf32>
    %68 = vector.broadcast %67 : vector<8x8x1xf32> to vector<8x8x8xf32>
    %69 = arith.subf %65, %68 : vector<8x8x8xf32>
    %70 = math.exp %69 : vector<8x8x8xf32>
    %cst_22 = arith.constant dense<0.000000e+00> : vector<8x8xf32>
    %71 = vector.multi_reduction <add>, %70, %cst_22 [2] : vector<8x8x8xf32> to vector<8x8xf32>
    %72 = vector.shape_cast %71 : vector<8x8xf32> to vector<8x8x1xf32>
    %73 = tpu.reciprocal %72 : vector<8x8x1xf32> -> vector<8x8x1xf32>
    %74 = vector.broadcast %73 : vector<8x8x1xf32> to vector<8x8x8xf32>
    %75 = arith.mulf %70, %74 : vector<8x8x8xf32>
    "tpu.trace_start"() <{level = 10 : i32, message = "bqk,bkc->bqc"}> : () -> ()
    %cst_23 = arith.constant dense<0.000000e+00> : vector<8x8x32xf32>
    %76 = tpu.matmul %75, %62, %cst_23 {dimension_numbers = #tpu.dot_dimension_numbers<[2], [1], [1], [2], [0, 0, 0, 1, 1, 2], [0], [0]>} : vector<8x8x8xf32>, vector<8x8x32xf32>, vector<8x8x32xf32> -> vector<8x8x32xf32>
    "tpu.trace_stop"() : () -> ()
    %77 = vector.shape_cast %76 : vector<8x8x32xf32> to vector<4x16x32xf32>
    %78 = vector.extract_strided_slice %77 {offsets = [0, 0, 0], sizes = [1, 16, 32], strides = [1, 1, 1]} : vector<4x16x32xf32> to vector<1x16x32xf32>
    %79 = vector.shape_cast %78 : vector<1x16x32xf32> to vector<16x32xf32>
    %80 = vector.extract_strided_slice %77 {offsets = [1, 0, 0], sizes = [1, 16, 32], strides = [1, 1, 1]} : vector<4x16x32xf32> to vector<1x16x32xf32>
    %81 = vector.shape_cast %80 : vector<1x16x32xf32> to vector<16x32xf32>
    %82 = vector.extract_strided_slice %77 {offsets = [2, 0, 0], sizes = [1, 16, 32], strides = [1, 1, 1]} : vector<4x16x32xf32> to vector<1x16x32xf32>
    %83 = vector.shape_cast %82 : vector<1x16x32xf32> to vector<16x32xf32>
    %84 = vector.extract_strided_slice %77 {offsets = [3, 0, 0], sizes = [1, 16, 32], strides = [1, 1, 1]} : vector<4x16x32xf32> to vector<1x16x32xf32>
    %85 = vector.shape_cast %84 : vector<1x16x32xf32> to vector<16x32xf32>
    %86 = tpu.concatenate %79, %81, %83, %85 in 1 : vector<16x32xf32>, vector<16x32xf32>, vector<16x32xf32>, vector<16x32xf32> -> vector<16x128xf32>
    %cst_24 = arith.constant dense<0.000000e+00> : vector<16x128xf32>
    %87 = tpu.matmul %86, %26, %cst_24 {dimension_numbers = #tpu.dot_dimension_numbers<[1], [0], [0], [1], [0, 0, 1, 1], [], []>} : vector<16x128xf32>, vector<128x128xf32>, vector<16x128xf32> -> vector<16x128xf32>
    %88 = vector.broadcast %9 : vector<1x128xf32> to vector<16x128xf32>
    %89 = arith.addf %87, %88 : vector<16x128xf32>
    %90 = arith.addf %3, %89 : vector<16x128xf32>
    %cst_25 = arith.constant dense<0.000000e+00> : vector<16xf32>
    %91 = vector.multi_reduction <add>, %90, %cst_25 [1] : vector<16x128xf32> to vector<16xf32>
    %92 = vector.shape_cast %91 : vector<16xf32> to vector<16x1xf32>
    %cst_26 = arith.constant 1.280000e+02 : f32
    %93 = vector.broadcast %cst_26 : f32 to vector<16x1xf32>
    %94 = arith.divf %92, %93 : vector<16x1xf32>
    %95 = vector.broadcast %94 : vector<16x1xf32> to vector<16x128xf32>
    %96 = arith.subf %90, %95 : vector<16x128xf32>
    %97 = arith.mulf %96, %96 : vector<16x128xf32>
    %cst_27 = arith.constant dense<0.000000e+00> : vector<16xf32>
    %98 = vector.multi_reduction <add>, %97, %cst_27 [1] : vector<16x128xf32> to vector<16xf32>
    %99 = vector.shape_cast %98 : vector<16xf32> to vector<16x1xf32>
    %cst_28 = arith.constant 1.280000e+02 : f32
    %100 = vector.broadcast %cst_28 : f32 to vector<16x1xf32>
    %101 = arith.divf %99, %100 : vector<16x1xf32>
    %102 = vector.broadcast %94 : vector<16x1xf32> to vector<16x128xf32>
    %103 = arith.subf %90, %102 : vector<16x128xf32>
    %cst_29 = arith.constant 9.99999974E-6 : f32
    %104 = vector.broadcast %cst_29 : f32 to vector<16x1xf32>
    %105 = arith.addf %101, %104 : vector<16x1xf32>
    %106 = math.rsqrt %105 : vector<16x1xf32>
    %107 = vector.broadcast %106 : vector<16x1xf32> to vector<16x128xf32>
    %108 = arith.mulf %103, %107 : vector<16x128xf32>
    %109 = vector.broadcast %10 : vector<1x128xf32> to vector<16x128xf32>
    %110 = arith.mulf %108, %109 : vector<16x128xf32>
    %111 = vector.broadcast %11 : vector<1x128xf32> to vector<16x128xf32>
    %112 = arith.addf %110, %111 : vector<16x128xf32>
    %c0_30 = arith.constant 0 : index
    %c0_31 = arith.constant 0 : index
    %c0_32 = arith.constant 0 : index
    %113 = vector.load %arg11[%c0_30, %c0_31, %c0_32] : memref<1x128x256xbf16, #tpu.memory_space<vmem>>, vector<1x128x256xbf16>
    %114 = vector.shape_cast %113 : vector<1x128x256xbf16> to vector<128x256xbf16>
    %115 = arith.extf %114 : vector<128x256xbf16> to vector<128x256xf32>
    %cst_33 = arith.constant dense<0.000000e+00> : vector<16x256xf32>
    %116 = tpu.matmul %112, %115, %cst_33 {dimension_numbers = #tpu.dot_dimension_numbers<[1], [0], [0], [1], [0, 0, 1, 1], [], []>} : vector<16x128xf32>, vector<128x256xf32>, vector<16x256xf32> -> vector<16x256xf32>
    %c0_34 = arith.constant 0 : index
    %c0_35 = arith.constant 0 : index
    %c0_36 = arith.constant 0 : index
    %117 = vector.load %arg12[%c0_34, %c0_35, %c0_36] : memref<1x1x256xf32, #tpu.memory_space<vmem>>, vector<1x1x256xf32>
    %118 = vector.shape_cast %117 : vector<1x1x256xf32> to vector<1x256xf32>
    %119 = vector.broadcast %118 : vector<1x256xf32> to vector<16x256xf32>
    %120 = arith.addf %116, %119 : vector<16x256xf32>
    %cst_37 = arith.constant 0.000000e+00 : f32
    %121 = vector.broadcast %cst_37 : f32 to vector<16x256xf32>
    %122 = arith.maximumf %120, %121 : vector<16x256xf32>
    %c0_38 = arith.constant 0 : index
    %c0_39 = arith.constant 0 : index
    %c0_40 = arith.constant 0 : index
    %123 = vector.load %arg13[%c0_38, %c0_39, %c0_40] : memref<1x256x128xbf16, #tpu.memory_space<vmem>>, vector<1x256x128xbf16>
    %124 = vector.shape_cast %123 : vector<1x256x128xbf16> to vector<256x128xbf16>
    %125 = arith.extf %124 : vector<256x128xbf16> to vector<256x128xf32>
    %cst_41 = arith.constant dense<0.000000e+00> : vector<16x128xf32>
    %126 = tpu.matmul %122, %125, %cst_41 {dimension_numbers = #tpu.dot_dimension_numbers<[1], [0], [0], [1], [0, 0, 1, 1], [], []>} : vector<16x256xf32>, vector<256x128xf32>, vector<16x128xf32> -> vector<16x128xf32>
    %127 = vector.broadcast %12 : vector<1x128xf32> to vector<16x128xf32>
    %128 = arith.addf %126, %127 : vector<16x128xf32>
    %129 = arith.addf %112, %128 : vector<16x128xf32>
    %cst_42 = arith.constant dense<0.000000e+00> : vector<16xf32>
    %130 = vector.multi_reduction <add>, %129, %cst_42 [1] : vector<16x128xf32> to vector<16xf32>
    %131 = vector.shape_cast %130 : vector<16xf32> to vector<16x1xf32>
    %cst_43 = arith.constant 1.280000e+02 : f32
    %132 = vector.broadcast %cst_43 : f32 to vector<16x1xf32>
    %133 = arith.divf %131, %132 : vector<16x1xf32>
    %134 = vector.broadcast %133 : vector<16x1xf32> to vector<16x128xf32>
    %135 = arith.subf %129, %134 : vector<16x128xf32>
    %136 = arith.mulf %135, %135 : vector<16x128xf32>
    %cst_44 = arith.constant dense<0.000000e+00> : vector<16xf32>
    %137 = vector.multi_reduction <add>, %136, %cst_44 [1] : vector<16x128xf32> to vector<16xf32>
    %138 = vector.shape_cast %137 : vector<16xf32> to vector<16x1xf32>
    %cst_45 = arith.constant 1.280000e+02 : f32
    %139 = vector.broadcast %cst_45 : f32 to vector<16x1xf32>
    %140 = arith.divf %138, %139 : vector<16x1xf32>
    %141 = vector.broadcast %133 : vector<16x1xf32> to vector<16x128xf32>
    %142 = arith.subf %129, %141 : vector<16x128xf32>
    %cst_46 = arith.constant 9.99999974E-6 : f32
    %143 = vector.broadcast %cst_46 : f32 to vector<16x1xf32>
    %144 = arith.addf %140, %143 : vector<16x1xf32>
    %145 = math.rsqrt %144 : vector<16x1xf32>
    %146 = vector.broadcast %145 : vector<16x1xf32> to vector<16x128xf32>
    %147 = arith.mulf %142, %146 : vector<16x128xf32>
    %148 = vector.broadcast %13 : vector<1x128xf32> to vector<16x128xf32>
    %149 = arith.mulf %147, %148 : vector<16x128xf32>
    %150 = vector.broadcast %14 : vector<1x128xf32> to vector<16x128xf32>
    %151 = arith.addf %149, %150 : vector<16x128xf32>
    %c0_47 = arith.constant 0 : index
    %c0_48 = arith.constant 0 : index
    %152 = vector.load %arg17[%c0_47, %c0_48] : memref<16x128xf32, #tpu.memory_space<vmem>>, vector<16x128xf32>
    tpu.vector_store %arg17[%c0_47, %c0_48], %151 {strides = array<i32>} : memref<16x128xf32, #tpu.memory_space<vmem>>, vector<16x128xf32>,
    %c3_i32 = arith.constant 3 : i32
    %153 = arith.cmpi eq, %arg0, %c3_i32 : i32
    %154 = arith.extui %153 : i1 to i32
    %c0_i32_49 = arith.constant 0 : i32
    %155 = arith.cmpi ne, %154, %c0_i32_49 : i32
    scf.if %155 {
      %c0_50 = arith.constant 0 : index
      %c0_51 = arith.constant 0 : index
      %156 = vector.load %arg15[%c0_50, %c0_51] : memref<258x128xf32, #tpu.memory_space<vmem>>, vector<258x128xf32>
      %157 = vector.shape_cast %151 : vector<16x128xf32> to vector<2x8x128xf32>
      %cst_52 = arith.constant dense<0.000000e+00> : vector<2x128xf32>
      %158 = vector.multi_reduction <add>, %157, %cst_52 [1] : vector<2x8x128xf32> to vector<2x128xf32>
      %cst_53 = arith.constant 8.000000e+00 : f32
      %159 = vector.broadcast %cst_53 : f32 to vector<2x128xf32>
      %160 = arith.divf %158, %159 : vector<2x128xf32>
      %161 = vector.extract_strided_slice %156 {offsets = [0, 0], sizes = [128, 128], strides = [1, 1]} : vector<258x128xf32> to vector<128x128xf32>
      %cst_54 = arith.constant dense<0.000000e+00> : vector<2x128xf32>
      %162 = tpu.matmul %160, %161, %cst_54 {dimension_numbers = #tpu.dot_dimension_numbers<[1], [0], [0], [1], [0, 0, 1, 1], [], []>} : vector<2x128xf32>, vector<128x128xf32>, vector<2x128xf32> -> vector<2x128xf32>
      %163 = vector.extract_strided_slice %156 {offsets = [256, 0], sizes = [1, 128], strides = [1, 1]} : vector<258x128xf32> to vector<1x128xf32>
      %164 = vector.broadcast %163 : vector<1x128xf32> to vector<2x128xf32>
      %165 = arith.addf %162, %164 : vector<2x128xf32>
      %cst_55 = arith.constant 0.000000e+00 : f32
      %166 = vector.broadcast %cst_55 : f32 to vector<2x128xf32>
      %167 = arith.maximumf %165, %166 : vector<2x128xf32>
      %168 = vector.extract_strided_slice %156 {offsets = [128, 0], sizes = [128, 128], strides = [1, 1]} : vector<258x128xf32> to vector<128x128xf32>
      %cst_56 = arith.constant dense<0.000000e+00> : vector<2x128xf32>
      %169 = tpu.matmul %167, %168, %cst_56 {dimension_numbers = #tpu.dot_dimension_numbers<[1], [0], [0], [1], [0, 0, 1, 1], [], []>} : vector<2x128xf32>, vector<128x128xf32>, vector<2x128xf32> -> vector<2x128xf32>
      %170 = vector.extract_strided_slice %156 {offsets = [257, 0], sizes = [1, 128], strides = [1, 1]} : vector<258x128xf32> to vector<1x128xf32>
      %171 = vector.broadcast %170 : vector<1x128xf32> to vector<2x128xf32>
      %172 = arith.addf %169, %171 : vector<2x128xf32>
      %173 = vector.extract_strided_slice %172 {offsets = [0, 0], sizes = [2, 2], strides = [1, 1]} : vector<2x128xf32> to vector<2x2xf32>
      %c0_57 = arith.constant 0 : index
      %c0_58 = arith.constant 0 : index
      %174 = vector.load %arg16[%c0_57, %c0_58] : memref<2x2xf32, #tpu.memory_space<vmem>>, vector<2x2xf32>
      tpu.vector_store %arg16[%c0_57, %c0_58], %173 {strides = array<i32>} : memref<2x2xf32, #tpu.memory_space<vmem>>, vector<2x2xf32>,
    } else {
    }
    return
  }
  func.func @transform_0(%arg0: i32) -> (i32, i32) {
    %c0_i32 = arith.constant 0 : i32
    %c0_i32_0 = arith.constant 0 : i32
    %c0_i32_1 = arith.constant 0 : i32
    return %c0_i32, %c0_i32_0 : i32, i32
  }
  func.func @transform_1(%arg0: i32) -> (i32, i32) {
    %c0_i32 = arith.constant 0 : i32
    %c0_i32_0 = arith.constant 0 : i32
    %c0_i32_1 = arith.constant 0 : i32
    return %c0_i32, %c0_i32_0 : i32, i32
  }
  func.func @transform_2(%arg0: i32) -> (i32, i32) {
    %c0_i32 = arith.constant 0 : i32
    %c0_i32_0 = arith.constant 0 : i32
    %c0_i32_1 = arith.constant 0 : i32
    return %c0_i32, %c0_i32_0 : i32, i32
  }
  func.func @transform_3(%arg0: i32) -> (i32, i32) {
    %c0_i32 = arith.constant 0 : i32
    %c0_i32_0 = arith.constant 0 : i32
    %c0_i32_1 = arith.constant 0 : i32
    return %c0_i32, %c0_i32_0 : i32, i32
  }
  func.func @transform_4(%arg0: i32) -> (i32, i32) {
    %c0_i32 = arith.constant 0 : i32
    %c0_i32_0 = arith.constant 0 : i32
    %c0_i32_1 = arith.constant 0 : i32
    return %c0_i32, %c0_i32_0 : i32, i32
  }
  func.func @transform_5(%arg0: i32) -> (i32, i32) {
    %c0_i32 = arith.constant 0 : i32
    %c0_i32_0 = arith.constant 0 : i32
    %c0_i32_1 = arith.constant 0 : i32
    return %c0_i32, %c0_i32_0 : i32, i32
  }
  func.func @transform_6(%arg0: i32) -> (i32, i32, i32) {
    %c0_i32 = arith.constant 0 : i32
    %c0_i32_0 = arith.constant 0 : i32
    %c0_i32_1 = arith.constant 0 : i32
    return %arg0, %c0_i32, %c0_i32_0 : i32, i32, i32
  }
  func.func @transform_7(%arg0: i32) -> (i32, i32, i32) {
    %c0_i32 = arith.constant 0 : i32
    %c0_i32_0 = arith.constant 0 : i32
    %c0_i32_1 = arith.constant 0 : i32
    return %arg0, %c0_i32, %c0_i32_0 : i32, i32, i32
  }
  func.func @transform_8(%arg0: i32) -> (i32, i32, i32) {
    %c0_i32 = arith.constant 0 : i32
    %c0_i32_0 = arith.constant 0 : i32
    %c0_i32_1 = arith.constant 0 : i32
    return %arg0, %c0_i32, %c0_i32_0 : i32, i32, i32
  }
  func.func @transform_9(%arg0: i32) -> (i32, i32, i32) {
    %c0_i32 = arith.constant 0 : i32
    %c0_i32_0 = arith.constant 0 : i32
    %c0_i32_1 = arith.constant 0 : i32
    return %arg0, %c0_i32, %c0_i32_0 : i32, i32, i32
  }
  func.func @transform_10(%arg0: i32) -> (i32, i32, i32) {
    %c0_i32 = arith.constant 0 : i32
    %c0_i32_0 = arith.constant 0 : i32
    %c0_i32_1 = arith.constant 0 : i32
    return %arg0, %c0_i32, %c0_i32_0 : i32, i32, i32
  }
  func.func @transform_11(%arg0: i32) -> (i32, i32, i32) {
    %c0_i32 = arith.constant 0 : i32
    %c0_i32_0 = arith.constant 0 : i32
    %c0_i32_1 = arith.constant 0 : i32
    return %arg0, %c0_i32, %c0_i32_0 : i32, i32, i32
  }
  func.func @transform_12(%arg0: i32) -> (i32, i32, i32) {
    %c0_i32 = arith.constant 0 : i32
    %c0_i32_0 = arith.constant 0 : i32
    %c0_i32_1 = arith.constant 0 : i32
    return %arg0, %c0_i32, %c0_i32_0 : i32, i32, i32
  }
  func.func @transform_13(%arg0: i32) -> (i32, i32, i32) {
    %c0_i32 = arith.constant 0 : i32
    %c0_i32_0 = arith.constant 0 : i32
    %c0_i32_1 = arith.constant 0 : i32
    return %arg0, %c0_i32, %c0_i32_0 : i32, i32, i32
  }
  func.func @transform_14(%arg0: i32) -> (i32, i32) {
    %c0_i32 = arith.constant 0 : i32
    %c0_i32_0 = arith.constant 0 : i32
    %c0_i32_1 = arith.constant 0 : i32
    return %c0_i32, %c0_i32_0 : i32, i32
  }
  func.func @transform_15(%arg0: i32) -> (i32, i32) {
    %c0_i32 = arith.constant 0 : i32
    %c0_i32_0 = arith.constant 0 : i32
    %c0_i32_1 = arith.constant 0 : i32
    return %c0_i32, %c0_i32_0 : i32, i32
  }
}

</mosaic_0001>

<llo_original>
// kernel: forward.1
$region0: #{forward.1}
  #allocation0 [shape = 'u32[]', space=smem, size = 0x4, offset = 0x4, fixed_abs, tag = 'smem constant byte address 0x4 - core index']
  #allocation1 [shape = 'u32[72,128]{1,0:T(1,128)}', space=vmem, size = 0x9000, scoped, tag = 'internal scratch']
  #allocation2 [shape = 'f32[16,128]{1,0:T(8,128)}', space=vmem, size = 0x2000, scoped, tag = 'scratch operand']
  %s0 = inlined_call_operand.vmem [shape: f32[256,2], index: 0, kind: input, shape index: {}]
  %s1 = inlined_call_operand.hbm [shape: f32[256,256], index: 1, kind: input, shape index: {}]
  %s2 = inlined_call_operand.vmem [shape: f32[8,128], index: 2, kind: input, shape index: {}]
  %s3 = inlined_call_operand.vmem [shape: f32[64,64], index: 3, kind: input, shape index: {}]
  %s4 = inlined_call_operand.hbm [shape: f32[64,128], index: 4, kind: input, shape index: {}]
  %s5 = inlined_call_operand.vmem [shape: f32[16,128], index: 5, kind: input, shape index: {}]
  %s6 = inlined_call_operand.hbm [shape: bf16[4,128,128], index: 6, kind: input, shape index: {}]
  %s7 = inlined_call_operand.hbm [shape: bf16[4,128,128], index: 7, kind: input, shape index: {}]
  %s8 = inlined_call_operand.hbm [shape: bf16[4,128,128], index: 8, kind: input, shape index: {}]
  %s9 = inlined_call_operand.hbm [shape: bf16[4,128,128], index: 9, kind: input, shape index: {}]
  %s10 = inlined_call_operand.hbm [shape: bf16[4,128,256], index: 10, kind: input, shape index: {}]
  %s11 = inlined_call_operand.vmem [shape: f32[4,1,256], index: 11, kind: input, shape index: {}]
  %s12 = inlined_call_operand.hbm [shape: bf16[4,256,128], index: 12, kind: input, shape index: {}]
  %s13 = inlined_call_operand.vmem [shape: f32[4,9,128], index: 13, kind: input, shape index: {}]
  %s14 = inlined_call_operand.vmem [shape: f32[258,128], index: 14, kind: input, shape index: {}]
  %s15 = inlined_call_operand.hbm [shape: f32[2,2], index: 15, kind: output, shape index: {}]
  %s16 = sld [smem:[#allocation0]]
  $region133: #{forward.1} parent=0
    _
  %s18 = ssub.s32 1, %s16
  %s19 = scalar_select 0, %s18, %s16
  $region1: #{forward.1} parent=0
    #allocation3 [shape = 'u8[262144]{0}', space=vmem, size = 0x40000, scoped, tag = 'input window, operand 1, single buffered']
    #allocation4 [shape = 's32[2]{0}', space=sflag, size = 0x8, scoped, tag = 'scoped memory for forward.1']
    #allocation5 [shape = 's32[2]{0}', space=sflag, size = 0x8, scoped, tag = 'scoped memory for forward.1']
    #allocation6 [shape = 'u8[32768]{0}', space=vmem, size = 0x8000, scoped, tag = 'input window, operand 4, single buffered']
    #allocation7 [shape = 's32[1]{0}', space=sflag, size = 0x4, scoped, tag = 'scoped memory for forward.1']
    #allocation8 [shape = 'u8[65536]{0}', space=vmem, size = 0x10000, scoped, tag = 'input window, operand 6']
    #allocation9 [shape = 'u8[65536]{0}', space=vmem, size = 0x10000, scoped, tag = 'input window, operand 7']
    #allocation10 [shape = 'u8[65536]{0}', space=vmem, size = 0x10000, scoped, tag = 'input window, operand 8']
    #allocation11 [shape = 'u8[65536]{0}', space=vmem, size = 0x10000, scoped, tag = 'input window, operand 9']
    #allocation12 [shape = 'u8[131072]{0}', space=vmem, size = 0x20000, scoped, tag = 'input window, operand 10']
    #allocation13 [shape = 'u8[131072]{0}', space=vmem, size = 0x20000, scoped, tag = 'input window, operand 12']
    #allocation14 [shape = 'u8[1024]{0}', space=vmem, size = 0x400, scoped, tag = 'output window, operand 0, single buffered']
    %20 = vsyncpa [#allocation4], 0
    %21 = vsyncpa [#allocation7], 0
    %22 = vsyncpa [#allocation5], 0
    loop: start=0, step=1, limit=6
    $region2: #{forward.1} parent=1 // loop_pre_header
      _
    $region3: #{forward.1} parent=1 // loop_header
      %s24 = sphi 0, %s28
      %p25 = scmp.ge.s32.totalorder %s24, 6
      %s32 = sphi 0, %s32
      %s34 = sphi 0, %s32
      %s35 = sphi 0, %s34
      %s49 = sphi 0, %s35
      %s53 = sphi 0, %s53
      %s55 = sphi 0, %s53
      %s56 = sphi 0, %s55
      %s70 = sphi 0, %s56
      %s74 = sphi 0, %s74
      %s76 = sphi 0, %s74
      %s77 = sphi 0, %s76
      %s91 = sphi 0, %s77
      %s95 = sphi 0, %s95
      %s97 = sphi 0, %s95
      %s98 = sphi 0, %s97
      %s112 = sphi 0, %s98
      %s116 = sphi 0, %s116
      %s118 = sphi 0, %s116
      %s119 = sphi 0, %s118
      %s133 = sphi 0, %s119
      %s137 = sphi 0, %s137
      %s139 = sphi 0, %s137
      %s140 = sphi 0, %s139
      %s154 = sphi 0, %s140
      %s160 = sphi 0, %s162
      %s163 = sphi 0, %s160
      %s164 = sphi 0, %s163
      %s180 = sphi 0, %s164
      %s186 = sphi 0, %s188
      %s189 = sphi 0, %s186
      %s190 = sphi 0, %s189
      %s206 = sphi 0, %s190
      %s212 = sphi 0, %s214
      %s215 = sphi 0, %s212
      %s216 = sphi 0, %s215
      %s232 = sphi 0, %s216
      %s238 = sphi 0, %s240
      %s241 = sphi 0, %s238
      %s242 = sphi 0, %s241
      %s258 = sphi 0, %s242
      %s264 = sphi 0, %s266
      %s267 = sphi 0, %s264
      %s268 = sphi 0, %s267
      %s284 = sphi 0, %s268
      %s290 = sphi 0, %s292
      %s293 = sphi 0, %s290
      %s294 = sphi 0, %s293
      %s310 = sphi 0, %s294
      %s316 = sphi 0, %s318
      %s319 = sphi 0, %s316
      %s320 = sphi 0, %s319
      %s336 = sphi 0, %s320
      %s342 = sphi 0, %s344
      %s345 = sphi 0, %s342
      %s346 = sphi 0, %s345
      %s362 = sphi 0, %s346
      %s366 = sphi 0, %s366
      %s368 = sphi 0, %s366
      %s369 = sphi 0, %s368
      %s383 = sphi 0, %s369
      %s387 = sphi 0, %s387
      %s389 = sphi 0, %s387
      %s390 = sphi 0, %s389
      %s404 = sphi 0, %s390
    $region4: #{forward.1} parent=1 // loop_header_branch
      %27 = sbr.rel (%p25) target = $region8
    $region5: #{forward.1} parent=1 // loop_body
      %s29 = ssub.s32 %s24, 1
      %s30 = ssub.s32 %s24, 2
      %s31 = sadd.s32 %s24, 1
      %s33 = sadd.s32 %s32, 1
      %p36 = scmp.eq.s32.totalorder %s24, 3
      %p37 = scmp.ne.s32.totalorder %s32, %s34
      %p38 = scmp.eq.s32.totalorder %s24, 0
      %p39 = por %p37, %p38
      %p40 = scmp.ne.s32.totalorder %s32, %s34
      %p41 = scmp.eq.s32.totalorder %s29, 3
      %p42 = por %p40, %p41
      %p43 = scmp.ne.s32.totalorder %s34, %s35
      %p44 = scmp.eq.s32.totalorder %s29, 0
      %p45 = por %p43, %p44
      %p46 = scmp.ne.s32.totalorder %s34, %s35
      %p47 = scmp.eq.s32.totalorder %s30, 3
      %p48 = por %p46, %p47
      %p50 = scmp.ne.s32.totalorder %s35, %s49
      %p51 = scmp.eq.s32.totalorder %s30, 0
      %p52 = por %p50, %p51
      %s54 = sadd.s32 %s53, 1
      %p57 = scmp.eq.s32.totalorder %s24, 3
      %p58 = scmp.ne.s32.totalorder %s53, %s55
      %p59 = scmp.eq.s32.totalorder %s24, 0
      %p60 = por %p58, %p59
      %p61 = scmp.ne.s32.totalorder %s53, %s55
      %p62 = scmp.eq.s32.totalorder %s29, 3
      %p63 = por %p61, %p62
      %p64 = scmp.ne.s32.totalorder %s55, %s56
      %p65 = scmp.eq.s32.totalorder %s29, 0
      %p66 = por %p64, %p65
      %p67 = scmp.ne.s32.totalorder %s55, %s56
      %p68 = scmp.eq.s32.totalorder %s30, 3
      %p69 = por %p67, %p68
      %p71 = scmp.ne.s32.totalorder %s56, %s70
      %p72 = scmp.eq.s32.totalorder %s30, 0
      %p73 = por %p71, %p72
      %s75 = sadd.s32 %s74, 1
      %p78 = scmp.eq.s32.totalorder %s24, 3
      %p79 = scmp.ne.s32.totalorder %s74, %s76
      %p80 = scmp.eq.s32.totalorder %s24, 0
      %p81 = por %p79, %p80
      %p82 = scmp.ne.s32.totalorder %s74, %s76
      %p83 = scmp.eq.s32.totalorder %s29, 3
      %p84 = por %p82, %p83
      %p85 = scmp.ne.s32.totalorder %s76, %s77
      %p86 = scmp.eq.s32.totalorder %s29, 0
      %p87 = por %p85, %p86
      %p88 = scmp.ne.s32.totalorder %s76, %s77
      %p89 = scmp.eq.s32.totalorder %s30, 3
      %p90 = por %p88, %p89
      %p92 = scmp.ne.s32.totalorder %s77, %s91
      %p93 = scmp.eq.s32.totalorder %s30, 0
      %p94 = por %p92, %p93
      %s96 = sadd.s32 %s95, 1
      %p99 = scmp.eq.s32.totalorder %s24, 3
      %p100 = scmp.ne.s32.totalorder %s95, %s97
      %p101 = scmp.eq.s32.totalorder %s24, 0
      %p102 = por %p100, %p101
      %p103 = scmp.ne.s32.totalorder %s95, %s97
      %p104 = scmp.eq.s32.totalorder %s29, 3
      %p105 = por %p103, %p104
      %p106 = scmp.ne.s32.totalorder %s97, %s98
      %p107 = scmp.eq.s32.totalorder %s29, 0
      %p108 = por %p106, %p107
      %p109 = scmp.ne.s32.totalorder %s97, %s98
      %p110 = scmp.eq.s32.totalorder %s30, 3
      %p111 = por %p109, %p110
      %p113 = scmp.ne.s32.totalorder %s98, %s112
      %p114 = scmp.eq.s32.totalorder %s30, 0
      %p115 = por %p113, %p114
      %s117 = sadd.s32 %s116, 1
      %p120 = scmp.eq.s32.totalorder %s24, 3
      %p121 = scmp.ne.s32.totalorder %s116, %s118
      %p122 = scmp.eq.s32.totalorder %s24, 0
      %p123 = por %p121, %p122
      %p124 = scmp.ne.s32.totalorder %s116, %s118
      %p125 = scmp.eq.s32.totalorder %s29, 3
      %p126 = por %p124, %p125
      %p127 = scmp.ne.s32.totalorder %s118, %s119
      %p128 = scmp.eq.s32.totalorder %s29, 0
      %p129 = por %p127, %p128
      %p130 = scmp.ne.s32.totalorder %s118, %s119
      %p131 = scmp.eq.s32.totalorder %s30, 3
      %p132 = por %p130, %p131
      %p134 = scmp.ne.s32.totalorder %s119, %s133
      %p135 = scmp.eq.s32.totalorder %s30, 0
      %p136 = por %p134, %p135
      %s138 = sadd.s32 %s137, 1
      %p141 = scmp.eq.s32.totalorder %s24, 3
      %p142 = scmp.ne.s32.totalorder %s137, %s139
      %p143 = scmp.eq.s32.totalorder %s24, 0
      %p144 = por %p142, %p143
      %p145 = scmp.ne.s32.totalorder %s137, %s139
      %p146 = scmp.eq.s32.totalorder %s29, 3
      %p147 = por %p145, %p146
      %p148 = scmp.ne.s32.totalorder %s139, %s140
      %p149 = scmp.eq.s32.totalorder %s29, 0
      %p150 = por %p148, %p149
      %p151 = scmp.ne.s32.totalorder %s139, %s140
      %p152 = scmp.eq.s32.totalorder %s30, 3
      %p153 = por %p151, %p152
      %p155 = scmp.ne.s32.totalorder %s140, %s154
      %p156 = scmp.eq.s32.totalorder %s30, 0
      %p157 = por %p155, %p156
      %s158 = ssub.s32 %s24, %s31
      %p159 = scmp.eq.s32.totalorder %s158, 0
      %s161 = sadd.s32 %s160, 1
      %s162 = scalar_select %p159, %s160, %s161
      %p165 = pneg %p159
      %p166 = scmp.eq.s32.totalorder %s24, 3
      %p167 = por %p165, %p166
      %p168 = scmp.ne.s32.totalorder %s160, %s163
      %p169 = scmp.eq.s32.totalorder %s24, 0
      %p170 = por %p168, %p169
      %p171 = scmp.ne.s32.totalorder %s160, %s163
      %p172 = scmp.eq.s32.totalorder %s29, 3
      %p173 = por %p171, %p172
      %p174 = scmp.ne.s32.totalorder %s163, %s164
      %p175 = scmp.eq.s32.totalorder %s29, 0
      %p176 = por %p174, %p175
      %p177 = scmp.ne.s32.totalorder %s163, %s164
      %p178 = scmp.eq.s32.totalorder %s30, 3
      %p179 = por %p177, %p178
      %p181 = scmp.ne.s32.totalorder %s164, %s180
      %p182 = scmp.eq.s32.totalorder %s30, 0
      %p183 = por %p181, %p182
      %s184 = ssub.s32 %s24, %s31
      %p185 = scmp.eq.s32.totalorder %s184, 0
      %s187 = sadd.s32 %s186, 1
      %s188 = scalar_select %p185, %s186, %s187
      %p191 = pneg %p185
      %p192 = scmp.eq.s32.totalorder %s24, 3
      %p193 = por %p191, %p192
      %p194 = scmp.ne.s32.totalorder %s186, %s189
      %p195 = scmp.eq.s32.totalorder %s24, 0
      %p196 = por %p194, %p195
      %p197 = scmp.ne.s32.totalorder %s186, %s189
      %p198 = scmp.eq.s32.totalorder %s29, 3
      %p199 = por %p197, %p198
      %p200 = scmp.ne.s32.totalorder %s189, %s190
      %p201 = scmp.eq.s32.totalorder %s29, 0
      %p202 = por %p200, %p201
      %p203 = scmp.ne.s32.totalorder %s189, %s190
      %p204 = scmp.eq.s32.totalorder %s30, 3
      %p205 = por %p203, %p204
      %p207 = scmp.ne.s32.totalorder %s190, %s206
      %p208 = scmp.eq.s32.totalorder %s30, 0
      %p209 = por %p207, %p208
      %s210 = ssub.s32 %s24, %s31
      %p211 = scmp.eq.s32.totalorder %s210, 0
      %s213 = sadd.s32 %s212, 1
      %s214 = scalar_select %p211, %s212, %s213
      %p217 = pneg %p211
      %p218 = scmp.eq.s32.totalorder %s24, 3
      %p219 = por %p217, %p218
      %p220 = scmp.ne.s32.totalorder %s212, %s215
      %p221 = scmp.eq.s32.totalorder %s24, 0
      %p222 = por %p220, %p221
      %p223 = scmp.ne.s32.totalorder %s212, %s215
      %p224 = scmp.eq.s32.totalorder %s29, 3
      %p225 = por %p223, %p224
      %p226 = scmp.ne.s32.totalorder %s215, %s216
      %p227 = scmp.eq.s32.totalorder %s29, 0
      %p228 = por %p226, %p227
      %p229 = scmp.ne.s32.totalorder %s215, %s216
      %p230 = scmp.eq.s32.totalorder %s30, 3
      %p231 = por %p229, %p230
      %p233 = scmp.ne.s32.totalorder %s216, %s232
      %p234 = scmp.eq.s32.totalorder %s30, 0
      %p235 = por %p233, %p234
      %s236 = ssub.s32 %s24, %s31
      %p237 = scmp.eq.s32.totalorder %s236, 0
      %s239 = sadd.s32 %s238, 1
      %s240 = scalar_select %p237, %s238, %s239
      %p243 = pneg %p237
      %p244 = scmp.eq.s32.totalorder %s24, 3
      %p245 = por %p243, %p244
      %p246 = scmp.ne.s32.totalorder %s238, %s241
      %p247 = scmp.eq.s32.totalorder %s24, 0
      %p248 = por %p246, %p247
      %p249 = scmp.ne.s32.totalorder %s238, %s241
      %p250 = scmp.eq.s32.totalorder %s29, 3
      %p251 = por %p249, %p250
      %p252 = scmp.ne.s32.totalorder %s241, %s242
      %p253 = scmp.eq.s32.totalorder %s29, 0
      %p254 = por %p252, %p253
      %p255 = scmp.ne.s32.totalorder %s241, %s242
      %p256 = scmp.eq.s32.totalorder %s30, 3
      %p257 = por %p255, %p256
      %p259 = scmp.ne.s32.totalorder %s242, %s258
      %p260 = scmp.eq.s32.totalorder %s30, 0
      %p261 = por %p259, %p260
      %s262 = ssub.s32 %s24, %s31
      %p263 = scmp.eq.s32.totalorder %s262, 0
      %s265 = sadd.s32 %s264, 1
      %s266 = scalar_select %p263, %s264, %s265
      %p269 = pneg %p263
      %p270 = scmp.eq.s32.totalorder %s24, 3
      %p271 = por %p269, %p270
      %p272 = scmp.ne.s32.totalorder %s264, %s267
      %p273 = scmp.eq.s32.totalorder %s24, 0
      %p274 = por %p272, %p273
      %p275 = scmp.ne.s32.totalorder %s264, %s267
      %p276 = scmp.eq.s32.totalorder %s29, 3
      %p277 = por %p275, %p276
      %p278 = scmp.ne.s32.totalorder %s267, %s268
      %p279 = scmp.eq.s32.totalorder %s29, 0
      %p280 = por %p278, %p279
      %p281 = scmp.ne.s32.totalorder %s267, %s268
      %p282 = scmp.eq.s32.totalorder %s30, 3
      %p283 = por %p281, %p282
      %p285 = scmp.ne.s32.totalorder %s268, %s284
      %p286 = scmp.eq.s32.totalorder %s30, 0
      %p287 = por %p285, %p286
      %s288 = ssub.s32 %s24, %s31
      %p289 = scmp.eq.s32.totalorder %s288, 0
      %s291 = sadd.s32 %s290, 1
      %s292 = scalar_select %p289, %s290, %s291
      %p295 = pneg %p289
      %p296 = scmp.eq.s32.totalorder %s24, 3
      %p297 = por %p295, %p296
      %p298 = scmp.ne.s32.totalorder %s290, %s293
      %p299 = scmp.eq.s32.totalorder %s24, 0
      %p300 = por %p298, %p299
      %p301 = scmp.ne.s32.totalorder %s290, %s293
      %p302 = scmp.eq.s32.totalorder %s29, 3
      %p303 = por %p301, %p302
      %p304 = scmp.ne.s32.totalorder %s293, %s294
      %p305 = scmp.eq.s32.totalorder %s29, 0
      %p306 = por %p304, %p305
      %p307 = scmp.ne.s32.totalorder %s293, %s294
      %p308 = scmp.eq.s32.totalorder %s30, 3
      %p309 = por %p307, %p308
      %p311 = scmp.ne.s32.totalorder %s294, %s310
      %p312 = scmp.eq.s32.totalorder %s30, 0
      %p313 = por %p311, %p312
      %s314 = ssub.s32 %s24, %s31
      %p315 = scmp.eq.s32.totalorder %s314, 0
      %s317 = sadd.s32 %s316, 1
      %s318 = scalar_select %p315, %s316, %s317
      %p321 = pneg %p315
      %p322 = scmp.eq.s32.totalorder %s24, 3
      %p323 = por %p321, %p322
      %p324 = scmp.ne.s32.totalorder %s316, %s319
      %p325 = scmp.eq.s32.totalorder %s24, 0
      %p326 = por %p324, %p325
      %p327 = scmp.ne.s32.totalorder %s316, %s319
      %p328 = scmp.eq.s32.totalorder %s29, 3
      %p329 = por %p327, %p328
      %p330 = scmp.ne.s32.totalorder %s319, %s320
      %p331 = scmp.eq.s32.totalorder %s29, 0
      %p332 = por %p330, %p331
      %p333 = scmp.ne.s32.totalorder %s319, %s320
      %p334 = scmp.eq.s32.totalorder %s30, 3
      %p335 = por %p333, %p334
      %p337 = scmp.ne.s32.totalorder %s320, %s336
      %p338 = scmp.eq.s32.totalorder %s30, 0
      %p339 = por %p337, %p338
      %s340 = ssub.s32 %s24, %s31
      %p341 = scmp.eq.s32.totalorder %s340, 0
      %s343 = sadd.s32 %s342, 1
      %s344 = scalar_select %p341, %s342, %s343
      %p347 = pneg %p341
      %p348 = scmp.eq.s32.totalorder %s24, 3
      %p349 = por %p347, %p348
      %p350 = scmp.ne.s32.totalorder %s342, %s345
      %p351 = scmp.eq.s32.totalorder %s24, 0
      %p352 = por %p350, %p351
      %p353 = scmp.ne.s32.totalorder %s342, %s345
      %p354 = scmp.eq.s32.totalorder %s29, 3
      %p355 = por %p353, %p354
      %p356 = scmp.ne.s32.totalorder %s345, %s346
      %p357 = scmp.eq.s32.totalorder %s29, 0
      %p358 = por %p356, %p357
      %p359 = scmp.ne.s32.totalorder %s345, %s346
      %p360 = scmp.eq.s32.totalorder %s30, 3
      %p361 = por %p359, %p360
      %p363 = scmp.ne.s32.totalorder %s346, %s362
      %p364 = scmp.eq.s32.totalorder %s30, 0
      %p365 = por %p363, %p364
      %s367 = sadd.s32 %s366, 1
      %p370 = scmp.eq.s32.totalorder %s24, 3
      %p371 = scmp.ne.s32.totalorder %s366, %s368
      %p372 = scmp.eq.s32.totalorder %s24, 0
      %p373 = por %p371, %p372
      %p374 = scmp.ne.s32.totalorder %s366, %s368
      %p375 = scmp.eq.s32.totalorder %s29, 3
      %p376 = por %p374, %p375
      %p377 = scmp.ne.s32.totalorder %s368, %s369
      %p378 = scmp.eq.s32.totalorder %s29, 0
      %p379 = por %p377, %p378
      %p380 = scmp.ne.s32.totalorder %s368, %s369
      %p381 = scmp.eq.s32.totalorder %s30, 3
      %p382 = por %p380, %p381
      %p384 = scmp.ne.s32.totalorder %s369, %s383
      %p385 = scmp.eq.s32.totalorder %s30, 0
      %p386 = por %p384, %p385
      %s388 = sadd.s32 %s387, 1
      %p391 = scmp.eq.s32.totalorder %s24, 3
      %p392 = scmp.ne.s32.totalorder %s387, %s389
      %p393 = scmp.eq.s32.totalorder %s24, 0
      %p394 = por %p392, %p393
      %p395 = scmp.ne.s32.totalorder %s387, %s389
      %p396 = scmp.eq.s32.totalorder %s29, 3
      %p397 = por %p395, %p396
      %p398 = scmp.ne.s32.totalorder %s389, %s390
      %p399 = scmp.eq.s32.totalorder %s29, 0
      %p400 = por %p398, %p399
      %p401 = scmp.ne.s32.totalorder %s389, %s390
      %p402 = scmp.eq.s32.totalorder %s30, 3
      %p403 = por %p401, %p402
      %p405 = scmp.ne.s32.totalorder %s390, %s404
      %p406 = scmp.eq.s32.totalorder %s30, 0
      %p407 = por %p405, %p406
      %p408 = scmp.le.s32.totalorder 1, %s24
      %p409 = scmp.lt.s32.totalorder %s24, 5
      %p410 = pnand %p408, %p409
      %p411 = pneg %p410
      // Predicated region
      $region9: #{forward.1} parent=5 // pred_check
        _
      $region10: #{forward.1} parent=5 // pred_check_branch
        %413 = sbr.rel (%p410) target = $region12
      $region11: #{forward.1} parent=5 // pred_region
        %s414 = ssub.s32 %s24, 1
        // Predicated region
        $region13: #{forward.1} parent=11 // pred_check
          %p415 = pneg %p45
        $region14: #{forward.1} parent=11 // pred_check_branch
          %417 = sbr.rel (%p415) target = $region16
        $region15: #{forward.1} parent=11 // pred_region
          _
        $region16: #{forward.1} parent=11 // pred_fallthru
          _
        // Predicated region
        $region17: #{forward.1} parent=11 // pred_check
          %p418 = pneg %p66
        $region18: #{forward.1} parent=11 // pred_check_branch
          %420 = sbr.rel (%p418) target = $region20
        $region19: #{forward.1} parent=11 // pred_region
          %422 = vsyncadd [#allocation4], 0
          %s423 = sshll.u32 %s1, 4
          %s424 = int_to_ptr.hbm [resolvable:$true] %s423
          %s425 = sshll.u32 [#allocation3], 4
          %s426 = int_to_ptr.vmem [resolvable:$true] %s425
          %431 = dma.hbm_to_vmem [thread:$0]  %s424, 8192, %s426, [#allocation4], 256, 256, 16
        $region20: #{forward.1} parent=11 // pred_fallthru
          _
        // Predicated region
        $region21: #{forward.1} parent=11 // pred_check
          %p432 = pneg %p87
        $region22: #{forward.1} parent=11 // pred_check_branch
          %434 = sbr.rel (%p432) target = $region24
        $region23: #{forward.1} parent=11 // pred_region
          _
        $region24: #{forward.1} parent=11 // pred_fallthru
          _
        // Predicated region
        $region25: #{forward.1} parent=11 // pred_check
          %p435 = pneg %p108
        $region26: #{forward.1} parent=11 // pred_check_branch
          %437 = sbr.rel (%p435) target = $region28
        $region27: #{forward.1} parent=11 // pred_region
          _
        $region28: #{forward.1} parent=11 // pred_fallthru
          _
        // Predicated region
        $region29: #{forward.1} parent=11 // pred_check
          %p438 = pneg %p129
        $region30: #{forward.1} parent=11 // pred_check_branch
          %440 = sbr.rel (%p438) target = $region32
        $region31: #{forward.1} parent=11 // pred_region
          %442 = vsyncadd [#allocation7], 0
          %s443 = sshll.u32 %s4, 4
          %s444 = int_to_ptr.hbm [resolvable:$true] %s443
          %s445 = sshll.u32 [#allocation6], 4
          %s446 = int_to_ptr.vmem [resolvable:$true] %s445
          %451 = dma.hbm_to_vmem [thread:$0]  %s444, 1024, %s446, [#allocation7], 128, 128, 8
        $region32: #{forward.1} parent=11 // pred_fallthru
          _
        // Predicated region
        $region33: #{forward.1} parent=11 // pred_check
          %p452 = pneg %p150
        $region34: #{forward.1} parent=11 // pred_check_branch
          %454 = sbr.rel (%p452) target = $region36
        $region35: #{forward.1} parent=11 // pred_region
          _
        $region36: #{forward.1} parent=11 // pred_fallthru
          _
        // Predicated region
        $region37: #{forward.1} parent=11 // pred_check
          %p455 = pneg %p379
        $region38: #{forward.1} parent=11 // pred_check_branch
          %457 = sbr.rel (%p455) target = $region40
        $region39: #{forward.1} parent=11 // pred_region
          _
        $region40: #{forward.1} parent=11 // pred_fallthru
          _
      $region12: #{forward.1} parent=5 // pred_fallthru
        _
      %p458 = scmp.lt.s32.totalorder %s24, 4
      // Predicated region
      $region41: #{forward.1} parent=5 // pred_check
        %p459 = pneg %p458
      $region42: #{forward.1} parent=5 // pred_check_branch
        %461 = sbr.rel (%p459) target = $region44
      $region43: #{forward.1} parent=5 // pred_region
        // Predicated region
        $region45: #{forward.1} parent=43 // pred_check
          %p462 = pneg %p170
        $region46: #{forward.1} parent=43 // pred_check_branch
          %464 = sbr.rel (%p462) target = $region48
        $region47: #{forward.1} parent=43 // pred_region
          %s465 = sand.u32 %s24, 1
          %s466 = scalar_lea.sflag [#allocation4], %s465
          %s467 = sand.u32 %s160, 1
          %s468 = smul.addr %s467, 64
          %s469 = scalar_lea.vmem [#allocation8], %s468
          %471 = vsyncadd %s466, 0
          %s472 = smul.addr %s24, 16
          %s473 = smul.addr %s472, 4
          %s474 = scalar_lea.hbm %s6, %s473
          %s475 = sshll.u32 %s474, 4
          %s476 = int_to_ptr.hbm [resolvable:$true] %s475
          %s477 = sshll.u32 %s469, 4
          %s478 = int_to_ptr.vmem [resolvable:$true] %s477
          %483 = dma.hbm_to_vmem [thread:$0]  %s476, 1024, %s478, %s466, 64, 64, 4
        $region48: #{forward.1} parent=43 // pred_fallthru
          _
        // Predicated region
        $region49: #{forward.1} parent=43 // pred_check
          %p484 = pneg %p196
        $region50: #{forward.1} parent=43 // pred_check_branch
          %486 = sbr.rel (%p484) target = $region52
        $region51: #{forward.1} parent=43 // pred_region
          %s487 = sand.u32 %s24, 1
          %s488 = scalar_lea.sflag [#allocation4], %s487
          %s489 = sand.u32 %s186, 1
          %s490 = smul.addr %s489, 64
          %s491 = scalar_lea.vmem [#allocation9], %s490
          %493 = vsyncadd %s488, 0
          %s494 = smul.addr %s24, 16
          %s495 = smul.addr %s494, 4
          %s496 = scalar_lea.hbm %s7, %s495
          %s497 = sshll.u32 %s496, 4
          %s498 = int_to_ptr.hbm [resolvable:$true] %s497
          %s499 = sshll.u32 %s491, 4
          %s500 = int_to_ptr.vmem [resolvable:$true] %s499
          %505 = dma.hbm_to_vmem [thread:$0]  %s498, 1024, %s500, %s488, 64, 64, 4
        $region52: #{forward.1} parent=43 // pred_fallthru
          _
        // Predicated region
        $region53: #{forward.1} parent=43 // pred_check
          %p506 = pneg %p222
        $region54: #{forward.1} parent=43 // pred_check_branch
          %508 = sbr.rel (%p506) target = $region56
        $region55: #{forward.1} parent=43 // pred_region
          %s509 = sand.u32 %s24, 1
          %s510 = scalar_lea.sflag [#allocation4], %s509
          %s511 = sand.u32 %s212, 1
          %s512 = smul.addr %s511, 64
          %s513 = scalar_lea.vmem [#allocation10], %s512
          %515 = vsyncadd %s510, 0
          %s516 = smul.addr %s24, 16
          %s517 = smul.addr %s516, 4
          %s518 = scalar_lea.hbm %s8, %s517
          %s519 = sshll.u32 %s518, 4
          %s520 = int_to_ptr.hbm [resolvable:$true] %s519
          %s521 = sshll.u32 %s513, 4
          %s522 = int_to_ptr.vmem [resolvable:$true] %s521
          %527 = dma.hbm_to_vmem [thread:$0]  %s520, 1024, %s522, %s510, 64, 64, 4
        $region56: #{forward.1} parent=43 // pred_fallthru
          _
        // Predicated region
        $region57: #{forward.1} parent=43 // pred_check
          %p528 = pneg %p248
        $region58: #{forward.1} parent=43 // pred_check_branch
          %530 = sbr.rel (%p528) target = $region60
        $region59: #{forward.1} parent=43 // pred_region
          %s531 = sand.u32 %s24, 1
          %s532 = scalar_lea.sflag [#allocation4], %s531
          %s533 = sand.u32 %s238, 1
          %s534 = smul.addr %s533, 64
          %s535 = scalar_lea.vmem [#allocation11], %s534
          %537 = vsyncadd %s532, 0
          %s538 = smul.addr %s24, 16
          %s539 = smul.addr %s538, 4
          %s540 = scalar_lea.hbm %s9, %s539
          %s541 = sshll.u32 %s540, 4
          %s542 = int_to_ptr.hbm [resolvable:$true] %s541
          %s543 = sshll.u32 %s535, 4
          %s544 = int_to_ptr.vmem [resolvable:$true] %s543
          %549 = dma.hbm_to_vmem [thread:$0]  %s542, 1024, %s544, %s532, 64, 64, 4
        $region60: #{forward.1} parent=43 // pred_fallthru
          _
        // Predicated region
        $region61: #{forward.1} parent=43 // pred_check
          %p550 = pneg %p274
        $region62: #{forward.1} parent=43 // pred_check_branch
          %552 = sbr.rel (%p550) target = $region64
        $region63: #{forward.1} parent=43 // pred_region
          %s553 = sand.u32 %s24, 1
          %s554 = scalar_lea.sflag [#allocation4], %s553
          %s555 = sand.u32 %s264, 1
          %s556 = smul.addr %s555, 128
          %s557 = scalar_lea.vmem [#allocation12], %s556
          %559 = vsyncadd %s554, 0
          %s560 = smul.addr %s24, 32
          %s561 = smul.addr %s560, 4
          %s562 = scalar_lea.hbm %s10, %s561
          %s563 = sshll.u32 %s562, 4
          %s564 = int_to_ptr.hbm [resolvable:$true] %s563
          %s565 = sshll.u32 %s557, 4
          %s566 = int_to_ptr.vmem [resolvable:$true] %s565
          %571 = dma.hbm_to_vmem [thread:$0]  %s564, 2048, %s566, %s554, 128, 128, 8
        $region64: #{forward.1} parent=43 // pred_fallthru
          _
        // Predicated region
        $region65: #{forward.1} parent=43 // pred_check
          %p572 = pneg %p300
        $region66: #{forward.1} parent=43 // pred_check_branch
          %574 = sbr.rel (%p572) target = $region68
        $region67: #{forward.1} parent=43 // pred_region
          %p575 = scmp.lt.s32.totalorder %s24, 3
          %s576 = scalar_select %p575, %s24, 3
          %s577 = smul.addr %s576, 2
          %s578 = scalar_lea.vmem %s11, %s577
        $region68: #{forward.1} parent=43 // pred_fallthru
          _
        // Predicated region
        $region69: #{forward.1} parent=43 // pred_check
          %p579 = pneg %p326
        $region70: #{forward.1} parent=43 // pred_check_branch
          %581 = sbr.rel (%p579) target = $region72
        $region71: #{forward.1} parent=43 // pred_region
          %s582 = sand.u32 %s24, 1
          %s583 = scalar_lea.sflag [#allocation4], %s582
          %s584 = sand.u32 %s316, 1
          %s585 = smul.addr %s584, 128
          %s586 = scalar_lea.vmem [#allocation13], %s585
          %588 = vsyncadd %s583, 0
          %s589 = smul.addr %s24, 32
          %s590 = smul.addr %s589, 4
          %s591 = scalar_lea.hbm %s12, %s590
          %s592 = sshll.u32 %s591, 4
          %s593 = int_to_ptr.hbm [resolvable:$true] %s592
          %s594 = sshll.u32 %s586, 4
          %s595 = int_to_ptr.vmem [resolvable:$true] %s594
          %600 = dma.hbm_to_vmem [thread:$0]  %s593, 2048, %s595, %s583, 64, 64, 4
        $region72: #{forward.1} parent=43 // pred_fallthru
          _
        // Predicated region
        $region73: #{forward.1} parent=43 // pred_check
          %p601 = pneg %p352
        $region74: #{forward.1} parent=43 // pred_check_branch
          %603 = sbr.rel (%p601) target = $region76
        $region75: #{forward.1} parent=43 // pred_region
          %p604 = scmp.lt.s32.totalorder %s24, 3
          %s605 = scalar_select %p604, %s24, 3
          %s606 = smul.addr %s605, 2
          %s607 = smul.addr %s606, 8
          %s608 = scalar_lea.vmem %s13, %s607
        $region76: #{forward.1} parent=43 // pred_fallthru
          _
      $region44: #{forward.1} parent=5 // pred_fallthru
        _
      %p609 = scmp.le.s32.totalorder 1, %s24
      %p610 = scmp.lt.s32.totalorder %s24, 5
      %p611 = pnand %p609, %p610
      %p612 = pneg %p611
      // Predicated region
      $region77: #{forward.1} parent=5 // pred_check
        _
      $region78: #{forward.1} parent=5 // pred_check_branch
        %614 = sbr.rel (%p611) target = $region80
      $region79: #{forward.1} parent=5 // pred_region
        %s615 = ssub.s32 %s24, 1
        // Predicated region
        $region81: #{forward.1} parent=79 // pred_check
          %p616 = pneg %p66
        $region82: #{forward.1} parent=79 // pred_check_branch
          %618 = sbr.rel (%p616) target = $region84
        $region83: #{forward.1} parent=79 // pred_region
          %620 = dma.done [#allocation4], 8192
        $region84: #{forward.1} parent=79 // pred_fallthru
          _
        // Predicated region
        $region85: #{forward.1} parent=79 // pred_check
          %p621 = pneg %p129
        $region86: #{forward.1} parent=79 // pred_check_branch
          %623 = sbr.rel (%p621) target = $region88
        $region87: #{forward.1} parent=79 // pred_region
          %625 = dma.done [#allocation7], 1024
        $region88: #{forward.1} parent=79 // pred_fallthru
          _
        %s626 = sand.u32 %s29, 1
        %s627 = scalar_lea.sflag [#allocation4], %s626
        %s628 = sand.u32 %s163, 1
        %s629 = smul.addr %s628, 64
        %s630 = scalar_lea.vmem [#allocation8], %s629
        // Predicated region
        $region89: #{forward.1} parent=79 // pred_check
          %p631 = pneg %p176
        $region90: #{forward.1} parent=79 // pred_check_branch
          %633 = sbr.rel (%p631) target = $region92
        $region91: #{forward.1} parent=79 // pred_region
          %635 = dma.done %s627, 1024
        $region92: #{forward.1} parent=79 // pred_fallthru
          _
        %s636 = sand.u32 %s29, 1
        %s637 = scalar_lea.sflag [#allocation4], %s636
        %s638 = sand.u32 %s189, 1
        %s639 = smul.addr %s638, 64
        %s640 = scalar_lea.vmem [#allocation9], %s639
        // Predicated region
        $region93: #{forward.1} parent=79 // pred_check
          %p641 = pneg %p202
        $region94: #{forward.1} parent=79 // pred_check_branch
          %643 = sbr.rel (%p641) target = $region96
        $region95: #{forward.1} parent=79 // pred_region
          %645 = dma.done %s637, 1024
        $region96: #{forward.1} parent=79 // pred_fallthru
          _
        %s646 = sand.u32 %s29, 1
        %s647 = scalar_lea.sflag [#allocation4], %s646
        %s648 = sand.u32 %s215, 1
        %s649 = smul.addr %s648, 64
        %s650 = scalar_lea.vmem [#allocation10], %s649
        // Predicated region
        $region97: #{forward.1} parent=79 // pred_check
          %p651 = pneg %p228
        $region98: #{forward.1} parent=79 // pred_check_branch
          %653 = sbr.rel (%p651) target = $region100
        $region99: #{forward.1} parent=79 // pred_region
          %655 = dma.done %s647, 1024
        $region100: #{forward.1} parent=79 // pred_fallthru
          _
        %s656 = sand.u32 %s29, 1
        %s657 = scalar_lea.sflag [#allocation4], %s656
        %s658 = sand.u32 %s241, 1
        %s659 = smul.addr %s658, 64
        %s660 = scalar_lea.vmem [#allocation11], %s659
        // Predicated region
        $region101: #{forward.1} parent=79 // pred_check
          %p661 = pneg %p254
        $region102: #{forward.1} parent=79 // pred_check_branch
          %663 = sbr.rel (%p661) target = $region104
        $region103: #{forward.1} parent=79 // pred_region
          %665 = dma.done %s657, 1024
        $region104: #{forward.1} parent=79 // pred_fallthru
          _
        %s666 = sand.u32 %s29, 1
        %s667 = scalar_lea.sflag [#allocation4], %s666
        %s668 = sand.u32 %s267, 1
        %s669 = smul.addr %s668, 128
        %s670 = scalar_lea.vmem [#allocation12], %s669
        // Predicated region
        $region105: #{forward.1} parent=79 // pred_check
          %p671 = pneg %p280
        $region106: #{forward.1} parent=79 // pred_check_branch
          %673 = sbr.rel (%p671) target = $region108
        $region107: #{forward.1} parent=79 // pred_region
          %675 = dma.done %s667, 2048
        $region108: #{forward.1} parent=79 // pred_fallthru
          _
        %s676 = sand.u32 %s29, 1
        %s677 = scalar_lea.sflag [#allocation4], %s676
        %s678 = sand.u32 %s319, 1
        %s679 = smul.addr %s678, 128
        %s680 = scalar_lea.vmem [#allocation13], %s679
        // Predicated region
        $region109: #{forward.1} parent=79 // pred_check
          %p681 = pneg %p332
        $region110: #{forward.1} parent=79 // pred_check_branch
          %683 = sbr.rel (%p681) target = $region112
        $region111: #{forward.1} parent=79 // pred_region
          %685 = dma.done %s677, 2048
        $region112: #{forward.1} parent=79 // pred_fallthru
          _
        %p686 = pneg %p45
        %p687 = pneg %p42
        %p688 = pneg %p66
        %p689 = pneg %p63
        %p690 = pneg %p87
        %p691 = pneg %p84
        %p692 = pneg %p108
        %p693 = pneg %p105
        %p694 = pneg %p129
        %p695 = pneg %p126
        %p696 = pneg %p150
        %p697 = pneg %p147
        %s698 = sand.u32 %s29, 1
        %s699 = scalar_lea.sflag [#allocation4], %s698
        %s700 = sand.u32 %s163, 1
        %s701 = smul.addr %s700, 64
        %s702 = scalar_lea.vmem [#allocation8], %s701
        %p703 = pneg %p176
        %p704 = pneg %p173
        %s705 = sand.u32 %s29, 1
        %s706 = scalar_lea.sflag [#allocation4], %s705
        %s707 = sand.u32 %s189, 1
        %s708 = smul.addr %s707, 64
        %s709 = scalar_lea.vmem [#allocation9], %s708
        %p710 = pneg %p202
        %p711 = pneg %p199
        %s712 = sand.u32 %s29, 1
        %s713 = scalar_lea.sflag [#allocation4], %s712
        %s714 = sand.u32 %s215, 1
        %s715 = smul.addr %s714, 64
        %s716 = scalar_lea.vmem [#allocation10], %s715
        %p717 = pneg %p228
        %p718 = pneg %p225
        %s719 = sand.u32 %s29, 1
        %s720 = scalar_lea.sflag [#allocation4], %s719
        %s721 = sand.u32 %s241, 1
        %s722 = smul.addr %s721, 64
        %s723 = scalar_lea.vmem [#allocation11], %s722
        %p724 = pneg %p254
        %p725 = pneg %p251
        %s726 = sand.u32 %s29, 1
        %s727 = scalar_lea.sflag [#allocation4], %s726
        %s728 = sand.u32 %s267, 1
        %s729 = smul.addr %s728, 128
        %s730 = scalar_lea.vmem [#allocation12], %s729
        %p731 = pneg %p280
        %p732 = pneg %p277
        %p733 = scmp.lt.s32.totalorder %s29, 3
        %s734 = scalar_select %p733, %s29, 3
        %s735 = smul.addr %s734, 2
        %s736 = scalar_lea.vmem %s11, %s735
        %p737 = pneg %p306
        %p738 = pneg %p303
        %s739 = sand.u32 %s29, 1
        %s740 = scalar_lea.sflag [#allocation4], %s739
        %s741 = sand.u32 %s319, 1
        %s742 = smul.addr %s741, 128
        %s743 = scalar_lea.vmem [#allocation13], %s742
        %p744 = pneg %p332
        %p745 = pneg %p329
        %p746 = scmp.lt.s32.totalorder %s29, 3
        %s747 = scalar_select %p746, %s29, 3
        %s748 = smul.addr %s747, 2
        %s749 = smul.addr %s748, 8
        %s750 = scalar_lea.vmem %s13, %s749
        %p751 = pneg %p358
        %p752 = pneg %p355
        %p753 = pneg %p379
        %p754 = pneg %p376
        %p755 = pneg %p400
        %p756 = pneg %p397
        %p757 = scmp.lt.s32.totalorder %s29, 3
        %s758 = scalar_select %p757, %s29, 3
        %s759 = smul.addr %s758, 2
        %s760 = scalar_lea.vmem %s11, %s759
        %p761 = scmp.lt.s32.totalorder %s29, 3
        %s762 = scalar_select %p761, %s29, 3
        %s763 = smul.addr %s762, 2
        %s764 = smul.addr %s763, 8
        %s765 = scalar_lea.vmem %s13, %s764
        %p766 = scmp.eq.s32.totalorder %s29, 0
        // Predicated region
        $region113: #{forward.1} parent=79 // pred_check
          %p767 = pneg %p766
        $region114: #{forward.1} parent=79 // pred_check_branch
          %769 = sbr.rel (%p767) target = $region116
        $region115: #{forward.1} parent=79 // pred_region
          %v770 = vld [vmem:[#allocation3] sm:$0xff]
          %v771 = vld [vmem:[#allocation3 + $0x8] sm:$0xff]
          %v772 = vld [vmem:[#allocation3 + $0x10] sm:$0xff]
          %v773 = vld [vmem:[#allocation3 + $0x18] sm:$0xff]
          %v774 = vld [vmem:[#allocation3 + $0x20] sm:$0xff]
          %v775 = vld [vmem:[#allocation3 + $0x28] sm:$0xff]
          %v776 = vld [vmem:[#allocation3 + $0x30] sm:$0xff]
          %v777 = vld [vmem:[#allocation3 + $0x38] sm:$0xff]
          %v778 = vld [vmem:[#allocation3 + $0x40] sm:$0xff]
          %v779 = vld [vmem:[#allocation3 + $0x48] sm:$0xff]
          %v780 = vld [vmem:[#allocation3 + $0x50] sm:$0xff]
          %v781 = vld [vmem:[#allocation3 + $0x58] sm:$0xff]
          %v782 = vld [vmem:[#allocation3 + $0x60] sm:$0xff]
          %v783 = vld [vmem:[#allocation3 + $0x68] sm:$0xff]
          %v784 = vld [vmem:[#allocation3 + $0x70] sm:$0xff]
          %v785 = vld [vmem:[#allocation3 + $0x78] sm:$0xff]
          %v786 = vld [vmem:[#allocation3 + $0x80] sm:$0xff]
          %v787 = vld [vmem:[#allocation3 + $0x88] sm:$0xff]
          %v788 = vld [vmem:[#allocation3 + $0x90] sm:$0xff]
          %v789 = vld [vmem:[#allocation3 + $0x98] sm:$0xff]
          %v790 = vld [vmem:[#allocation3 + $0xa0] sm:$0xff]
          %v791 = vld [vmem:[#allocation3 + $0xa8] sm:$0xff]
          %v792 = vld [vmem:[#allocation3 + $0xb0] sm:$0xff]
          %v793 = vld [vmem:[#allocation3 + $0xb8] sm:$0xff]
          %v794 = vld [vmem:[#allocation3 + $0xc0] sm:$0xff]
          %v795 = vld [vmem:[#allocation3 + $0xc8] sm:$0xff]
          %v796 = vld [vmem:[#allocation3 + $0xd0] sm:$0xff]
          %v797 = vld [vmem:[#allocation3 + $0xd8] sm:$0xff]
          %v798 = vld [vmem:[#allocation3 + $0xe0] sm:$0xff]
          %v799 = vld [vmem:[#allocation3 + $0xe8] sm:$0xff]
          %v800 = vld [vmem:[#allocation3 + $0xf0] sm:$0xff]
          %v801 = vld [vmem:[#allocation3 + $0xf8] sm:$0xff]
          %v802 = vld [vmem:[#allocation3 + $0x100] sm:$0xff]
          %v803 = vld [vmem:[#allocation3 + $0x108] sm:$0xff]
          %v804 = vld [vmem:[#allocation3 + $0x110] sm:$0xff]
          %v805 = vld [vmem:[#allocation3 + $0x118] sm:$0xff]
          %v806 = vld [vmem:[#allocation3 + $0x120] sm:$0xff]
          %v807 = vld [vmem:[#allocation3 + $0x128] sm:$0xff]
          %v808 = vld [vmem:[#allocation3 + $0x130] sm:$0xff]
          %v809 = vld [vmem:[#allocation3 + $0x138] sm:$0xff]
          %v810 = vld [vmem:[#allocation3 + $0x140] sm:$0xff]
          %v811 = vld [vmem:[#allocation3 + $0x148] sm:$0xff]
          %v812 = vld [vmem:[#allocation3 + $0x150] sm:$0xff]
          %v813 = vld [vmem:[#allocation3 + $0x158] sm:$0xff]
          %v814 = vld [vmem:[#allocation3 + $0x160] sm:$0xff]
          %v815 = vld [vmem:[#allocation3 + $0x168] sm:$0xff]
          %v816 = vld [vmem:[#allocation3 + $0x170] sm:$0xff]
          %v817 = vld [vmem:[#allocation3 + $0x178] sm:$0xff]
          %v818 = vld [vmem:[#allocation3 + $0x180] sm:$0xff]
          %v819 = vld [vmem:[#allocation3 + $0x188] sm:$0xff]
          %v820 = vld [vmem:[#allocation3 + $0x190] sm:$0xff]
          %v821 = vld [vmem:[#allocation3 + $0x198] sm:$0xff]
          %v822 = vld [vmem:[#allocation3 + $0x1a0] sm:$0xff]
          %v823 = vld [vmem:[#allocation3 + $0x1a8] sm:$0xff]
          %v824 = vld [vmem:[#allocation3 + $0x1b0] sm:$0xff]
          %v825 = vld [vmem:[#allocation3 + $0x1b8] sm:$0xff]
          %v826 = vld [vmem:[#allocation3 + $0x1c0] sm:$0xff]
          %v827 = vld [vmem:[#allocation3 + $0x1c8] sm:$0xff]
          %v828 = vld [vmem:[#allocation3 + $0x1d0] sm:$0xff]
          %v829 = vld [vmem:[#allocation3 + $0x1d8] sm:$0xff]
          %v830 = vld [vmem:[#allocation3 + $0x1e0] sm:$0xff]
          %v831 = vld [vmem:[#allocation3 + $0x1e8] sm:$0xff]
          %v832 = vld [vmem:[#allocation3 + $0x1f0] sm:$0xff]
          %v833 = vld [vmem:[#allocation3 + $0x1f8] sm:$0xff]
          %v834 = vld [vmem:[%s2] sm:$0xff]
          %v835 = vld [vmem:[%s0] sm:$0xff]
          %v836 = vld [vmem:[%s0 + $0x8] sm:$0xff]
          %v837 = vld [vmem:[%s0 + $0x10] sm:$0xff]
          %v838 = vld [vmem:[%s0 + $0x18] sm:$0xff]
          %v839 = vld [vmem:[%s0 + $0x20] sm:$0xff]
          %v840 = vld [vmem:[%s0 + $0x28] sm:$0xff]
          %v841 = vld [vmem:[%s0 + $0x30] sm:$0xff]
          %v842 = vld [vmem:[%s0 + $0x38] sm:$0xff]
          %v843 = vld [vmem:[%s0 + $0x40] sm:$0xff]
          %v844 = vld [vmem:[%s0 + $0x48] sm:$0xff]
          %v845 = vld [vmem:[%s0 + $0x50] sm:$0xff]
          %v846 = vld [vmem:[%s0 + $0x58] sm:$0xff]
          %v847 = vld [vmem:[%s0 + $0x60] sm:$0xff]
          %v848 = vld [vmem:[%s0 + $0x68] sm:$0xff]
          %v849 = vld [vmem:[%s0 + $0x70] sm:$0xff]
          %v850 = vld [vmem:[%s0 + $0x78] sm:$0xff]
          %v851 = vld [vmem:[%s0 + $0x80] sm:$0xff]
          %v852 = vld [vmem:[%s0 + $0x88] sm:$0xff]
          %v853 = vld [vmem:[%s0 + $0x90] sm:$0xff]
          %v854 = vld [vmem:[%s0 + $0x98] sm:$0xff]
          %v855 = vld [vmem:[%s0 + $0xa0] sm:$0xff]
          %v856 = vld [vmem:[%s0 + $0xa8] sm:$0xff]
          %v857 = vld [vmem:[%s0 + $0xb0] sm:$0xff]
          %v858 = vld [vmem:[%s0 + $0xb8] sm:$0xff]
          %v859 = vld [vmem:[%s0 + $0xc0] sm:$0xff]
          %v860 = vld [vmem:[%s0 + $0xc8] sm:$0xff]
          %v861 = vld [vmem:[%s0 + $0xd0] sm:$0xff]
          %v862 = vld [vmem:[%s0 + $0xd8] sm:$0xff]
          %v863 = vld [vmem:[%s0 + $0xe0] sm:$0xff]
          %v864 = vld [vmem:[%s0 + $0xe8] sm:$0xff]
          %v865 = vld [vmem:[%s0 + $0xf0] sm:$0xff]
          %v866 = vld [vmem:[%s0 + $0xf8] sm:$0xff]
          %868 = vset.pattern.permute.xlu0 0
          %869 = vperm.xlu0 %868, %v835
          %v870 = vpop.permute.xlu0 %869
          %873 = vset.pattern.permute.xlu0 0
          %874 = vperm.xlu0 %873, %v836
          %v875 = vpop.permute.xlu0 %874
          %878 = vset.pattern.permute.xlu0 0
          %879 = vperm.xlu0 %878, %v837
          %v880 = vpop.permute.xlu0 %879
          %883 = vset.pattern.permute.xlu0 0
          %884 = vperm.xlu0 %883, %v838
          %v885 = vpop.permute.xlu0 %884
          %888 = vset.pattern.permute.xlu0 0
          %889 = vperm.xlu0 %888, %v839
          %v890 = vpop.permute.xlu0 %889
          %893 = vset.pattern.permute.xlu0 0
          %894 = vperm.xlu0 %893, %v840
          %v895 = vpop.permute.xlu0 %894
          %898 = vset.pattern.permute.xlu0 0
          %899 = vperm.xlu0 %898, %v841
          %v900 = vpop.permute.xlu0 %899
          %903 = vset.pattern.permute.xlu0 0
          %904 = vperm.xlu0 %903, %v842
          %v905 = vpop.permute.xlu0 %904
          %908 = vset.pattern.permute.xlu0 0
          %909 = vperm.xlu0 %908, %v843
          %v910 = vpop.permute.xlu0 %909
          %913 = vset.pattern.permute.xlu0 0
          %914 = vperm.xlu0 %913, %v844
          %v915 = vpop.permute.xlu0 %914
          %918 = vset.pattern.permute.xlu0 0
          %919 = vperm.xlu0 %918, %v845
          %v920 = vpop.permute.xlu0 %919
          %923 = vset.pattern.permute.xlu0 0
          %924 = vperm.xlu0 %923, %v846
          %v925 = vpop.permute.xlu0 %924
          %928 = vset.pattern.permute.xlu0 0
          %929 = vperm.xlu0 %928, %v847
          %v930 = vpop.permute.xlu0 %929
          %933 = vset.pattern.permute.xlu0 0
          %934 = vperm.xlu0 %933, %v848
          %v935 = vpop.permute.xlu0 %934
          %938 = vset.pattern.permute.xlu0 0
          %939 = vperm.xlu0 %938, %v849
          %v940 = vpop.permute.xlu0 %939
          %943 = vset.pattern.permute.xlu0 0
          %944 = vperm.xlu0 %943, %v850
          %v945 = vpop.permute.xlu0 %944
          %948 = vset.pattern.permute.xlu0 0
          %949 = vperm.xlu0 %948, %v851
          %v950 = vpop.permute.xlu0 %949
          %953 = vset.pattern.permute.xlu0 0
          %954 = vperm.xlu0 %953, %v852
          %v955 = vpop.permute.xlu0 %954
          %958 = vset.pattern.permute.xlu0 0
          %959 = vperm.xlu0 %958, %v853
          %v960 = vpop.permute.xlu0 %959
          %963 = vset.pattern.permute.xlu0 0
          %964 = vperm.xlu0 %963, %v854
          %v965 = vpop.permute.xlu0 %964
          %968 = vset.pattern.permute.xlu0 0
          %969 = vperm.xlu0 %968, %v855
          %v970 = vpop.permute.xlu0 %969
          %973 = vset.pattern.permute.xlu0 0
          %974 = vperm.xlu0 %973, %v856
          %v975 = vpop.permute.xlu0 %974
          %978 = vset.pattern.permute.xlu0 0
          %979 = vperm.xlu0 %978, %v857
          %v980 = vpop.permute.xlu0 %979
          %983 = vset.pattern.permute.xlu0 0
          %984 = vperm.xlu0 %983, %v858
          %v985 = vpop.permute.xlu0 %984
          %988 = vset.pattern.permute.xlu0 0
          %989 = vperm.xlu0 %988, %v859
          %v990 = vpop.permute.xlu0 %989
          %993 = vset.pattern.permute.xlu0 0
          %994 = vperm.xlu0 %993, %v860
          %v995 = vpop.permute.xlu0 %994
          %998 = vset.pattern.permute.xlu0 0
          %999 = vperm.xlu0 %998, %v861
          %v1000 = vpop.permute.xlu0 %999
          %1003 = vset.pattern.permute.xlu0 0
          %1004 = vperm.xlu0 %1003, %v862
          %v1005 = vpop.permute.xlu0 %1004
          %1008 = vset.pattern.permute.xlu0 0
          %1009 = vperm.xlu0 %1008, %v863
          %v1010 = vpop.permute.xlu0 %1009
          %1013 = vset.pattern.permute.xlu0 0
          %1014 = vperm.xlu0 %1013, %v864
          %v1015 = vpop.permute.xlu0 %1014
          %1018 = vset.pattern.permute.xlu0 0
          %1019 = vperm.xlu0 %1018, %v865
          %v1020 = vpop.permute.xlu0 %1019
          %1023 = vset.pattern.permute.xlu0 0
          %1024 = vperm.xlu0 %1023, %v866
          %v1025 = vpop.permute.xlu0 %1024
          %v1027 = vperm.slane %v834, 6
          %v1028 = vmul.f32 %v870, %v1027
          %v1029 = vmul.f32 %v875, %v1027
          %v1030 = vmul.f32 %v880, %v1027
          %v1031 = vmul.f32 %v885, %v1027
          %v1032 = vmul.f32 %v890, %v1027
          %v1033 = vmul.f32 %v895, %v1027
          %v1034 = vmul.f32 %v900, %v1027
          %v1035 = vmul.f32 %v905, %v1027
          %v1036 = vmul.f32 %v910, %v1027
          %v1037 = vmul.f32 %v915, %v1027
          %v1038 = vmul.f32 %v920, %v1027
          %v1039 = vmul.f32 %v925, %v1027
          %v1040 = vmul.f32 %v930, %v1027
          %v1041 = vmul.f32 %v935, %v1027
          %v1042 = vmul.f32 %v940, %v1027
          %v1043 = vmul.f32 %v945, %v1027
          %v1044 = vmul.f32 %v950, %v1027
          %v1045 = vmul.f32 %v955, %v1027
          %v1046 = vmul.f32 %v960, %v1027
          %v1047 = vmul.f32 %v965, %v1027
          %v1048 = vmul.f32 %v970, %v1027
          %v1049 = vmul.f32 %v975, %v1027
          %v1050 = vmul.f32 %v980, %v1027
          %v1051 = vmul.f32 %v985, %v1027
          %v1052 = vmul.f32 %v990, %v1027
          %v1053 = vmul.f32 %v995, %v1027
          %v1054 = vmul.f32 %v1000, %v1027
          %v1055 = vmul.f32 %v1005, %v1027
          %v1056 = vmul.f32 %v1010, %v1027
          %v1057 = vmul.f32 %v1015, %v1027
          %v1058 = vmul.f32 %v1020, %v1027
          %v1059 = vmul.f32 %v1025, %v1027
          %1060 = vset.pattern.permute.xlu0 1
          %1061 = vperm.xlu0 %1060, %v835
          %v1062 = vpop.permute.xlu0 %1061
          %1064 = vset.pattern.permute.xlu0 1
          %1065 = vperm.xlu0 %1064, %v836
          %v1066 = vpop.permute.xlu0 %1065
          %1068 = vset.pattern.permute.xlu0 1
          %1069 = vperm.xlu0 %1068, %v837
          %v1070 = vpop.permute.xlu0 %1069
          %1072 = vset.pattern.permute.xlu0 1
          %1073 = vperm.xlu0 %1072, %v838
          %v1074 = vpop.permute.xlu0 %1073
          %1076 = vset.pattern.permute.xlu0 1
          %1077 = vperm.xlu0 %1076, %v839
          %v1078 = vpop.permute.xlu0 %1077
          %1080 = vset.pattern.permute.xlu0 1
          %1081 = vperm.xlu0 %1080, %v840
          %v1082 = vpop.permute.xlu0 %1081
          %1084 = vset.pattern.permute.xlu0 1
          %1085 = vperm.xlu0 %1084, %v841
          %v1086 = vpop.permute.xlu0 %1085
          %1088 = vset.pattern.permute.xlu0 1
          %1089 = vperm.xlu0 %1088, %v842
          %v1090 = vpop.permute.xlu0 %1089
          %1092 = vset.pattern.permute.xlu0 1
          %1093 = vperm.xlu0 %1092, %v843
          %v1094 = vpop.permute.xlu0 %1093
          %1096 = vset.pattern.permute.xlu0 1
          %1097 = vperm.xlu0 %1096, %v844
          %v1098 = vpop.permute.xlu0 %1097
          %1100 = vset.pattern.permute.xlu0 1
          %1101 = vperm.xlu0 %1100, %v845
          %v1102 = vpop.permute.xlu0 %1101
          %1104 = vset.pattern.permute.xlu0 1
          %1105 = vperm.xlu0 %1104, %v846
          %v1106 = vpop.permute.xlu0 %1105
          %1108 = vset.pattern.permute.xlu0 1
          %1109 = vperm.xlu0 %1108, %v847
          %v1110 = vpop.permute.xlu0 %1109
          %1112 = vset.pattern.permute.xlu0 1
          %1113 = vperm.xlu0 %1112, %v848
          %v1114 = vpop.permute.xlu0 %1113
          %1116 = vset.pattern.permute.xlu0 1
          %1117 = vperm.xlu0 %1116, %v849
          %v1118 = vpop.permute.xlu0 %1117
          %1120 = vset.pattern.permute.xlu0 1
          %1121 = vperm.xlu0 %1120, %v850
          %v1122 = vpop.permute.xlu0 %1121
          %1124 = vset.pattern.permute.xlu0 1
          %1125 = vperm.xlu0 %1124, %v851
          %v1126 = vpop.permute.xlu0 %1125
          %1128 = vset.pattern.permute.xlu0 1
          %1129 = vperm.xlu0 %1128, %v852
          %v1130 = vpop.permute.xlu0 %1129
          %1132 = vset.pattern.permute.xlu0 1
          %1133 = vperm.xlu0 %1132, %v853
          %v1134 = vpop.permute.xlu0 %1133
          %1136 = vset.pattern.permute.xlu0 1
          %1137 = vperm.xlu0 %1136, %v854
          %v1138 = vpop.permute.xlu0 %1137
          %1140 = vset.pattern.permute.xlu0 1
          %1141 = vperm.xlu0 %1140, %v855
          %v1142 = vpop.permute.xlu0 %1141
          %1144 = vset.pattern.permute.xlu0 1
          %1145 = vperm.xlu0 %1144, %v856
          %v1146 = vpop.permute.xlu0 %1145
          %1148 = vset.pattern.permute.xlu0 1
          %1149 = vperm.xlu0 %1148, %v857
          %v1150 = vpop.permute.xlu0 %1149
          %1152 = vset.pattern.permute.xlu0 1
          %1153 = vperm.xlu0 %1152, %v858
          %v1154 = vpop.permute.xlu0 %1153
          %1156 = vset.pattern.permute.xlu0 1
          %1157 = vperm.xlu0 %1156, %v859
          %v1158 = vpop.permute.xlu0 %1157
          %1160 = vset.pattern.permute.xlu0 1
          %1161 = vperm.xlu0 %1160, %v860
          %v1162 = vpop.permute.xlu0 %1161
          %1164 = vset.pattern.permute.xlu0 1
          %1165 = vperm.xlu0 %1164, %v861
          %v1166 = vpop.permute.xlu0 %1165
          %1168 = vset.pattern.permute.xlu0 1
          %1169 = vperm.xlu0 %1168, %v862
          %v1170 = vpop.permute.xlu0 %1169
          %1172 = vset.pattern.permute.xlu0 1
          %1173 = vperm.xlu0 %1172, %v863
          %v1174 = vpop.permute.xlu0 %1173
          %1176 = vset.pattern.permute.xlu0 1
          %1177 = vperm.xlu0 %1176, %v864
          %v1178 = vpop.permute.xlu0 %1177
          %1180 = vset.pattern.permute.xlu0 1
          %1181 = vperm.xlu0 %1180, %v865
          %v1182 = vpop.permute.xlu0 %1181
          %1184 = vset.pattern.permute.xlu0 1
          %1185 = vperm.xlu0 %1184, %v866
          %v1186 = vpop.permute.xlu0 %1185
          %v1188 = vperm.slane %v834, 7
          %v1189 = vmul.f32 %v1062, %v1188
          %v1190 = vmul.f32 %v1066, %v1188
          %v1191 = vmul.f32 %v1070, %v1188
          %v1192 = vmul.f32 %v1074, %v1188
          %v1193 = vmul.f32 %v1078, %v1188
          %v1194 = vmul.f32 %v1082, %v1188
          %v1195 = vmul.f32 %v1086, %v1188
          %v1196 = vmul.f32 %v1090, %v1188
          %v1197 = vmul.f32 %v1094, %v1188
          %v1198 = vmul.f32 %v1098, %v1188
          %v1199 = vmul.f32 %v1102, %v1188
          %v1200 = vmul.f32 %v1106, %v1188
          %v1201 = vmul.f32 %v1110, %v1188
          %v1202 = vmul.f32 %v1114, %v1188
          %v1203 = vmul.f32 %v1118, %v1188
          %v1204 = vmul.f32 %v1122, %v1188
          %v1205 = vmul.f32 %v1126, %v1188
          %v1206 = vmul.f32 %v1130, %v1188
          %v1207 = vmul.f32 %v1134, %v1188
          %v1208 = vmul.f32 %v1138, %v1188
          %v1209 = vmul.f32 %v1142, %v1188
          %v1210 = vmul.f32 %v1146, %v1188
          %v1211 = vmul.f32 %v1150, %v1188
          %v1212 = vmul.f32 %v1154, %v1188
          %v1213 = vmul.f32 %v1158, %v1188
          %v1214 = vmul.f32 %v1162, %v1188
          %v1215 = vmul.f32 %v1166, %v1188
          %v1216 = vmul.f32 %v1170, %v1188
          %v1217 = vmul.f32 %v1174, %v1188
          %v1218 = vmul.f32 %v1178, %v1188
          %v1219 = vmul.f32 %v1182, %v1188
          %v1220 = vmul.f32 %v1186, %v1188
          %v1221 = vadd.f32 %v1028, %v1189
          %v1222 = vadd.f32 %v1029, %v1190
          %v1223 = vadd.f32 %v1030, %v1191
          %v1224 = vadd.f32 %v1031, %v1192
          %v1225 = vadd.f32 %v1032, %v1193
          %v1226 = vadd.f32 %v1033, %v1194
          %v1227 = vadd.f32 %v1034, %v1195
          %v1228 = vadd.f32 %v1035, %v1196
          %v1229 = vadd.f32 %v1036, %v1197
          %v1230 = vadd.f32 %v1037, %v1198
          %v1231 = vadd.f32 %v1038, %v1199
          %v1232 = vadd.f32 %v1039, %v1200
          %v1233 = vadd.f32 %v1040, %v1201
          %v1234 = vadd.f32 %v1041, %v1202
          %v1235 = vadd.f32 %v1042, %v1203
          %v1236 = vadd.f32 %v1043, %v1204
          %v1237 = vadd.f32 %v1044, %v1205
          %v1238 = vadd.f32 %v1045, %v1206
          %v1239 = vadd.f32 %v1046, %v1207
          %v1240 = vadd.f32 %v1047, %v1208
          %v1241 = vadd.f32 %v1048, %v1209
          %v1242 = vadd.f32 %v1049, %v1210
          %v1243 = vadd.f32 %v1050, %v1211
          %v1244 = vadd.f32 %v1051, %v1212
          %v1245 = vadd.f32 %v1052, %v1213
          %v1246 = vadd.f32 %v1053, %v1214
          %v1247 = vadd.f32 %v1054, %v1215
          %v1248 = vadd.f32 %v1055, %v1216
          %v1249 = vadd.f32 %v1056, %v1217
          %v1250 = vadd.f32 %v1057, %v1218
          %v1251 = vadd.f32 %v1058, %v1219
          %v1252 = vadd.f32 %v1059, %v1220
          %1253 = vmatpush.msra.mxu0 %v1236
          %1254 = vmatpush.msra.mxu0 %v1235
          %1255 = vmatpush.msra.mxu0 %v1234
          %1256 = vmatpush.msra.mxu0 %v1233
          %1257 = vmatpush.msra.mxu0 %v1232
          %1258 = vmatpush.msra.mxu0 %v1231
          %1259 = vmatpush.msra.mxu0 %v1230
          %1260 = vmatpush.msra.mxu0 %v1229
          %1261 = vmatpush.msra.mxu0 %v1228
          %1262 = vmatpush.msra.mxu0 %v1227
          %1263 = vmatpush.msra.mxu0 %v1226
          %1264 = vmatpush.msra.mxu0 %v1225
          %1265 = vmatpush.msra.mxu0 %v1224
          %1266 = vmatpush.msra.mxu0 %v1223
          %1267 = vmatpush.msra.mxu0 %v1222
          %1268 = vmatpush.msra.mxu0 %v1221
          %1269 = vmatmul.f32.gmra.mxu0 %v770
          %v1270 = vpop.f32.mrf.mxu0
          %v1271 = vadd.f32 0.0, %v1270
          %1272 = vmatmul.f32.gmra.mxu0 %v772
          %v1273 = vpop.f32.mrf.mxu0
          %v1274 = vadd.f32 0.0, %v1273
          %1275 = vmatmul.f32.gmra.mxu0 %v774
          %v1276 = vpop.f32.mrf.mxu0
          %v1277 = vadd.f32 0.0, %v1276
          %1278 = vmatmul.f32.gmra.mxu0 %v776
          %v1279 = vpop.f32.mrf.mxu0
          %v1280 = vadd.f32 0.0, %v1279
          %1281 = vmatmul.f32.gmra.mxu0 %v778
          %v1282 = vpop.f32.mrf.mxu0
          %v1283 = vadd.f32 0.0, %v1282
          %1284 = vmatmul.f32.gmra.mxu0 %v780
          %v1285 = vpop.f32.mrf.mxu0
          %v1286 = vadd.f32 0.0, %v1285
          %1287 = vmatmul.f32.gmra.mxu0 %v782
          %v1288 = vpop.f32.mrf.mxu0
          %v1289 = vadd.f32 0.0, %v1288
          %1290 = vmatmul.f32.gmra.mxu0 %v784
          %v1291 = vpop.f32.mrf.mxu0
          %v1292 = vadd.f32 0.0, %v1291
          %1293 = vmatmul.f32.gmra.mxu0 %v786
          %v1294 = vpop.f32.mrf.mxu0
          %v1295 = vadd.f32 0.0, %v1294
          %1296 = vmatmul.f32.gmra.mxu0 %v788
          %v1297 = vpop.f32.mrf.mxu0
          %v1298 = vadd.f32 0.0, %v1297
          %1299 = vmatmul.f32.gmra.mxu0 %v790
          %v1300 = vpop.f32.mrf.mxu0
          %v1301 = vadd.f32 0.0, %v1300
          %1302 = vmatmul.f32.gmra.mxu0 %v792
          %v1303 = vpop.f32.mrf.mxu0
          %v1304 = vadd.f32 0.0, %v1303
          %1305 = vmatmul.f32.gmra.mxu0 %v794
          %v1306 = vpop.f32.mrf.mxu0
          %v1307 = vadd.f32 0.0, %v1306
          %1308 = vmatmul.f32.gmra.mxu0 %v796
          %v1309 = vpop.f32.mrf.mxu0
          %v1310 = vadd.f32 0.0, %v1309
          %1311 = vmatmul.f32.gmra.mxu0 %v798
          %v1312 = vpop.f32.mrf.mxu0
          %v1313 = vadd.f32 0.0, %v1312
          %1314 = vmatmul.f32.gmra.mxu0 %v800
          %v1315 = vpop.f32.mrf.mxu0
          %v1316 = vadd.f32 0.0, %v1315
          %1317 = vmatmul.f32.gmra.mxu0 %v802
          %v1318 = vpop.f32.mrf.mxu0
          %v1319 = vadd.f32 0.0, %v1318
          %1320 = vmatmul.f32.gmra.mxu0 %v804
          %v1321 = vpop.f32.mrf.mxu0
          %v1322 = vadd.f32 0.0, %v1321
          %1323 = vmatmul.f32.gmra.mxu0 %v806
          %v1324 = vpop.f32.mrf.mxu0
          %v1325 = vadd.f32 0.0, %v1324
          %1326 = vmatmul.f32.gmra.mxu0 %v808
          %v1327 = vpop.f32.mrf.mxu0
          %v1328 = vadd.f32 0.0, %v1327
          %1329 = vmatmul.f32.gmra.mxu0 %v810
          %v1330 = vpop.f32.mrf.mxu0
          %v1331 = vadd.f32 0.0, %v1330
          %1332 = vmatmul.f32.gmra.mxu0 %v812
          %v1333 = vpop.f32.mrf.mxu0
          %v1334 = vadd.f32 0.0, %v1333
          %1335 = vmatmul.f32.gmra.mxu0 %v814
          %v1336 = vpop.f32.mrf.mxu0
          %v1337 = vadd.f32 0.0, %v1336
          %1338 = vmatmul.f32.gmra.mxu0 %v816
          %v1339 = vpop.f32.mrf.mxu0
          %v1340 = vadd.f32 0.0, %v1339
          %1341 = vmatmul.f32.gmra.mxu0 %v818
          %v1342 = vpop.f32.mrf.mxu0
          %v1343 = vadd.f32 0.0, %v1342
          %1344 = vmatmul.f32.gmra.mxu0 %v820
          %v1345 = vpop.f32.mrf.mxu0
          %v1346 = vadd.f32 0.0, %v1345
          %1347 = vmatmul.f32.gmra.mxu0 %v822
          %v1348 = vpop.f32.mrf.mxu0
          %v1349 = vadd.f32 0.0, %v1348
          %1350 = vmatmul.f32.gmra.mxu0 %v824
          %v1351 = vpop.f32.mrf.mxu0
          %v1352 = vadd.f32 0.0, %v1351
          %1353 = vmatmul.f32.gmra.mxu0 %v826
          %v1354 = vpop.f32.mrf.mxu0
          %v1355 = vadd.f32 0.0, %v1354
          %1356 = vmatmul.f32.gmra.mxu0 %v828
          %v1357 = vpop.f32.mrf.mxu0
          %v1358 = vadd.f32 0.0, %v1357
          %1359 = vmatmul.f32.gmra.mxu0 %v830
          %v1360 = vpop.f32.mrf.mxu0
          %v1361 = vadd.f32 0.0, %v1360
          %1362 = vmatmul.f32.gmra.mxu0 %v832
          %v1363 = vpop.f32.mrf.mxu0
          %v1364 = vadd.f32 0.0, %v1363
          %1365 = vdwg.mxu0
          %1366 = vmatpush.msra.mxu0 %v1252
          %1367 = vmatpush.msra.mxu0 %v1251
          %1368 = vmatpush.msra.mxu0 %v1250
          %1369 = vmatpush.msra.mxu0 %v1249
          %1370 = vmatpush.msra.mxu0 %v1248
          %1371 = vmatpush.msra.mxu0 %v1247
          %1372 = vmatpush.msra.mxu0 %v1246
          %1373 = vmatpush.msra.mxu0 %v1245
          %1374 = vmatpush.msra.mxu0 %v1244
          %1375 = vmatpush.msra.mxu0 %v1243
          %1376 = vmatpush.msra.mxu0 %v1242
          %1377 = vmatpush.msra.mxu0 %v1241
          %1378 = vmatpush.msra.mxu0 %v1240
          %1379 = vmatpush.msra.mxu0 %v1239
          %1380 = vmatpush.msra.mxu0 %v1238
          %1381 = vmatpush.msra.mxu0 %v1237
          %1382 = vmatmul.f32.gmra.mxu0 %v771
          %v1383 = vpop.f32.mrf.mxu0
          %v1384 = vadd.f32 %v1271, %v1383
          %1385 = vmatmul.f32.gmra.mxu0 %v773
          %v1386 = vpop.f32.mrf.mxu0
          %v1387 = vadd.f32 %v1274, %v1386
          %1388 = vmatmul.f32.gmra.mxu0 %v775
          %v1389 = vpop.f32.mrf.mxu0
          %v1390 = vadd.f32 %v1277, %v1389
          %1391 = vmatmul.f32.gmra.mxu0 %v777
          %v1392 = vpop.f32.mrf.mxu0
          %v1393 = vadd.f32 %v1280, %v1392
          %1394 = vmatmul.f32.gmra.mxu0 %v779
          %v1395 = vpop.f32.mrf.mxu0
          %v1396 = vadd.f32 %v1283, %v1395
          %1397 = vmatmul.f32.gmra.mxu0 %v781
          %v1398 = vpop.f32.mrf.mxu0
          %v1399 = vadd.f32 %v1286, %v1398
          %1400 = vmatmul.f32.gmra.mxu0 %v783
          %v1401 = vpop.f32.mrf.mxu0
          %v1402 = vadd.f32 %v1289, %v1401
          %1403 = vmatmul.f32.gmra.mxu0 %v785
          %v1404 = vpop.f32.mrf.mxu0
          %v1405 = vadd.f32 %v1292, %v1404
          %1406 = vmatmul.f32.gmra.mxu0 %v787
          %v1407 = vpop.f32.mrf.mxu0
          %v1408 = vadd.f32 %v1295, %v1407
          %1409 = vmatmul.f32.gmra.mxu0 %v789
          %v1410 = vpop.f32.mrf.mxu0
          %v1411 = vadd.f32 %v1298, %v1410
          %1412 = vmatmul.f32.gmra.mxu0 %v791
          %v1413 = vpop.f32.mrf.mxu0
          %v1414 = vadd.f32 %v1301, %v1413
          %1415 = vmatmul.f32.gmra.mxu0 %v793
          %v1416 = vpop.f32.mrf.mxu0
          %v1417 = vadd.f32 %v1304, %v1416
          %1418 = vmatmul.f32.gmra.mxu0 %v795
          %v1419 = vpop.f32.mrf.mxu0
          %v1420 = vadd.f32 %v1307, %v1419
          %1421 = vmatmul.f32.gmra.mxu0 %v797
          %v1422 = vpop.f32.mrf.mxu0
          %v1423 = vadd.f32 %v1310, %v1422
          %1424 = vmatmul.f32.gmra.mxu0 %v799
          %v1425 = vpop.f32.mrf.mxu0
          %v1426 = vadd.f32 %v1313, %v1425
          %1427 = vmatmul.f32.gmra.mxu0 %v801
          %v1428 = vpop.f32.mrf.mxu0
          %v1429 = vadd.f32 %v1316, %v1428
          %1430 = vmatmul.f32.gmra.mxu0 %v803
          %v1431 = vpop.f32.mrf.mxu0
          %v1432 = vadd.f32 %v1319, %v1431
          %1433 = vmatmul.f32.gmra.mxu0 %v805
          %v1434 = vpop.f32.mrf.mxu0
          %v1435 = vadd.f32 %v1322, %v1434
          %1436 = vmatmul.f32.gmra.mxu0 %v807
          %v1437 = vpop.f32.mrf.mxu0
          %v1438 = vadd.f32 %v1325, %v1437
          %1439 = vmatmul.f32.gmra.mxu0 %v809
          %v1440 = vpop.f32.mrf.mxu0
          %v1441 = vadd.f32 %v1328, %v1440
          %1442 = vmatmul.f32.gmra.mxu0 %v811
          %v1443 = vpop.f32.mrf.mxu0
          %v1444 = vadd.f32 %v1331, %v1443
          %1445 = vmatmul.f32.gmra.mxu0 %v813
          %v1446 = vpop.f32.mrf.mxu0
          %v1447 = vadd.f32 %v1334, %v1446
          %1448 = vmatmul.f32.gmra.mxu0 %v815
          %v1449 = vpop.f32.mrf.mxu0
          %v1450 = vadd.f32 %v1337, %v1449
          %1451 = vmatmul.f32.gmra.mxu0 %v817
          %v1452 = vpop.f32.mrf.mxu0
          %v1453 = vadd.f32 %v1340, %v1452
          %1454 = vmatmul.f32.gmra.mxu0 %v819
          %v1455 = vpop.f32.mrf.mxu0
          %v1456 = vadd.f32 %v1343, %v1455
          %1457 = vmatmul.f32.gmra.mxu0 %v821
          %v1458 = vpop.f32.mrf.mxu0
          %v1459 = vadd.f32 %v1346, %v1458
          %1460 = vmatmul.f32.gmra.mxu0 %v823
          %v1461 = vpop.f32.mrf.mxu0
          %v1462 = vadd.f32 %v1349, %v1461
          %1463 = vmatmul.f32.gmra.mxu0 %v825
          %v1464 = vpop.f32.mrf.mxu0
          %v1465 = vadd.f32 %v1352, %v1464
          %1466 = vmatmul.f32.gmra.mxu0 %v827
          %v1467 = vpop.f32.mrf.mxu0
          %v1468 = vadd.f32 %v1355, %v1467
          %1469 = vmatmul.f32.gmra.mxu0 %v829
          %v1470 = vpop.f32.mrf.mxu0
          %v1471 = vadd.f32 %v1358, %v1470
          %1472 = vmatmul.f32.gmra.mxu0 %v831
          %v1473 = vpop.f32.mrf.mxu0
          %v1474 = vadd.f32 %v1361, %v1473
          %1475 = vmatmul.f32.gmra.mxu0 %v833
          %v1476 = vpop.f32.mrf.mxu0
          %v1477 = vadd.f32 %v1364, %v1476
          %1478 = vdwg.mxu0
          %v1479 = vperm.slane %v834, 0
          %v1480 = vmul.f32 %v1384, %v1479
          %v1481 = vmul.f32 %v1387, %v1479
          %v1482 = vmul.f32 %v1390, %v1479
          %v1483 = vmul.f32 %v1393, %v1479
          %v1484 = vmul.f32 %v1396, %v1479
          %v1485 = vmul.f32 %v1399, %v1479
          %v1486 = vmul.f32 %v1402, %v1479
          %v1487 = vmul.f32 %v1405, %v1479
          %v1488 = vmul.f32 %v1408, %v1479
          %v1489 = vmul.f32 %v1411, %v1479
          %v1490 = vmul.f32 %v1414, %v1479
          %v1491 = vmul.f32 %v1417, %v1479
          %v1492 = vmul.f32 %v1420, %v1479
          %v1493 = vmul.f32 %v1423, %v1479
          %v1494 = vmul.f32 %v1426, %v1479
          %v1495 = vmul.f32 %v1429, %v1479
          %v1496 = vmul.f32 %v1432, %v1479
          %v1497 = vmul.f32 %v1435, %v1479
          %v1498 = vmul.f32 %v1438, %v1479
          %v1499 = vmul.f32 %v1441, %v1479
          %v1500 = vmul.f32 %v1444, %v1479
          %v1501 = vmul.f32 %v1447, %v1479
          %v1502 = vmul.f32 %v1450, %v1479
          %v1503 = vmul.f32 %v1453, %v1479
          %v1504 = vmul.f32 %v1456, %v1479
          %v1505 = vmul.f32 %v1459, %v1479
          %v1506 = vmul.f32 %v1462, %v1479
          %v1507 = vmul.f32 %v1465, %v1479
          %v1508 = vmul.f32 %v1468, %v1479
          %v1509 = vmul.f32 %v1471, %v1479
          %v1510 = vmul.f32 %v1474, %v1479
          %v1511 = vmul.f32 %v1477, %v1479
          %v1512 = vperm.slane %v834, 1
          %v1513 = vadd.f32 %v1480, %v1512
          %v1514 = vadd.f32 %v1481, %v1512
          %v1515 = vadd.f32 %v1482, %v1512
          %v1516 = vadd.f32 %v1483, %v1512
          %v1517 = vadd.f32 %v1484, %v1512
          %v1518 = vadd.f32 %v1485, %v1512
          %v1519 = vadd.f32 %v1486, %v1512
          %v1520 = vadd.f32 %v1487, %v1512
          %v1521 = vadd.f32 %v1488, %v1512
          %v1522 = vadd.f32 %v1489, %v1512
          %v1523 = vadd.f32 %v1490, %v1512
          %v1524 = vadd.f32 %v1491, %v1512
          %v1525 = vadd.f32 %v1492, %v1512
          %v1526 = vadd.f32 %v1493, %v1512
          %v1527 = vadd.f32 %v1494, %v1512
          %v1528 = vadd.f32 %v1495, %v1512
          %v1529 = vadd.f32 %v1496, %v1512
          %v1530 = vadd.f32 %v1497, %v1512
          %v1531 = vadd.f32 %v1498, %v1512
          %v1532 = vadd.f32 %v1499, %v1512
          %v1533 = vadd.f32 %v1500, %v1512
          %v1534 = vadd.f32 %v1501, %v1512
          %v1535 = vadd.f32 %v1502, %v1512
          %v1536 = vadd.f32 %v1503, %v1512
          %v1537 = vadd.f32 %v1504, %v1512
          %v1538 = vadd.f32 %v1505, %v1512
          %v1539 = vadd.f32 %v1506, %v1512
          %v1540 = vadd.f32 %v1507, %v1512
          %v1541 = vadd.f32 %v1508, %v1512
          %v1542 = vadd.f32 %v1509, %v1512
          %v1543 = vadd.f32 %v1510, %v1512
          %v1544 = vadd.f32 %v1511, %v1512
          %v1545 = vmax.f32 %v1513, 0.0
          %v1546 = vmax.f32 %v1514, 0.0
          %v1547 = vmax.f32 %v1515, 0.0
          %v1548 = vmax.f32 %v1516, 0.0
          %v1549 = vmax.f32 %v1517, 0.0
          %v1550 = vmax.f32 %v1518, 0.0
          %v1551 = vmax.f32 %v1519, 0.0
          %v1552 = vmax.f32 %v1520, 0.0
          %v1553 = vmax.f32 %v1521, 0.0
          %v1554 = vmax.f32 %v1522, 0.0
          %v1555 = vmax.f32 %v1523, 0.0
          %v1556 = vmax.f32 %v1524, 0.0
          %v1557 = vmax.f32 %v1525, 0.0
          %v1558 = vmax.f32 %v1526, 0.0
          %v1559 = vmax.f32 %v1527, 0.0
          %v1560 = vmax.f32 %v1528, 0.0
          %v1561 = vmax.f32 %v1529, 0.0
          %v1562 = vmax.f32 %v1530, 0.0
          %v1563 = vmax.f32 %v1531, 0.0
          %v1564 = vmax.f32 %v1532, 0.0
          %v1565 = vmax.f32 %v1533, 0.0
          %v1566 = vmax.f32 %v1534, 0.0
          %v1567 = vmax.f32 %v1535, 0.0
          %v1568 = vmax.f32 %v1536, 0.0
          %v1569 = vmax.f32 %v1537, 0.0
          %v1570 = vmax.f32 %v1538, 0.0
          %v1571 = vmax.f32 %v1539, 0.0
          %v1572 = vmax.f32 %v1540, 0.0
          %v1573 = vmax.f32 %v1541, 0.0
          %v1574 = vmax.f32 %v1542, 0.0
          %v1575 = vmax.f32 %v1543, 0.0
          %v1576 = vmax.f32 %v1544, 0.0
          %1577 = vmatpush.msra.mxu0 %v1560
          %1578 = vmatpush.msra.mxu0 %v1559
          %1579 = vmatpush.msra.mxu0 %v1558
          %1580 = vmatpush.msra.mxu0 %v1557
          %1581 = vmatpush.msra.mxu0 %v1556
          %1582 = vmatpush.msra.mxu0 %v1555
          %1583 = vmatpush.msra.mxu0 %v1554
          %1584 = vmatpush.msra.mxu0 %v1553
          %1585 = vmatpush.msra.mxu0 %v1552
          %1586 = vmatpush.msra.mxu0 %v1551
          %1587 = vmatpush.msra.mxu0 %v1550
          %1588 = vmatpush.msra.mxu0 %v1549
          %1589 = vmatpush.msra.mxu0 %v1548
          %1590 = vmatpush.msra.mxu0 %v1547
          %1591 = vmatpush.msra.mxu0 %v1546
          %1592 = vmatpush.msra.mxu0 %v1545
          %1593 = vmatmul.f32.gmra.mxu0 %v770
          %v1594 = vpop.f32.mrf.mxu0
          %v1595 = vadd.f32 0.0, %v1594
          %1596 = vmatmul.f32.gmra.mxu0 %v772
          %v1597 = vpop.f32.mrf.mxu0
          %v1598 = vadd.f32 0.0, %v1597
          %1599 = vmatmul.f32.gmra.mxu0 %v774
          %v1600 = vpop.f32.mrf.mxu0
          %v1601 = vadd.f32 0.0, %v1600
          %1602 = vmatmul.f32.gmra.mxu0 %v776
          %v1603 = vpop.f32.mrf.mxu0
          %v1604 = vadd.f32 0.0, %v1603
          %1605 = vmatmul.f32.gmra.mxu0 %v778
          %v1606 = vpop.f32.mrf.mxu0
          %v1607 = vadd.f32 0.0, %v1606
          %1608 = vmatmul.f32.gmra.mxu0 %v780
          %v1609 = vpop.f32.mrf.mxu0
          %v1610 = vadd.f32 0.0, %v1609
          %1611 = vmatmul.f32.gmra.mxu0 %v782
          %v1612 = vpop.f32.mrf.mxu0
          %v1613 = vadd.f32 0.0, %v1612
          %1614 = vmatmul.f32.gmra.mxu0 %v784
          %v1615 = vpop.f32.mrf.mxu0
          %v1616 = vadd.f32 0.0, %v1615
          %1617 = vmatmul.f32.gmra.mxu0 %v786
          %v1618 = vpop.f32.mrf.mxu0
          %v1619 = vadd.f32 0.0, %v1618
          %1620 = vmatmul.f32.gmra.mxu0 %v788
          %v1621 = vpop.f32.mrf.mxu0
          %v1622 = vadd.f32 0.0, %v1621
          %1623 = vmatmul.f32.gmra.mxu0 %v790
          %v1624 = vpop.f32.mrf.mxu0
          %v1625 = vadd.f32 0.0, %v1624
          %1626 = vmatmul.f32.gmra.mxu0 %v792
          %v1627 = vpop.f32.mrf.mxu0
          %v1628 = vadd.f32 0.0, %v1627
          %1629 = vmatmul.f32.gmra.mxu0 %v794
          %v1630 = vpop.f32.mrf.mxu0
          %v1631 = vadd.f32 0.0, %v1630
          %1632 = vmatmul.f32.gmra.mxu0 %v796
          %v1633 = vpop.f32.mrf.mxu0
          %v1634 = vadd.f32 0.0, %v1633
          %1635 = vmatmul.f32.gmra.mxu0 %v798
          %v1636 = vpop.f32.mrf.mxu0
          %v1637 = vadd.f32 0.0, %v1636
          %1638 = vmatmul.f32.gmra.mxu0 %v800
          %v1639 = vpop.f32.mrf.mxu0
          %v1640 = vadd.f32 0.0, %v1639
          %1641 = vmatmul.f32.gmra.mxu0 %v802
          %v1642 = vpop.f32.mrf.mxu0
          %v1643 = vadd.f32 0.0, %v1642
          %1644 = vmatmul.f32.gmra.mxu0 %v804
          %v1645 = vpop.f32.mrf.mxu0
          %v1646 = vadd.f32 0.0, %v1645
          %1647 = vmatmul.f32.gmra.mxu0 %v806
          %v1648 = vpop.f32.mrf.mxu0
          %v1649 = vadd.f32 0.0, %v1648
          %1650 = vmatmul.f32.gmra.mxu0 %v808
          %v1651 = vpop.f32.mrf.mxu0
          %v1652 = vadd.f32 0.0, %v1651
          %1653 = vmatmul.f32.gmra.mxu0 %v810
          %v1654 = vpop.f32.mrf.mxu0
          %v1655 = vadd.f32 0.0, %v1654
          %1656 = vmatmul.f32.gmra.mxu0 %v812
          %v1657 = vpop.f32.mrf.mxu0
          %v1658 = vadd.f32 0.0, %v1657
          %1659 = vmatmul.f32.gmra.mxu0 %v814
          %v1660 = vpop.f32.mrf.mxu0
          %v1661 = vadd.f32 0.0, %v1660
          %1662 = vmatmul.f32.gmra.mxu0 %v816
          %v1663 = vpop.f32.mrf.mxu0
          %v1664 = vadd.f32 0.0, %v1663
          %1665 = vmatmul.f32.gmra.mxu0 %v818
          %v1666 = vpop.f32.mrf.mxu0
          %v1667 = vadd.f32 0.0, %v1666
          %1668 = vmatmul.f32.gmra.mxu0 %v820
          %v1669 = vpop.f32.mrf.mxu0
          %v1670 = vadd.f32 0.0, %v1669
          %1671 = vmatmul.f32.gmra.mxu0 %v822
          %v1672 = vpop.f32.mrf.mxu0
          %v1673 = vadd.f32 0.0, %v1672
          %1674 = vmatmul.f32.gmra.mxu0 %v824
          %v1675 = vpop.f32.mrf.mxu0
          %v1676 = vadd.f32 0.0, %v1675
          %1677 = vmatmul.f32.gmra.mxu0 %v826
          %v1678 = vpop.f32.mrf.mxu0
          %v1679 = vadd.f32 0.0, %v1678
          %1680 = vmatmul.f32.gmra.mxu0 %v828
          %v1681 = vpop.f32.mrf.mxu0
          %v1682 = vadd.f32 0.0, %v1681
          %1683 = vmatmul.f32.gmra.mxu0 %v830
          %v1684 = vpop.f32.mrf.mxu0
          %v1685 = vadd.f32 0.0, %v1684
          %1686 = vmatmul.f32.gmra.mxu0 %v832
          %v1687 = vpop.f32.mrf.mxu0
          %v1688 = vadd.f32 0.0, %v1687
          %1689 = vdwg.mxu0
          %1690 = vmatpush.msra.mxu0 %v1576
          %1691 = vmatpush.msra.mxu0 %v1575
          %1692 = vmatpush.msra.mxu0 %v1574
          %1693 = vmatpush.msra.mxu0 %v1573
          %1694 = vmatpush.msra.mxu0 %v1572
          %1695 = vmatpush.msra.mxu0 %v1571
          %1696 = vmatpush.msra.mxu0 %v1570
          %1697 = vmatpush.msra.mxu0 %v1569
          %1698 = vmatpush.msra.mxu0 %v1568
          %1699 = vmatpush.msra.mxu0 %v1567
          %1700 = vmatpush.msra.mxu0 %v1566
          %1701 = vmatpush.msra.mxu0 %v1565
          %1702 = vmatpush.msra.mxu0 %v1564
          %1703 = vmatpush.msra.mxu0 %v1563
          %1704 = vmatpush.msra.mxu0 %v1562
          %1705 = vmatpush.msra.mxu0 %v1561
          %1706 = vmatmul.f32.gmra.mxu0 %v771
          %v1707 = vpop.f32.mrf.mxu0
          %v1708 = vadd.f32 %v1595, %v1707
          %1709 = vmatmul.f32.gmra.mxu0 %v773
          %v1710 = vpop.f32.mrf.mxu0
          %v1711 = vadd.f32 %v1598, %v1710
          %1712 = vmatmul.f32.gmra.mxu0 %v775
          %v1713 = vpop.f32.mrf.mxu0
          %v1714 = vadd.f32 %v1601, %v1713
          %1715 = vmatmul.f32.gmra.mxu0 %v777
          %v1716 = vpop.f32.mrf.mxu0
          %v1717 = vadd.f32 %v1604, %v1716
          %1718 = vmatmul.f32.gmra.mxu0 %v779
          %v1719 = vpop.f32.mrf.mxu0
          %v1720 = vadd.f32 %v1607, %v1719
          %1721 = vmatmul.f32.gmra.mxu0 %v781
          %v1722 = vpop.f32.mrf.mxu0
          %v1723 = vadd.f32 %v1610, %v1722
          %1724 = vmatmul.f32.gmra.mxu0 %v783
          %v1725 = vpop.f32.mrf.mxu0
          %v1726 = vadd.f32 %v1613, %v1725
          %1727 = vmatmul.f32.gmra.mxu0 %v785
          %v1728 = vpop.f32.mrf.mxu0
          %v1729 = vadd.f32 %v1616, %v1728
          %1730 = vmatmul.f32.gmra.mxu0 %v787
          %v1731 = vpop.f32.mrf.mxu0
          %v1732 = vadd.f32 %v1619, %v1731
          %1733 = vmatmul.f32.gmra.mxu0 %v789
          %v1734 = vpop.f32.mrf.mxu0
          %v1735 = vadd.f32 %v1622, %v1734
          %1736 = vmatmul.f32.gmra.mxu0 %v791
          %v1737 = vpop.f32.mrf.mxu0
          %v1738 = vadd.f32 %v1625, %v1737
          %1739 = vmatmul.f32.gmra.mxu0 %v793
          %v1740 = vpop.f32.mrf.mxu0
          %v1741 = vadd.f32 %v1628, %v1740
          %1742 = vmatmul.f32.gmra.mxu0 %v795
          %v1743 = vpop.f32.mrf.mxu0
          %v1744 = vadd.f32 %v1631, %v1743
          %1745 = vmatmul.f32.gmra.mxu0 %v797
          %v1746 = vpop.f32.mrf.mxu0
          %v1747 = vadd.f32 %v1634, %v1746
          %1748 = vmatmul.f32.gmra.mxu0 %v799
          %v1749 = vpop.f32.mrf.mxu0
          %v1750 = vadd.f32 %v1637, %v1749
          %1751 = vmatmul.f32.gmra.mxu0 %v801
          %v1752 = vpop.f32.mrf.mxu0
          %v1753 = vadd.f32 %v1640, %v1752
          %1754 = vmatmul.f32.gmra.mxu0 %v803
          %v1755 = vpop.f32.mrf.mxu0
          %v1756 = vadd.f32 %v1643, %v1755
          %1757 = vmatmul.f32.gmra.mxu0 %v805
          %v1758 = vpop.f32.mrf.mxu0
          %v1759 = vadd.f32 %v1646, %v1758
          %1760 = vmatmul.f32.gmra.mxu0 %v807
          %v1761 = vpop.f32.mrf.mxu0
          %v1762 = vadd.f32 %v1649, %v1761
          %1763 = vmatmul.f32.gmra.mxu0 %v809
          %v1764 = vpop.f32.mrf.mxu0
          %v1765 = vadd.f32 %v1652, %v1764
          %1766 = vmatmul.f32.gmra.mxu0 %v811
          %v1767 = vpop.f32.mrf.mxu0
          %v1768 = vadd.f32 %v1655, %v1767
          %1769 = vmatmul.f32.gmra.mxu0 %v813
          %v1770 = vpop.f32.mrf.mxu0
          %v1771 = vadd.f32 %v1658, %v1770
          %1772 = vmatmul.f32.gmra.mxu0 %v815
          %v1773 = vpop.f32.mrf.mxu0
          %v1774 = vadd.f32 %v1661, %v1773
          %1775 = vmatmul.f32.gmra.mxu0 %v817
          %v1776 = vpop.f32.mrf.mxu0
          %v1777 = vadd.f32 %v1664, %v1776
          %1778 = vmatmul.f32.gmra.mxu0 %v819
          %v1779 = vpop.f32.mrf.mxu0
          %v1780 = vadd.f32 %v1667, %v1779
          %1781 = vmatmul.f32.gmra.mxu0 %v821
          %v1782 = vpop.f32.mrf.mxu0
          %v1783 = vadd.f32 %v1670, %v1782
          %1784 = vmatmul.f32.gmra.mxu0 %v823
          %v1785 = vpop.f32.mrf.mxu0
          %v1786 = vadd.f32 %v1673, %v1785
          %1787 = vmatmul.f32.gmra.mxu0 %v825
          %v1788 = vpop.f32.mrf.mxu0
          %v1789 = vadd.f32 %v1676, %v1788
          %1790 = vmatmul.f32.gmra.mxu0 %v827
          %v1791 = vpop.f32.mrf.mxu0
          %v1792 = vadd.f32 %v1679, %v1791
          %1793 = vmatmul.f32.gmra.mxu0 %v829
          %v1794 = vpop.f32.mrf.mxu0
          %v1795 = vadd.f32 %v1682, %v1794
          %1796 = vmatmul.f32.gmra.mxu0 %v831
          %v1797 = vpop.f32.mrf.mxu0
          %v1798 = vadd.f32 %v1685, %v1797
          %1799 = vmatmul.f32.gmra.mxu0 %v833
          %v1800 = vpop.f32.mrf.mxu0
          %v1801 = vadd.f32 %v1688, %v1800
          %1802 = vdwg.mxu0
          %v1803 = vld [vmem:[%s3] sm:$0xff]
          %v1804 = vld [vmem:[%s3 + $0x8] sm:$0xff]
          %v1805 = vld [vmem:[%s3 + $0x10] sm:$0xff]
          %v1806 = vld [vmem:[%s3 + $0x18] sm:$0xff]
          %v1807 = vld [vmem:[%s3 + $0x20] sm:$0xff]
          %v1808 = vld [vmem:[%s3 + $0x28] sm:$0xff]
          %v1809 = vld [vmem:[%s3 + $0x30] sm:$0xff]
          %v1810 = vld [vmem:[%s3 + $0x38] sm:$0xff]
          %vm1811 = vcmask 523264
          %v1813 = vsel %vm1811, %v1708, 0
          %v1816 = vsel %vm1811, %v1711, 0
          %v1819 = vsel %vm1811, %v1714, 0
          %v1822 = vsel %vm1811, %v1717, 0
          %v1825 = vsel %vm1811, %v1720, 0
          %v1828 = vsel %vm1811, %v1723, 0
          %v1831 = vsel %vm1811, %v1726, 0
          %v1834 = vsel %vm1811, %v1729, 0
          %v1837 = vsel %vm1811, %v1732, 0
          %v1840 = vsel %vm1811, %v1735, 0
          %v1843 = vsel %vm1811, %v1738, 0
          %v1846 = vsel %vm1811, %v1741, 0
          %v1849 = vsel %vm1811, %v1744, 0
          %v1852 = vsel %vm1811, %v1747, 0
          %v1855 = vsel %vm1811, %v1750, 0
          %v1858 = vsel %vm1811, %v1753, 0
          %v1861 = vsel %vm1811, %v1756, 0
          %v1864 = vsel %vm1811, %v1759, 0
          %v1867 = vsel %vm1811, %v1762, 0
          %v1870 = vsel %vm1811, %v1765, 0
          %v1873 = vsel %vm1811, %v1768, 0
          %v1876 = vsel %vm1811, %v1771, 0
          %v1879 = vsel %vm1811, %v1774, 0
          %v1882 = vsel %vm1811, %v1777, 0
          %v1885 = vsel %vm1811, %v1780, 0
          %v1888 = vsel %vm1811, %v1783, 0
          %v1891 = vsel %vm1811, %v1786, 0
          %v1894 = vsel %vm1811, %v1789, 0
          %v1897 = vsel %vm1811, %v1792, 0
          %v1900 = vsel %vm1811, %v1795, 0
          %v1903 = vsel %vm1811, %v1798, 0
          %v1906 = vsel %vm1811, %v1801, 0
          %1908 = vmatpush.msra.mxu0 0.0
          %1909 = vmatpush.msra.mxu0 0.0
          %1910 = vmatpush.msra.mxu0 0.0
          %1911 = vmatpush.msra.mxu0 0.0
          %1912 = vmatpush.msra.mxu0 0.0
          %1913 = vmatpush.msra.mxu0 0.0
          %1914 = vmatpush.msra.mxu0 0.0
          %1915 = vmatpush.msra.mxu0 0.0
          %1916 = vmatpush.msra.mxu0 %v1810
          %1917 = vmatpush.msra.mxu0 %v1809
          %1918 = vmatpush.msra.mxu0 %v1808
          %1919 = vmatpush.msra.mxu0 %v1807
          %1920 = vmatpush.msra.mxu0 %v1806
          %1921 = vmatpush.msra.mxu0 %v1805
          %1922 = vmatpush.msra.mxu0 %v1804
          %1923 = vmatpush.msra.mxu0 %v1803
          %1924 = vmatmul.f32.gmra.mxu0 %v1813
          %v1925 = vpop.f32.mrf.mxu0
          %v1926 = vadd.f32 0.0, %v1925
          %1927 = vmatmul.f32.gmra.mxu0 %v1816
          %v1928 = vpop.f32.mrf.mxu0
          %v1929 = vadd.f32 0.0, %v1928
          %1930 = vmatmul.f32.gmra.mxu0 %v1819
          %v1931 = vpop.f32.mrf.mxu0
          %v1932 = vadd.f32 0.0, %v1931
          %1933 = vmatmul.f32.gmra.mxu0 %v1822
          %v1934 = vpop.f32.mrf.mxu0
          %v1935 = vadd.f32 0.0, %v1934
          %1936 = vmatmul.f32.gmra.mxu0 %v1825
          %v1937 = vpop.f32.mrf.mxu0
          %v1938 = vadd.f32 0.0, %v1937
          %1939 = vmatmul.f32.gmra.mxu0 %v1828
          %v1940 = vpop.f32.mrf.mxu0
          %v1941 = vadd.f32 0.0, %v1940
          %1942 = vmatmul.f32.gmra.mxu0 %v1831
          %v1943 = vpop.f32.mrf.mxu0
          %v1944 = vadd.f32 0.0, %v1943
          %1945 = vmatmul.f32.gmra.mxu0 %v1834
          %v1946 = vpop.f32.mrf.mxu0
          %v1947 = vadd.f32 0.0, %v1946
          %1948 = vmatmul.f32.gmra.mxu0 %v1837
          %v1949 = vpop.f32.mrf.mxu0
          %v1950 = vadd.f32 0.0, %v1949
          %1951 = vmatmul.f32.gmra.mxu0 %v1840
          %v1952 = vpop.f32.mrf.mxu0
          %v1953 = vadd.f32 0.0, %v1952
          %1954 = vmatmul.f32.gmra.mxu0 %v1843
          %v1955 = vpop.f32.mrf.mxu0
          %v1956 = vadd.f32 0.0, %v1955
          %1957 = vmatmul.f32.gmra.mxu0 %v1846
          %v1958 = vpop.f32.mrf.mxu0
          %v1959 = vadd.f32 0.0, %v1958
          %1960 = vmatmul.f32.gmra.mxu0 %v1849
          %v1961 = vpop.f32.mrf.mxu0
          %v1962 = vadd.f32 0.0, %v1961
          %1963 = vmatmul.f32.gmra.mxu0 %v1852
          %v1964 = vpop.f32.mrf.mxu0
          %v1965 = vadd.f32 0.0, %v1964
          %1966 = vmatmul.f32.gmra.mxu0 %v1855
          %v1967 = vpop.f32.mrf.mxu0
          %v1968 = vadd.f32 0.0, %v1967
          %1969 = vmatmul.f32.gmra.mxu0 %v1858
          %v1970 = vpop.f32.mrf.mxu0
          %v1971 = vadd.f32 0.0, %v1970
          %1972 = vmatmul.f32.gmra.mxu0 %v1861
          %v1973 = vpop.f32.mrf.mxu0
          %v1974 = vadd.f32 0.0, %v1973
          %1975 = vmatmul.f32.gmra.mxu0 %v1864
          %v1976 = vpop.f32.mrf.mxu0
          %v1977 = vadd.f32 0.0, %v1976
          %1978 = vmatmul.f32.gmra.mxu0 %v1867
          %v1979 = vpop.f32.mrf.mxu0
          %v1980 = vadd.f32 0.0, %v1979
          %1981 = vmatmul.f32.gmra.mxu0 %v1870
          %v1982 = vpop.f32.mrf.mxu0
          %v1983 = vadd.f32 0.0, %v1982
          %1984 = vmatmul.f32.gmra.mxu0 %v1873
          %v1985 = vpop.f32.mrf.mxu0
          %v1986 = vadd.f32 0.0, %v1985
          %1987 = vmatmul.f32.gmra.mxu0 %v1876
          %v1988 = vpop.f32.mrf.mxu0
          %v1989 = vadd.f32 0.0, %v1988
          %1990 = vmatmul.f32.gmra.mxu0 %v1879
          %v1991 = vpop.f32.mrf.mxu0
          %v1992 = vadd.f32 0.0, %v1991
          %1993 = vmatmul.f32.gmra.mxu0 %v1882
          %v1994 = vpop.f32.mrf.mxu0
          %v1995 = vadd.f32 0.0, %v1994
          %1996 = vmatmul.f32.gmra.mxu0 %v1885
          %v1997 = vpop.f32.mrf.mxu0
          %v1998 = vadd.f32 0.0, %v1997
          %1999 = vmatmul.f32.gmra.mxu0 %v1888
          %v2000 = vpop.f32.mrf.mxu0
          %v2001 = vadd.f32 0.0, %v2000
          %2002 = vmatmul.f32.gmra.mxu0 %v1891
          %v2003 = vpop.f32.mrf.mxu0
          %v2004 = vadd.f32 0.0, %v2003
          %2005 = vmatmul.f32.gmra.mxu0 %v1894
          %v2006 = vpop.f32.mrf.mxu0
          %v2007 = vadd.f32 0.0, %v2006
          %2008 = vmatmul.f32.gmra.mxu0 %v1897
          %v2009 = vpop.f32.mrf.mxu0
          %v2010 = vadd.f32 0.0, %v2009
          %2011 = vmatmul.f32.gmra.mxu0 %v1900
          %v2012 = vpop.f32.mrf.mxu0
          %v2013 = vadd.f32 0.0, %v2012
          %2014 = vmatmul.f32.gmra.mxu0 %v1903
          %v2015 = vpop.f32.mrf.mxu0
          %v2016 = vadd.f32 0.0, %v2015
          %2017 = vmatmul.f32.gmra.mxu0 %v1906
          %v2018 = vpop.f32.mrf.mxu0
          %v2019 = vadd.f32 0.0, %v2018
          %2020 = vdwg.mxu0
          %v2021 = vperm.slane %v834, 2
          %v2022 = vmul.f32 %v1926, %v2021
          %v2023 = vmul.f32 %v1929, %v2021
          %v2024 = vmul.f32 %v1932, %v2021
          %v2025 = vmul.f32 %v1935, %v2021
          %v2026 = vmul.f32 %v1938, %v2021
          %v2027 = vmul.f32 %v1941, %v2021
          %v2028 = vmul.f32 %v1944, %v2021
          %v2029 = vmul.f32 %v1947, %v2021
          %v2030 = vmul.f32 %v1950, %v2021
          %v2031 = vmul.f32 %v1953, %v2021
          %v2032 = vmul.f32 %v1956, %v2021
          %v2033 = vmul.f32 %v1959, %v2021
          %v2034 = vmul.f32 %v1962, %v2021
          %v2035 = vmul.f32 %v1965, %v2021
          %v2036 = vmul.f32 %v1968, %v2021
          %v2037 = vmul.f32 %v1971, %v2021
          %v2038 = vmul.f32 %v1974, %v2021
          %v2039 = vmul.f32 %v1977, %v2021
          %v2040 = vmul.f32 %v1980, %v2021
          %v2041 = vmul.f32 %v1983, %v2021
          %v2042 = vmul.f32 %v1986, %v2021
          %v2043 = vmul.f32 %v1989, %v2021
          %v2044 = vmul.f32 %v1992, %v2021
          %v2045 = vmul.f32 %v1995, %v2021
          %v2046 = vmul.f32 %v1998, %v2021
          %v2047 = vmul.f32 %v2001, %v2021
          %v2048 = vmul.f32 %v2004, %v2021
          %v2049 = vmul.f32 %v2007, %v2021
          %v2050 = vmul.f32 %v2010, %v2021
          %v2051 = vmul.f32 %v2013, %v2021
          %v2052 = vmul.f32 %v2016, %v2021
          %v2053 = vmul.f32 %v2019, %v2021
          %v2054 = vperm.slane %v834, 3
          %v2055 = vadd.f32 %v2022, %v2054
          %v2056 = vadd.f32 %v2023, %v2054
          %v2057 = vadd.f32 %v2024, %v2054
          %v2058 = vadd.f32 %v2025, %v2054
          %v2059 = vadd.f32 %v2026, %v2054
          %v2060 = vadd.f32 %v2027, %v2054
          %v2061 = vadd.f32 %v2028, %v2054
          %v2062 = vadd.f32 %v2029, %v2054
          %v2063 = vadd.f32 %v2030, %v2054
          %v2064 = vadd.f32 %v2031, %v2054
          %v2065 = vadd.f32 %v2032, %v2054
          %v2066 = vadd.f32 %v2033, %v2054
          %v2067 = vadd.f32 %v2034, %v2054
          %v2068 = vadd.f32 %v2035, %v2054
          %v2069 = vadd.f32 %v2036, %v2054
          %v2070 = vadd.f32 %v2037, %v2054
          %v2071 = vadd.f32 %v2038, %v2054
          %v2072 = vadd.f32 %v2039, %v2054
          %v2073 = vadd.f32 %v2040, %v2054
          %v2074 = vadd.f32 %v2041, %v2054
          %v2075 = vadd.f32 %v2042, %v2054
          %v2076 = vadd.f32 %v2043, %v2054
          %v2077 = vadd.f32 %v2044, %v2054
          %v2078 = vadd.f32 %v2045, %v2054
          %v2079 = vadd.f32 %v2046, %v2054
          %v2080 = vadd.f32 %v2047, %v2054
          %v2081 = vadd.f32 %v2048, %v2054
          %v2082 = vadd.f32 %v2049, %v2054
          %v2083 = vadd.f32 %v2050, %v2054
          %v2084 = vadd.f32 %v2051, %v2054
          %v2085 = vadd.f32 %v2052, %v2054
          %v2086 = vadd.f32 %v2053, %v2054
          %v2087 = vmax.f32 %v2055, 0.0
          %v2088 = vmax.f32 %v2056, 0.0
          %v2089 = vmax.f32 %v2057, 0.0
          %v2090 = vmax.f32 %v2058, 0.0
          %v2091 = vmax.f32 %v2059, 0.0
          %v2092 = vmax.f32 %v2060, 0.0
          %v2093 = vmax.f32 %v2061, 0.0
          %v2094 = vmax.f32 %v2062, 0.0
          %v2095 = vmax.f32 %v2063, 0.0
          %v2096 = vmax.f32 %v2064, 0.0
          %v2097 = vmax.f32 %v2065, 0.0
          %v2098 = vmax.f32 %v2066, 0.0
          %v2099 = vmax.f32 %v2067, 0.0
          %v2100 = vmax.f32 %v2068, 0.0
          %v2101 = vmax.f32 %v2069, 0.0
          %v2102 = vmax.f32 %v2070, 0.0
          %v2103 = vmax.f32 %v2071, 0.0
          %v2104 = vmax.f32 %v2072, 0.0
          %v2105 = vmax.f32 %v2073, 0.0
          %v2106 = vmax.f32 %v2074, 0.0
          %v2107 = vmax.f32 %v2075, 0.0
          %v2108 = vmax.f32 %v2076, 0.0
          %v2109 = vmax.f32 %v2077, 0.0
          %v2110 = vmax.f32 %v2078, 0.0
          %v2111 = vmax.f32 %v2079, 0.0
          %v2112 = vmax.f32 %v2080, 0.0
          %v2113 = vmax.f32 %v2081, 0.0
          %v2114 = vmax.f32 %v2082, 0.0
          %v2115 = vmax.f32 %v2083, 0.0
          %v2116 = vmax.f32 %v2084, 0.0
          %v2117 = vmax.f32 %v2085, 0.0
          %v2118 = vmax.f32 %v2086, 0.0
          %2119 = vmatpush.msra.mxu0 %v2102
          %2120 = vmatpush.msra.mxu0 %v2101
          %2121 = vmatpush.msra.mxu0 %v2100
          %2122 = vmatpush.msra.mxu0 %v2099
          %2123 = vmatpush.msra.mxu0 %v2098
          %2124 = vmatpush.msra.mxu0 %v2097
          %2125 = vmatpush.msra.mxu0 %v2096
          %2126 = vmatpush.msra.mxu0 %v2095
          %2127 = vmatpush.msra.mxu0 %v2094
          %2128 = vmatpush.msra.mxu0 %v2093
          %2129 = vmatpush.msra.mxu0 %v2092
          %2130 = vmatpush.msra.mxu0 %v2091
          %2131 = vmatpush.msra.mxu0 %v2090
          %2132 = vmatpush.msra.mxu0 %v2089
          %2133 = vmatpush.msra.mxu0 %v2088
          %2134 = vmatpush.msra.mxu0 %v2087
          %2135 = vmatmul.f32.gmra.mxu0 %v770
          %v2136 = vpop.f32.mrf.mxu0
          %v2137 = vadd.f32 0.0, %v2136
          %2138 = vmatmul.f32.gmra.mxu0 %v772
          %v2139 = vpop.f32.mrf.mxu0
          %v2140 = vadd.f32 0.0, %v2139
          %2141 = vmatmul.f32.gmra.mxu0 %v774
          %v2142 = vpop.f32.mrf.mxu0
          %v2143 = vadd.f32 0.0, %v2142
          %2144 = vmatmul.f32.gmra.mxu0 %v776
          %v2145 = vpop.f32.mrf.mxu0
          %v2146 = vadd.f32 0.0, %v2145
          %2147 = vmatmul.f32.gmra.mxu0 %v778
          %v2148 = vpop.f32.mrf.mxu0
          %v2149 = vadd.f32 0.0, %v2148
          %2150 = vmatmul.f32.gmra.mxu0 %v780
          %v2151 = vpop.f32.mrf.mxu0
          %v2152 = vadd.f32 0.0, %v2151
          %2153 = vmatmul.f32.gmra.mxu0 %v782
          %v2154 = vpop.f32.mrf.mxu0
          %v2155 = vadd.f32 0.0, %v2154
          %2156 = vmatmul.f32.gmra.mxu0 %v784
          %v2157 = vpop.f32.mrf.mxu0
          %v2158 = vadd.f32 0.0, %v2157
          %2159 = vmatmul.f32.gmra.mxu0 %v786
          %v2160 = vpop.f32.mrf.mxu0
          %v2161 = vadd.f32 0.0, %v2160
          %2162 = vmatmul.f32.gmra.mxu0 %v788
          %v2163 = vpop.f32.mrf.mxu0
          %v2164 = vadd.f32 0.0, %v2163
          %2165 = vmatmul.f32.gmra.mxu0 %v790
          %v2166 = vpop.f32.mrf.mxu0
          %v2167 = vadd.f32 0.0, %v2166
          %2168 = vmatmul.f32.gmra.mxu0 %v792
          %v2169 = vpop.f32.mrf.mxu0
          %v2170 = vadd.f32 0.0, %v2169
          %2171 = vmatmul.f32.gmra.mxu0 %v794
          %v2172 = vpop.f32.mrf.mxu0
          %v2173 = vadd.f32 0.0, %v2172
          %2174 = vmatmul.f32.gmra.mxu0 %v796
          %v2175 = vpop.f32.mrf.mxu0
          %v2176 = vadd.f32 0.0, %v2175
          %2177 = vmatmul.f32.gmra.mxu0 %v798
          %v2178 = vpop.f32.mrf.mxu0
          %v2179 = vadd.f32 0.0, %v2178
          %2180 = vmatmul.f32.gmra.mxu0 %v800
          %v2181 = vpop.f32.mrf.mxu0
          %v2182 = vadd.f32 0.0, %v2181
          %2183 = vmatmul.f32.gmra.mxu0 %v802
          %v2184 = vpop.f32.mrf.mxu0
          %v2185 = vadd.f32 0.0, %v2184
          %2186 = vmatmul.f32.gmra.mxu0 %v804
          %v2187 = vpop.f32.mrf.mxu0
          %v2188 = vadd.f32 0.0, %v2187
          %2189 = vmatmul.f32.gmra.mxu0 %v806
          %v2190 = vpop.f32.mrf.mxu0
          %v2191 = vadd.f32 0.0, %v2190
          %2192 = vmatmul.f32.gmra.mxu0 %v808
          %v2193 = vpop.f32.mrf.mxu0
          %v2194 = vadd.f32 0.0, %v2193
          %2195 = vmatmul.f32.gmra.mxu0 %v810
          %v2196 = vpop.f32.mrf.mxu0
          %v2197 = vadd.f32 0.0, %v2196
          %2198 = vmatmul.f32.gmra.mxu0 %v812
          %v2199 = vpop.f32.mrf.mxu0
          %v2200 = vadd.f32 0.0, %v2199
          %2201 = vmatmul.f32.gmra.mxu0 %v814
          %v2202 = vpop.f32.mrf.mxu0
          %v2203 = vadd.f32 0.0, %v2202
          %2204 = vmatmul.f32.gmra.mxu0 %v816
          %v2205 = vpop.f32.mrf.mxu0
          %v2206 = vadd.f32 0.0, %v2205
          %2207 = vmatmul.f32.gmra.mxu0 %v818
          %v2208 = vpop.f32.mrf.mxu0
          %v2209 = vadd.f32 0.0, %v2208
          %2210 = vmatmul.f32.gmra.mxu0 %v820
          %v2211 = vpop.f32.mrf.mxu0
          %v2212 = vadd.f32 0.0, %v2211
          %2213 = vmatmul.f32.gmra.mxu0 %v822
          %v2214 = vpop.f32.mrf.mxu0
          %v2215 = vadd.f32 0.0, %v2214
          %2216 = vmatmul.f32.gmra.mxu0 %v824
          %v2217 = vpop.f32.mrf.mxu0
          %v2218 = vadd.f32 0.0, %v2217
          %2219 = vmatmul.f32.gmra.mxu0 %v826
          %v2220 = vpop.f32.mrf.mxu0
          %v2221 = vadd.f32 0.0, %v2220
          %2222 = vmatmul.f32.gmra.mxu0 %v828
          %v2223 = vpop.f32.mrf.mxu0
          %v2224 = vadd.f32 0.0, %v2223
          %2225 = vmatmul.f32.gmra.mxu0 %v830
          %v2226 = vpop.f32.mrf.mxu0
          %v2227 = vadd.f32 0.0, %v2226
          %2228 = vmatmul.f32.gmra.mxu0 %v832
          %v2229 = vpop.f32.mrf.mxu0
          %v2230 = vadd.f32 0.0, %v2229
          %2231 = vdwg.mxu0
          %2232 = vmatpush.msra.mxu0 %v2118
          %2233 = vmatpush.msra.mxu0 %v2117
          %2234 = vmatpush.msra.mxu0 %v2116
          %2235 = vmatpush.msra.mxu0 %v2115
          %2236 = vmatpush.msra.mxu0 %v2114
          %2237 = vmatpush.msra.mxu0 %v2113
          %2238 = vmatpush.msra.mxu0 %v2112
          %2239 = vmatpush.msra.mxu0 %v2111
          %2240 = vmatpush.msra.mxu0 %v2110
          %2241 = vmatpush.msra.mxu0 %v2109
          %2242 = vmatpush.msra.mxu0 %v2108
          %2243 = vmatpush.msra.mxu0 %v2107
          %2244 = vmatpush.msra.mxu0 %v2106
          %2245 = vmatpush.msra.mxu0 %v2105
          %2246 = vmatpush.msra.mxu0 %v2104
          %2247 = vmatpush.msra.mxu0 %v2103
          %2248 = vmatmul.f32.gmra.mxu0 %v771
          %v2249 = vpop.f32.mrf.mxu0
          %v2250 = vadd.f32 %v2137, %v2249
          %2251 = vmatmul.f32.gmra.mxu0 %v773
          %v2252 = vpop.f32.mrf.mxu0
          %v2253 = vadd.f32 %v2140, %v2252
          %2254 = vmatmul.f32.gmra.mxu0 %v775
          %v2255 = vpop.f32.mrf.mxu0
          %v2256 = vadd.f32 %v2143, %v2255
          %2257 = vmatmul.f32.gmra.mxu0 %v777
          %v2258 = vpop.f32.mrf.mxu0
          %v2259 = vadd.f32 %v2146, %v2258
          %2260 = vmatmul.f32.gmra.mxu0 %v779
          %v2261 = vpop.f32.mrf.mxu0
          %v2262 = vadd.f32 %v2149, %v2261
          %2263 = vmatmul.f32.gmra.mxu0 %v781
          %v2264 = vpop.f32.mrf.mxu0
          %v2265 = vadd.f32 %v2152, %v2264
          %2266 = vmatmul.f32.gmra.mxu0 %v783
          %v2267 = vpop.f32.mrf.mxu0
          %v2268 = vadd.f32 %v2155, %v2267
          %2269 = vmatmul.f32.gmra.mxu0 %v785
          %v2270 = vpop.f32.mrf.mxu0
          %v2271 = vadd.f32 %v2158, %v2270
          %2272 = vmatmul.f32.gmra.mxu0 %v787
          %v2273 = vpop.f32.mrf.mxu0
          %v2274 = vadd.f32 %v2161, %v2273
          %2275 = vmatmul.f32.gmra.mxu0 %v789
          %v2276 = vpop.f32.mrf.mxu0
          %v2277 = vadd.f32 %v2164, %v2276
          %2278 = vmatmul.f32.gmra.mxu0 %v791
          %v2279 = vpop.f32.mrf.mxu0
          %v2280 = vadd.f32 %v2167, %v2279
          %2281 = vmatmul.f32.gmra.mxu0 %v793
          %v2282 = vpop.f32.mrf.mxu0
          %v2283 = vadd.f32 %v2170, %v2282
          %2284 = vmatmul.f32.gmra.mxu0 %v795
          %v2285 = vpop.f32.mrf.mxu0
          %v2286 = vadd.f32 %v2173, %v2285
          %2287 = vmatmul.f32.gmra.mxu0 %v797
          %v2288 = vpop.f32.mrf.mxu0
          %v2289 = vadd.f32 %v2176, %v2288
          %2290 = vmatmul.f32.gmra.mxu0 %v799
          %v2291 = vpop.f32.mrf.mxu0
          %v2292 = vadd.f32 %v2179, %v2291
          %2293 = vmatmul.f32.gmra.mxu0 %v801
          %v2294 = vpop.f32.mrf.mxu0
          %v2295 = vadd.f32 %v2182, %v2294
          %2296 = vmatmul.f32.gmra.mxu0 %v803
          %v2297 = vpop.f32.mrf.mxu0
          %v2298 = vadd.f32 %v2185, %v2297
          %2299 = vmatmul.f32.gmra.mxu0 %v805
          %v2300 = vpop.f32.mrf.mxu0
          %v2301 = vadd.f32 %v2188, %v2300
          %2302 = vmatmul.f32.gmra.mxu0 %v807
          %v2303 = vpop.f32.mrf.mxu0
          %v2304 = vadd.f32 %v2191, %v2303
          %2305 = vmatmul.f32.gmra.mxu0 %v809
          %v2306 = vpop.f32.mrf.mxu0
          %v2307 = vadd.f32 %v2194, %v2306
          %2308 = vmatmul.f32.gmra.mxu0 %v811
          %v2309 = vpop.f32.mrf.mxu0
          %v2310 = vadd.f32 %v2197, %v2309
          %2311 = vmatmul.f32.gmra.mxu0 %v813
          %v2312 = vpop.f32.mrf.mxu0
          %v2313 = vadd.f32 %v2200, %v2312
          %2314 = vmatmul.f32.gmra.mxu0 %v815
          %v2315 = vpop.f32.mrf.mxu0
          %v2316 = vadd.f32 %v2203, %v2315
          %2317 = vmatmul.f32.gmra.mxu0 %v817
          %v2318 = vpop.f32.mrf.mxu0
          %v2319 = vadd.f32 %v2206, %v2318
          %2320 = vmatmul.f32.gmra.mxu0 %v819
          %v2321 = vpop.f32.mrf.mxu0
          %v2322 = vadd.f32 %v2209, %v2321
          %2323 = vmatmul.f32.gmra.mxu0 %v821
          %v2324 = vpop.f32.mrf.mxu0
          %v2325 = vadd.f32 %v2212, %v2324
          %2326 = vmatmul.f32.gmra.mxu0 %v823
          %v2327 = vpop.f32.mrf.mxu0
          %v2328 = vadd.f32 %v2215, %v2327
          %2329 = vmatmul.f32.gmra.mxu0 %v825
          %v2330 = vpop.f32.mrf.mxu0
          %v2331 = vadd.f32 %v2218, %v2330
          %2332 = vmatmul.f32.gmra.mxu0 %v827
          %v2333 = vpop.f32.mrf.mxu0
          %v2334 = vadd.f32 %v2221, %v2333
          %2335 = vmatmul.f32.gmra.mxu0 %v829
          %v2336 = vpop.f32.mrf.mxu0
          %v2337 = vadd.f32 %v2224, %v2336
          %2338 = vmatmul.f32.gmra.mxu0 %v831
          %v2339 = vpop.f32.mrf.mxu0
          %v2340 = vadd.f32 %v2227, %v2339
          %2341 = vmatmul.f32.gmra.mxu0 %v833
          %v2342 = vpop.f32.mrf.mxu0
          %v2343 = vadd.f32 %v2230, %v2342
          %2344 = vdwg.mxu0
          %v2345 = vld [vmem:[#allocation6] sm:$0xff]
          %v2346 = vld [vmem:[#allocation6 + $0x8] sm:$0xff]
          %v2347 = vld [vmem:[#allocation6 + $0x10] sm:$0xff]
          %v2348 = vld [vmem:[#allocation6 + $0x18] sm:$0xff]
          %v2349 = vld [vmem:[#allocation6 + $0x20] sm:$0xff]
          %v2350 = vld [vmem:[#allocation6 + $0x28] sm:$0xff]
          %v2351 = vld [vmem:[#allocation6 + $0x30] sm:$0xff]
          %v2352 = vld [vmem:[#allocation6 + $0x38] sm:$0xff]
          %v2354 = vsel %vm1811, %v2250, 0
          %v2357 = vsel %vm1811, %v2253, 0
          %v2360 = vsel %vm1811, %v2256, 0
          %v2363 = vsel %vm1811, %v2259, 0
          %v2366 = vsel %vm1811, %v2262, 0
          %v2369 = vsel %vm1811, %v2265, 0
          %v2372 = vsel %vm1811, %v2268, 0
          %v2375 = vsel %vm1811, %v2271, 0
          %v2378 = vsel %vm1811, %v2274, 0
          %v2381 = vsel %vm1811, %v2277, 0
          %v2384 = vsel %vm1811, %v2280, 0
          %v2387 = vsel %vm1811, %v2283, 0
          %v2390 = vsel %vm1811, %v2286, 0
          %v2393 = vsel %vm1811, %v2289, 0
          %v2396 = vsel %vm1811, %v2292, 0
          %v2399 = vsel %vm1811, %v2295, 0
          %v2402 = vsel %vm1811, %v2298, 0
          %v2405 = vsel %vm1811, %v2301, 0
          %v2408 = vsel %vm1811, %v2304, 0
          %v2411 = vsel %vm1811, %v2307, 0
          %v2414 = vsel %vm1811, %v2310, 0
          %v2417 = vsel %vm1811, %v2313, 0
          %v2420 = vsel %vm1811, %v2316, 0
          %v2423 = vsel %vm1811, %v2319, 0
          %v2426 = vsel %vm1811, %v2322, 0
          %v2429 = vsel %vm1811, %v2325, 0
          %v2432 = vsel %vm1811, %v2328, 0
          %v2435 = vsel %vm1811, %v2331, 0
          %v2438 = vsel %vm1811, %v2334, 0
          %v2441 = vsel %vm1811, %v2337, 0
          %v2444 = vsel %vm1811, %v2340, 0
          %v2447 = vsel %vm1811, %v2343, 0
          %2449 = vmatpush.msra.mxu0 0.0
          %2450 = vmatpush.msra.mxu0 0.0
          %2451 = vmatpush.msra.mxu0 0.0
          %2452 = vmatpush.msra.mxu0 0.0
          %2453 = vmatpush.msra.mxu0 0.0
          %2454 = vmatpush.msra.mxu0 0.0
          %2455 = vmatpush.msra.mxu0 0.0
          %2456 = vmatpush.msra.mxu0 0.0
          %2457 = vmatpush.msra.mxu0 %v2352
          %2458 = vmatpush.msra.mxu0 %v2351
          %2459 = vmatpush.msra.mxu0 %v2350
          %2460 = vmatpush.msra.mxu0 %v2349
          %2461 = vmatpush.msra.mxu0 %v2348
          %2462 = vmatpush.msra.mxu0 %v2347
          %2463 = vmatpush.msra.mxu0 %v2346
          %2464 = vmatpush.msra.mxu0 %v2345
          %2465 = vmatmul.f32.gmra.mxu0 %v2354
          %v2466 = vpop.f32.mrf.mxu0
          %v2467 = vadd.f32 0.0, %v2466
          %2468 = vmatmul.f32.gmra.mxu0 %v2357
          %v2469 = vpop.f32.mrf.mxu0
          %v2470 = vadd.f32 0.0, %v2469
          %2471 = vmatmul.f32.gmra.mxu0 %v2360
          %v2472 = vpop.f32.mrf.mxu0
          %v2473 = vadd.f32 0.0, %v2472
          %2474 = vmatmul.f32.gmra.mxu0 %v2363
          %v2475 = vpop.f32.mrf.mxu0
          %v2476 = vadd.f32 0.0, %v2475
          %2477 = vmatmul.f32.gmra.mxu0 %v2366
          %v2478 = vpop.f32.mrf.mxu0
          %v2479 = vadd.f32 0.0, %v2478
          %2480 = vmatmul.f32.gmra.mxu0 %v2369
          %v2481 = vpop.f32.mrf.mxu0
          %v2482 = vadd.f32 0.0, %v2481
          %2483 = vmatmul.f32.gmra.mxu0 %v2372
          %v2484 = vpop.f32.mrf.mxu0
          %v2485 = vadd.f32 0.0, %v2484
          %2486 = vmatmul.f32.gmra.mxu0 %v2375
          %v2487 = vpop.f32.mrf.mxu0
          %v2488 = vadd.f32 0.0, %v2487
          %2489 = vmatmul.f32.gmra.mxu0 %v2378
          %v2490 = vpop.f32.mrf.mxu0
          %v2491 = vadd.f32 0.0, %v2490
          %2492 = vmatmul.f32.gmra.mxu0 %v2381
          %v2493 = vpop.f32.mrf.mxu0
          %v2494 = vadd.f32 0.0, %v2493
          %2495 = vmatmul.f32.gmra.mxu0 %v2384
          %v2496 = vpop.f32.mrf.mxu0
          %v2497 = vadd.f32 0.0, %v2496
          %2498 = vmatmul.f32.gmra.mxu0 %v2387
          %v2499 = vpop.f32.mrf.mxu0
          %v2500 = vadd.f32 0.0, %v2499
          %2501 = vmatmul.f32.gmra.mxu0 %v2390
          %v2502 = vpop.f32.mrf.mxu0
          %v2503 = vadd.f32 0.0, %v2502
          %2504 = vmatmul.f32.gmra.mxu0 %v2393
          %v2505 = vpop.f32.mrf.mxu0
          %v2506 = vadd.f32 0.0, %v2505
          %2507 = vmatmul.f32.gmra.mxu0 %v2396
          %v2508 = vpop.f32.mrf.mxu0
          %v2509 = vadd.f32 0.0, %v2508
          %2510 = vmatmul.f32.gmra.mxu0 %v2399
          %v2511 = vpop.f32.mrf.mxu0
          %v2512 = vadd.f32 0.0, %v2511
          %2513 = vmatmul.f32.gmra.mxu0 %v2402
          %v2514 = vpop.f32.mrf.mxu0
          %v2515 = vadd.f32 0.0, %v2514
          %2516 = vmatmul.f32.gmra.mxu0 %v2405
          %v2517 = vpop.f32.mrf.mxu0
          %v2518 = vadd.f32 0.0, %v2517
          %2519 = vmatmul.f32.gmra.mxu0 %v2408
          %v2520 = vpop.f32.mrf.mxu0
          %v2521 = vadd.f32 0.0, %v2520
          %2522 = vmatmul.f32.gmra.mxu0 %v2411
          %v2523 = vpop.f32.mrf.mxu0
          %v2524 = vadd.f32 0.0, %v2523
          %2525 = vmatmul.f32.gmra.mxu0 %v2414
          %v2526 = vpop.f32.mrf.mxu0
          %v2527 = vadd.f32 0.0, %v2526
          %2528 = vmatmul.f32.gmra.mxu0 %v2417
          %v2529 = vpop.f32.mrf.mxu0
          %v2530 = vadd.f32 0.0, %v2529
          %2531 = vmatmul.f32.gmra.mxu0 %v2420
          %v2532 = vpop.f32.mrf.mxu0
          %v2533 = vadd.f32 0.0, %v2532
          %2534 = vmatmul.f32.gmra.mxu0 %v2423
          %v2535 = vpop.f32.mrf.mxu0
          %v2536 = vadd.f32 0.0, %v2535
          %2537 = vmatmul.f32.gmra.mxu0 %v2426
          %v2538 = vpop.f32.mrf.mxu0
          %v2539 = vadd.f32 0.0, %v2538
          %2540 = vmatmul.f32.gmra.mxu0 %v2429
          %v2541 = vpop.f32.mrf.mxu0
          %v2542 = vadd.f32 0.0, %v2541
          %2543 = vmatmul.f32.gmra.mxu0 %v2432
          %v2544 = vpop.f32.mrf.mxu0
          %v2545 = vadd.f32 0.0, %v2544
          %2546 = vmatmul.f32.gmra.mxu0 %v2435
          %v2547 = vpop.f32.mrf.mxu0
          %v2548 = vadd.f32 0.0, %v2547
          %2549 = vmatmul.f32.gmra.mxu0 %v2438
          %v2550 = vpop.f32.mrf.mxu0
          %v2551 = vadd.f32 0.0, %v2550
          %2552 = vmatmul.f32.gmra.mxu0 %v2441
          %v2553 = vpop.f32.mrf.mxu0
          %v2554 = vadd.f32 0.0, %v2553
          %2555 = vmatmul.f32.gmra.mxu0 %v2444
          %v2556 = vpop.f32.mrf.mxu0
          %v2557 = vadd.f32 0.0, %v2556
          %2558 = vmatmul.f32.gmra.mxu0 %v2447
          %v2559 = vpop.f32.mrf.mxu0
          %v2560 = vadd.f32 0.0, %v2559
          %2561 = vdwg.mxu0
          %v2562 = vperm.slane %v834, 4
          %v2563 = vmul.f32 %v2467, %v2562
          %v2564 = vmul.f32 %v2470, %v2562
          %v2565 = vmul.f32 %v2473, %v2562
          %v2566 = vmul.f32 %v2476, %v2562
          %v2567 = vmul.f32 %v2479, %v2562
          %v2568 = vmul.f32 %v2482, %v2562
          %v2569 = vmul.f32 %v2485, %v2562
          %v2570 = vmul.f32 %v2488, %v2562
          %v2571 = vmul.f32 %v2491, %v2562
          %v2572 = vmul.f32 %v2494, %v2562
          %v2573 = vmul.f32 %v2497, %v2562
          %v2574 = vmul.f32 %v2500, %v2562
          %v2575 = vmul.f32 %v2503, %v2562
          %v2576 = vmul.f32 %v2506, %v2562
          %v2577 = vmul.f32 %v2509, %v2562
          %v2578 = vmul.f32 %v2512, %v2562
          %v2579 = vmul.f32 %v2515, %v2562
          %v2580 = vmul.f32 %v2518, %v2562
          %v2581 = vmul.f32 %v2521, %v2562
          %v2582 = vmul.f32 %v2524, %v2562
          %v2583 = vmul.f32 %v2527, %v2562
          %v2584 = vmul.f32 %v2530, %v2562
          %v2585 = vmul.f32 %v2533, %v2562
          %v2586 = vmul.f32 %v2536, %v2562
          %v2587 = vmul.f32 %v2539, %v2562
          %v2588 = vmul.f32 %v2542, %v2562
          %v2589 = vmul.f32 %v2545, %v2562
          %v2590 = vmul.f32 %v2548, %v2562
          %v2591 = vmul.f32 %v2551, %v2562
          %v2592 = vmul.f32 %v2554, %v2562
          %v2593 = vmul.f32 %v2557, %v2562
          %v2594 = vmul.f32 %v2560, %v2562
          %v2595 = vperm.slane %v834, 5
          %v2596 = vadd.f32 %v2563, %v2595
          %v2597 = vadd.f32 %v2564, %v2595
          %v2598 = vadd.f32 %v2565, %v2595
          %v2599 = vadd.f32 %v2566, %v2595
          %v2600 = vadd.f32 %v2567, %v2595
          %v2601 = vadd.f32 %v2568, %v2595
          %v2602 = vadd.f32 %v2569, %v2595
          %v2603 = vadd.f32 %v2570, %v2595
          %v2604 = vadd.f32 %v2571, %v2595
          %v2605 = vadd.f32 %v2572, %v2595
          %v2606 = vadd.f32 %v2573, %v2595
          %v2607 = vadd.f32 %v2574, %v2595
          %v2608 = vadd.f32 %v2575, %v2595
          %v2609 = vadd.f32 %v2576, %v2595
          %v2610 = vadd.f32 %v2577, %v2595
          %v2611 = vadd.f32 %v2578, %v2595
          %v2612 = vadd.f32 %v2579, %v2595
          %v2613 = vadd.f32 %v2580, %v2595
          %v2614 = vadd.f32 %v2581, %v2595
          %v2615 = vadd.f32 %v2582, %v2595
          %v2616 = vadd.f32 %v2583, %v2595
          %v2617 = vadd.f32 %v2584, %v2595
          %v2618 = vadd.f32 %v2585, %v2595
          %v2619 = vadd.f32 %v2586, %v2595
          %v2620 = vadd.f32 %v2587, %v2595
          %v2621 = vadd.f32 %v2588, %v2595
          %v2622 = vadd.f32 %v2589, %v2595
          %v2623 = vadd.f32 %v2590, %v2595
          %v2624 = vadd.f32 %v2591, %v2595
          %v2625 = vadd.f32 %v2592, %v2595
          %v2626 = vadd.f32 %v2593, %v2595
          %v2627 = vadd.f32 %v2594, %v2595
          %v2628 = vmax.f32 %v2596, 0.0
          %v2629 = vmax.f32 %v2597, 0.0
          %v2630 = vmax.f32 %v2598, 0.0
          %v2631 = vmax.f32 %v2599, 0.0
          %v2632 = vmax.f32 %v2600, 0.0
          %v2633 = vmax.f32 %v2601, 0.0
          %v2634 = vmax.f32 %v2602, 0.0
          %v2635 = vmax.f32 %v2603, 0.0
          %v2636 = vmax.f32 %v2604, 0.0
          %v2637 = vmax.f32 %v2605, 0.0
          %v2638 = vmax.f32 %v2606, 0.0
          %v2639 = vmax.f32 %v2607, 0.0
          %v2640 = vmax.f32 %v2608, 0.0
          %v2641 = vmax.f32 %v2609, 0.0
          %v2642 = vmax.f32 %v2610, 0.0
          %v2643 = vmax.f32 %v2611, 0.0
          %v2644 = vmax.f32 %v2612, 0.0
          %v2645 = vmax.f32 %v2613, 0.0
          %v2646 = vmax.f32 %v2614, 0.0
          %v2647 = vmax.f32 %v2615, 0.0
          %v2648 = vmax.f32 %v2616, 0.0
          %v2649 = vmax.f32 %v2617, 0.0
          %v2650 = vmax.f32 %v2618, 0.0
          %v2651 = vmax.f32 %v2619, 0.0
          %v2652 = vmax.f32 %v2620, 0.0
          %v2653 = vmax.f32 %v2621, 0.0
          %v2654 = vmax.f32 %v2622, 0.0
          %v2655 = vmax.f32 %v2623, 0.0
          %v2656 = vmax.f32 %v2624, 0.0
          %v2657 = vmax.f32 %v2625, 0.0
          %v2658 = vmax.f32 %v2626, 0.0
          %v2659 = vmax.f32 %v2627, 0.0
          %v2660 = vadd.f32 %v2628, %v2629
          %v2661 = vrot.slane %v2660, 4
          %v2662 = vadd.f32 %v2660, %v2661
          %v2663 = vrot.slane %v2662, 2
          %v2664 = vadd.f32 %v2662, %v2663
          %v2665 = vrot.slane %v2664, 1
          %v2666 = vadd.f32 %v2664, %v2665
          %v2667 = vadd.f32 %v2630, %v2631
          %v2668 = vrot.slane %v2667, 4
          %v2669 = vadd.f32 %v2667, %v2668
          %v2670 = vrot.slane %v2669, 2
          %v2671 = vadd.f32 %v2669, %v2670
          %v2672 = vrot.slane %v2671, 1
          %v2673 = vadd.f32 %v2671, %v2672
          %v2674 = vadd.f32 %v2632, %v2633
          %v2675 = vrot.slane %v2674, 4
          %v2676 = vadd.f32 %v2674, %v2675
          %v2677 = vrot.slane %v2676, 2
          %v2678 = vadd.f32 %v2676, %v2677
          %v2679 = vrot.slane %v2678, 1
          %v2680 = vadd.f32 %v2678, %v2679
          %v2681 = vadd.f32 %v2634, %v2635
          %v2682 = vrot.slane %v2681, 4
          %v2683 = vadd.f32 %v2681, %v2682
          %v2684 = vrot.slane %v2683, 2
          %v2685 = vadd.f32 %v2683, %v2684
          %v2686 = vrot.slane %v2685, 1
          %v2687 = vadd.f32 %v2685, %v2686
          %v2688 = vadd.f32 %v2636, %v2637
          %v2689 = vrot.slane %v2688, 4
          %v2690 = vadd.f32 %v2688, %v2689
          %v2691 = vrot.slane %v2690, 2
          %v2692 = vadd.f32 %v2690, %v2691
          %v2693 = vrot.slane %v2692, 1
          %v2694 = vadd.f32 %v2692, %v2693
          %v2695 = vadd.f32 %v2638, %v2639
          %v2696 = vrot.slane %v2695, 4
          %v2697 = vadd.f32 %v2695, %v2696
          %v2698 = vrot.slane %v2697, 2
          %v2699 = vadd.f32 %v2697, %v2698
          %v2700 = vrot.slane %v2699, 1
          %v2701 = vadd.f32 %v2699, %v2700
          %v2702 = vadd.f32 %v2640, %v2641
          %v2703 = vrot.slane %v2702, 4
          %v2704 = vadd.f32 %v2702, %v2703
          %v2705 = vrot.slane %v2704, 2
          %v2706 = vadd.f32 %v2704, %v2705
          %v2707 = vrot.slane %v2706, 1
          %v2708 = vadd.f32 %v2706, %v2707
          %v2709 = vadd.f32 %v2642, %v2643
          %v2710 = vrot.slane %v2709, 4
          %v2711 = vadd.f32 %v2709, %v2710
          %v2712 = vrot.slane %v2711, 2
          %v2713 = vadd.f32 %v2711, %v2712
          %v2714 = vrot.slane %v2713, 1
          %v2715 = vadd.f32 %v2713, %v2714
          %v2716 = vadd.f32 %v2644, %v2645
          %v2717 = vrot.slane %v2716, 4
          %v2718 = vadd.f32 %v2716, %v2717
          %v2719 = vrot.slane %v2718, 2
          %v2720 = vadd.f32 %v2718, %v2719
          %v2721 = vrot.slane %v2720, 1
          %v2722 = vadd.f32 %v2720, %v2721
          %v2723 = vadd.f32 %v2646, %v2647
          %v2724 = vrot.slane %v2723, 4
          %v2725 = vadd.f32 %v2723, %v2724
          %v2726 = vrot.slane %v2725, 2
          %v2727 = vadd.f32 %v2725, %v2726
          %v2728 = vrot.slane %v2727, 1
          %v2729 = vadd.f32 %v2727, %v2728
          %v2730 = vadd.f32 %v2648, %v2649
          %v2731 = vrot.slane %v2730, 4
          %v2732 = vadd.f32 %v2730, %v2731
          %v2733 = vrot.slane %v2732, 2
          %v2734 = vadd.f32 %v2732, %v2733
          %v2735 = vrot.slane %v2734, 1
          %v2736 = vadd.f32 %v2734, %v2735
          %v2737 = vadd.f32 %v2650, %v2651
          %v2738 = vrot.slane %v2737, 4
          %v2739 = vadd.f32 %v2737, %v2738
          %v2740 = vrot.slane %v2739, 2
          %v2741 = vadd.f32 %v2739, %v2740
          %v2742 = vrot.slane %v2741, 1
          %v2743 = vadd.f32 %v2741, %v2742
          %v2744 = vadd.f32 %v2652, %v2653
          %v2745 = vrot.slane %v2744, 4
          %v2746 = vadd.f32 %v2744, %v2745
          %v2747 = vrot.slane %v2746, 2
          %v2748 = vadd.f32 %v2746, %v2747
          %v2749 = vrot.slane %v2748, 1
          %v2750 = vadd.f32 %v2748, %v2749
          %v2751 = vadd.f32 %v2654, %v2655
          %v2752 = vrot.slane %v2751, 4
          %v2753 = vadd.f32 %v2751, %v2752
          %v2754 = vrot.slane %v2753, 2
          %v2755 = vadd.f32 %v2753, %v2754
          %v2756 = vrot.slane %v2755, 1
          %v2757 = vadd.f32 %v2755, %v2756
          %v2758 = vadd.f32 %v2656, %v2657
          %v2759 = vrot.slane %v2758, 4
          %v2760 = vadd.f32 %v2758, %v2759
          %v2761 = vrot.slane %v2760, 2
          %v2762 = vadd.f32 %v2760, %v2761
          %v2763 = vrot.slane %v2762, 1
          %v2764 = vadd.f32 %v2762, %v2763
          %v2765 = vadd.f32 %v2658, %v2659
          %v2766 = vrot.slane %v2765, 4
          %v2767 = vadd.f32 %v2765, %v2766
          %v2768 = vrot.slane %v2767, 2
          %v2769 = vadd.f32 %v2767, %v2768
          %v2770 = vrot.slane %v2769, 1
          %v2771 = vadd.f32 %v2769, %v2770
          %v2772 = vrcp.pop 16.0
          %v2773 = vmul.f32 16.0, %v2772
          %v2774 = vsub.f32 1.0, %v2773
          %v2775 = vmul.f32 %v2772, %v2774
          %v2776 = vadd.f32 %v2772, %v2775
          %vm2777 = vweird.f32 %v2772
          %v2778 = vsel %vm2777, %v2772, %v2776
          %v2779 = vmul.f32 %v2666, %v2778
          %v2780 = vmul.f32 %v2673, %v2778
          %v2781 = vmul.f32 %v2680, %v2778
          %v2782 = vmul.f32 %v2687, %v2778
          %v2783 = vmul.f32 %v2694, %v2778
          %v2784 = vmul.f32 %v2701, %v2778
          %v2785 = vmul.f32 %v2708, %v2778
          %v2786 = vmul.f32 %v2715, %v2778
          %v2787 = vmul.f32 %v2722, %v2778
          %v2788 = vmul.f32 %v2729, %v2778
          %v2789 = vmul.f32 %v2736, %v2778
          %v2790 = vmul.f32 %v2743, %v2778
          %v2791 = vmul.f32 %v2750, %v2778
          %v2792 = vmul.f32 %v2757, %v2778
          %v2793 = vmul.f32 %v2764, %v2778
          %v2794 = vmul.f32 %v2771, %v2778
          %v2795 = vld [vmem:[%s5] sm:$0xff]
          %v2796 = vld [vmem:[%s5 + $0x8] sm:$0xff]
          %v2799 = vrot.slane %v2795, 1
          %v2800 = vrot.slane %v2795, 2
          %v2801 = vrot.slane %v2795, 3
          %v2802 = vrot.slane %v2795, 4
          %v2803 = vrot.slane %v2795, 5
          %v2804 = vrot.slane %v2795, 6
          %v2805 = vrot.slane %v2795, 7
          %v2806 = vrot.slane %v2796, 1
          %v2807 = vrot.slane %v2796, 2
          %v2808 = vrot.slane %v2796, 3
          %v2809 = vrot.slane %v2796, 4
          %v2810 = vrot.slane %v2796, 5
          %v2811 = vrot.slane %v2796, 6
          %v2812 = vrot.slane %v2796, 7
          %v2829 = vadd.f32 %v2779, %v2795
          %v2830 = vadd.f32 %v2780, %v2799
          %v2831 = vadd.f32 %v2781, %v2800
          %v2832 = vadd.f32 %v2782, %v2801
          %v2833 = vadd.f32 %v2783, %v2802
          %v2834 = vadd.f32 %v2784, %v2803
          %v2835 = vadd.f32 %v2785, %v2804
          %v2836 = vadd.f32 %v2786, %v2805
          %v2837 = vadd.f32 %v2787, %v2796
          %v2838 = vadd.f32 %v2788, %v2806
          %v2839 = vadd.f32 %v2789, %v2807
          %v2840 = vadd.f32 %v2790, %v2808
          %v2841 = vadd.f32 %v2791, %v2809
          %v2842 = vadd.f32 %v2792, %v2810
          %v2843 = vadd.f32 %v2793, %v2811
          %v2844 = vadd.f32 %v2794, %v2812
          %v2861 = vrot.slane %v2830, 7
          %vm2862 = vcmask 1041409
          %v2863 = vsel %vm2862, %v2861, %v2829
          %v2864 = vrot.slane %v2831, 6
          %vm2865 = vcmask 1042434
          %v2866 = vsel %vm2865, %v2864, %v2863
          %v2867 = vrot.slane %v2832, 5
          %vm2868 = vcmask 1043459
          %v2869 = vsel %vm2868, %v2867, %v2866
          %v2870 = vrot.slane %v2833, 4
          %vm2871 = vcmask 1044484
          %v2872 = vsel %vm2871, %v2870, %v2869
          %v2873 = vrot.slane %v2834, 3
          %vm2874 = vcmask 1045509
          %v2875 = vsel %vm2874, %v2873, %v2872
          %v2876 = vrot.slane %v2835, 2
          %vm2877 = vcmask 1046534
          %v2878 = vsel %vm2877, %v2876, %v2875
          %v2879 = vrot.slane %v2836, 1
          %vm2880 = vcmask 1047559
          %v2881 = vsel %vm2880, %v2879, %v2878
          %v2882 = vrot.slane %v2838, 7
          %v2883 = vsel %vm2862, %v2882, %v2837
          %v2884 = vrot.slane %v2839, 6
          %v2885 = vsel %vm2865, %v2884, %v2883
          %v2886 = vrot.slane %v2840, 5
          %v2887 = vsel %vm2868, %v2886, %v2885
          %v2888 = vrot.slane %v2841, 4
          %v2889 = vsel %vm2871, %v2888, %v2887
          %v2890 = vrot.slane %v2842, 3
          %v2891 = vsel %vm2874, %v2890, %v2889
          %v2892 = vrot.slane %v2843, 2
          %v2893 = vsel %vm2877, %v2892, %v2891
          %v2894 = vrot.slane %v2844, 1
          %v2895 = vsel %vm2880, %v2894, %v2893
          %2898 = vst [vmem:[#allocation2] sm:$0xff] %v2881
          %2899 = vst [vmem:[#allocation2 + $0x8] sm:$0xff] %v2895
        $region116: #{forward.1} parent=79 // pred_fallthru
          _
        %v2900 = vld [vmem:[#allocation2] sm:$0xff]
        %v2901 = vld [vmem:[#allocation2 + $0x8] sm:$0xff]
        %v2902 = vld [vmem:[%s765] sm:$0xff]
        %v2903 = vld [vmem:[%s765 + $0x8] sm:$0x1]
        %v2904 = vld [vmem:[%s630] sm:$0xf]
        %v2905 = vld [vmem:[%s630 + $0x4] sm:$0xf]
        %v2906 = vld [vmem:[%s630 + $0x8] sm:$0xf]
        %v2907 = vld [vmem:[%s630 + $0xc] sm:$0xf]
        %v2908 = vld [vmem:[%s630 + $0x10] sm:$0xf]
        %v2909 = vld [vmem:[%s630 + $0x14] sm:$0xf]
        %v2910 = vld [vmem:[%s630 + $0x18] sm:$0xf]
        %v2911 = vld [vmem:[%s630 + $0x1c] sm:$0xf]
        %v2912 = vld [vmem:[%s630 + $0x20] sm:$0xf]
        %v2913 = vld [vmem:[%s630 + $0x24] sm:$0xf]
        %v2914 = vld [vmem:[%s630 + $0x28] sm:$0xf]
        %v2915 = vld [vmem:[%s630 + $0x2c] sm:$0xf]
        %v2916 = vld [vmem:[%s630 + $0x30] sm:$0xf]
        %v2917 = vld [vmem:[%s630 + $0x34] sm:$0xf]
        %v2918 = vld [vmem:[%s630 + $0x38] sm:$0xf]
        %v2919 = vld [vmem:[%s630 + $0x3c] sm:$0xf]
        %v2920 = vunpack.c.l.bf16 %v2904
        %v2921 = vunpack.c.l.bf16 %v2905
        %v2922 = vunpack.c.l.bf16 %v2906
        %v2923 = vunpack.c.l.bf16 %v2907
        %v2924 = vunpack.c.l.bf16 %v2908
        %v2925 = vunpack.c.l.bf16 %v2909
        %v2926 = vunpack.c.l.bf16 %v2910
        %v2927 = vunpack.c.l.bf16 %v2911
        %v2928 = vunpack.c.l.bf16 %v2912
        %v2929 = vunpack.c.l.bf16 %v2913
        %v2930 = vunpack.c.l.bf16 %v2914
        %v2931 = vunpack.c.l.bf16 %v2915
        %v2932 = vunpack.c.l.bf16 %v2916
        %v2933 = vunpack.c.l.bf16 %v2917
        %v2934 = vunpack.c.l.bf16 %v2918
        %v2935 = vunpack.c.l.bf16 %v2919
        %v2936 = vld [vmem:[%s640] sm:$0xf]
        %v2937 = vld [vmem:[%s640 + $0x4] sm:$0xf]
        %v2938 = vld [vmem:[%s640 + $0x8] sm:$0xf]
        %v2939 = vld [vmem:[%s640 + $0xc] sm:$0xf]
        %v2940 = vld [vmem:[%s640 + $0x10] sm:$0xf]
        %v2941 = vld [vmem:[%s640 + $0x14] sm:$0xf]
        %v2942 = vld [vmem:[%s640 + $0x18] sm:$0xf]
        %v2943 = vld [vmem:[%s640 + $0x1c] sm:$0xf]
        %v2944 = vld [vmem:[%s640 + $0x20] sm:$0xf]
        %v2945 = vld [vmem:[%s640 + $0x24] sm:$0xf]
        %v2946 = vld [vmem:[%s640 + $0x28] sm:$0xf]
        %v2947 = vld [vmem:[%s640 + $0x2c] sm:$0xf]
        %v2948 = vld [vmem:[%s640 + $0x30] sm:$0xf]
        %v2949 = vld [vmem:[%s640 + $0x34] sm:$0xf]
        %v2950 = vld [vmem:[%s640 + $0x38] sm:$0xf]
        %v2951 = vld [vmem:[%s640 + $0x3c] sm:$0xf]
        %v2952 = vunpack.c.l.bf16 %v2936
        %v2953 = vunpack.c.l.bf16 %v2937
        %v2954 = vunpack.c.l.bf16 %v2938
        %v2955 = vunpack.c.l.bf16 %v2939
        %v2956 = vunpack.c.l.bf16 %v2940
        %v2957 = vunpack.c.l.bf16 %v2941
        %v2958 = vunpack.c.l.bf16 %v2942
        %v2959 = vunpack.c.l.bf16 %v2943
        %v2960 = vunpack.c.l.bf16 %v2944
        %v2961 = vunpack.c.l.bf16 %v2945
        %v2962 = vunpack.c.l.bf16 %v2946
        %v2963 = vunpack.c.l.bf16 %v2947
        %v2964 = vunpack.c.l.bf16 %v2948
        %v2965 = vunpack.c.l.bf16 %v2949
        %v2966 = vunpack.c.l.bf16 %v2950
        %v2967 = vunpack.c.l.bf16 %v2951
        %v2968 = vld [vmem:[%s650] sm:$0xf]
        %v2969 = vld [vmem:[%s650 + $0x4] sm:$0xf]
        %v2970 = vld [vmem:[%s650 + $0x8] sm:$0xf]
        %v2971 = vld [vmem:[%s650 + $0xc] sm:$0xf]
        %v2972 = vld [vmem:[%s650 + $0x10] sm:$0xf]
        %v2973 = vld [vmem:[%s650 + $0x14] sm:$0xf]
        %v2974 = vld [vmem:[%s650 + $0x18] sm:$0xf]
        %v2975 = vld [vmem:[%s650 + $0x1c] sm:$0xf]
        %v2976 = vld [vmem:[%s650 + $0x20] sm:$0xf]
        %v2977 = vld [vmem:[%s650 + $0x24] sm:$0xf]
        %v2978 = vld [vmem:[%s650 + $0x28] sm:$0xf]
        %v2979 = vld [vmem:[%s650 + $0x2c] sm:$0xf]
        %v2980 = vld [vmem:[%s650 + $0x30] sm:$0xf]
        %v2981 = vld [vmem:[%s650 + $0x34] sm:$0xf]
        %v2982 = vld [vmem:[%s650 + $0x38] sm:$0xf]
        %v2983 = vld [vmem:[%s650 + $0x3c] sm:$0xf]
        %v2984 = vunpack.c.l.bf16 %v2968
        %v2985 = vunpack.c.l.bf16 %v2969
        %v2986 = vunpack.c.l.bf16 %v2970
        %v2987 = vunpack.c.l.bf16 %v2971
        %v2988 = vunpack.c.l.bf16 %v2972
        %v2989 = vunpack.c.l.bf16 %v2973
        %v2990 = vunpack.c.l.bf16 %v2974
        %v2991 = vunpack.c.l.bf16 %v2975
        %v2992 = vunpack.c.l.bf16 %v2976
        %v2993 = vunpack.c.l.bf16 %v2977
        %v2994 = vunpack.c.l.bf16 %v2978
        %v2995 = vunpack.c.l.bf16 %v2979
        %v2996 = vunpack.c.l.bf16 %v2980
        %v2997 = vunpack.c.l.bf16 %v2981
        %v2998 = vunpack.c.l.bf16 %v2982
        %v2999 = vunpack.c.l.bf16 %v2983
        %v3000 = vld [vmem:[%s660] sm:$0xf]
        %v3001 = vld [vmem:[%s660 + $0x4] sm:$0xf]
        %v3002 = vld [vmem:[%s660 + $0x8] sm:$0xf]
        %v3003 = vld [vmem:[%s660 + $0xc] sm:$0xf]
        %v3004 = vld [vmem:[%s660 + $0x10] sm:$0xf]
        %v3005 = vld [vmem:[%s660 + $0x14] sm:$0xf]
        %v3006 = vld [vmem:[%s660 + $0x18] sm:$0xf]
        %v3007 = vld [vmem:[%s660 + $0x1c] sm:$0xf]
        %v3008 = vld [vmem:[%s660 + $0x20] sm:$0xf]
        %v3009 = vld [vmem:[%s660 + $0x24] sm:$0xf]
        %v3010 = vld [vmem:[%s660 + $0x28] sm:$0xf]
        %v3011 = vld [vmem:[%s660 + $0x2c] sm:$0xf]
        %v3012 = vld [vmem:[%s660 + $0x30] sm:$0xf]
        %v3013 = vld [vmem:[%s660 + $0x34] sm:$0xf]
        %v3014 = vld [vmem:[%s660 + $0x38] sm:$0xf]
        %v3015 = vld [vmem:[%s660 + $0x3c] sm:$0xf]
        %v3016 = vunpack.c.l.bf16 %v3000
        %v3017 = vunpack.c.l.bf16 %v3001
        %v3018 = vunpack.c.l.bf16 %v3002
        %v3019 = vunpack.c.l.bf16 %v3003
        %v3020 = vunpack.c.l.bf16 %v3004
        %v3021 = vunpack.c.l.bf16 %v3005
        %v3022 = vunpack.c.l.bf16 %v3006
        %v3023 = vunpack.c.l.bf16 %v3007
        %v3024 = vunpack.c.l.bf16 %v3008
        %v3025 = vunpack.c.l.bf16 %v3009
        %v3026 = vunpack.c.l.bf16 %v3010
        %v3027 = vunpack.c.l.bf16 %v3011
        %v3028 = vunpack.c.l.bf16 %v3012
        %v3029 = vunpack.c.l.bf16 %v3013
        %v3030 = vunpack.c.l.bf16 %v3014
        %v3031 = vunpack.c.l.bf16 %v3015
        %v3032 = vperm.slane %v2902, 0
        %3033 = vmatpush.msra.mxu0 %v2935
        %3034 = vmatpush.msra.mxu0 %v2934
        %3035 = vmatpush.msra.mxu0 %v2933
        %3036 = vmatpush.msra.mxu0 %v2932
        %3037 = vmatpush.msra.mxu0 %v2931
        %3038 = vmatpush.msra.mxu0 %v2930
        %3039 = vmatpush.msra.mxu0 %v2929
        %3040 = vmatpush.msra.mxu0 %v2928
        %3041 = vmatpush.msra.mxu0 %v2927
        %3042 = vmatpush.msra.mxu0 %v2926
        %3043 = vmatpush.msra.mxu0 %v2925
        %3044 = vmatpush.msra.mxu0 %v2924
        %3045 = vmatpush.msra.mxu0 %v2923
        %3046 = vmatpush.msra.mxu0 %v2922
        %3047 = vmatpush.msra.mxu0 %v2921
        %3048 = vmatpush.msra.mxu0 %v2920
        %3049 = vmatmul.f32.gmra.mxu0 %v2900
        %v3050 = vpop.f32.mrf.mxu0
        %v3051 = vadd.f32 %v3032, %v3050
        %3052 = vmatmul.f32.gmra.mxu0 %v2901
        %v3053 = vpop.f32.mrf.mxu0
        %v3054 = vadd.f32 %v3032, %v3053
        %3055 = vdwg.mxu0
        %v3056 = vperm.slane %v2902, 1
        %3057 = vmatpush.msra.mxu0 %v2967
        %3058 = vmatpush.msra.mxu0 %v2966
        %3059 = vmatpush.msra.mxu0 %v2965
        %3060 = vmatpush.msra.mxu0 %v2964
        %3061 = vmatpush.msra.mxu0 %v2963
        %3062 = vmatpush.msra.mxu0 %v2962
        %3063 = vmatpush.msra.mxu0 %v2961
        %3064 = vmatpush.msra.mxu0 %v2960
        %3065 = vmatpush.msra.mxu0 %v2959
        %3066 = vmatpush.msra.mxu0 %v2958
        %3067 = vmatpush.msra.mxu0 %v2957
        %3068 = vmatpush.msra.mxu0 %v2956
        %3069 = vmatpush.msra.mxu0 %v2955
        %3070 = vmatpush.msra.mxu0 %v2954
        %3071 = vmatpush.msra.mxu0 %v2953
        %3072 = vmatpush.msra.mxu0 %v2952
        %3073 = vmatmul.f32.gmra.mxu0 %v2900
        %v3074 = vpop.f32.mrf.mxu0
        %v3075 = vadd.f32 %v3056, %v3074
        %3076 = vmatmul.f32.gmra.mxu0 %v2901
        %v3077 = vpop.f32.mrf.mxu0
        %v3078 = vadd.f32 %v3056, %v3077
        %3079 = vdwg.mxu0
        %v3080 = vperm.slane %v2902, 2
        %3081 = vmatpush.msra.mxu0 %v2999
        %3082 = vmatpush.msra.mxu0 %v2998
        %3083 = vmatpush.msra.mxu0 %v2997
        %3084 = vmatpush.msra.mxu0 %v2996
        %3085 = vmatpush.msra.mxu0 %v2995
        %3086 = vmatpush.msra.mxu0 %v2994
        %3087 = vmatpush.msra.mxu0 %v2993
        %3088 = vmatpush.msra.mxu0 %v2992
        %3089 = vmatpush.msra.mxu0 %v2991
        %3090 = vmatpush.msra.mxu0 %v2990
        %3091 = vmatpush.msra.mxu0 %v2989
        %3092 = vmatpush.msra.mxu0 %v2988
        %3093 = vmatpush.msra.mxu0 %v2987
        %3094 = vmatpush.msra.mxu0 %v2986
        %3095 = vmatpush.msra.mxu0 %v2985
        %3096 = vmatpush.msra.mxu0 %v2984
        %3097 = vmatmul.f32.gmra.mxu0 %v2900
        %v3098 = vpop.f32.mrf.mxu0
        %v3099 = vadd.f32 %v3080, %v3098
        %3100 = vmatmul.f32.gmra.mxu0 %v2901
        %v3101 = vpop.f32.mrf.mxu0
        %v3102 = vadd.f32 %v3080, %v3101
        %3103 = vdwg.mxu0
        %3106 = vrot.lane.b32.xlu0 %v3051, 96
        %v3107 = vpop.permute.xlu0 %3106
        %3108 = vrot.lane.b32.xlu0 %v3054, 96
        %v3109 = vpop.permute.xlu0 %3108
        %3110 = vrot.lane.b32.xlu0 %v3051, 64
        %v3111 = vpop.permute.xlu0 %3110
        %3112 = vrot.lane.b32.xlu0 %v3054, 64
        %v3113 = vpop.permute.xlu0 %3112
        %3114 = vrot.lane.b32.xlu0 %v3051, 32
        %v3115 = vpop.permute.xlu0 %3114
        %3116 = vrot.lane.b32.xlu0 %v3054, 32
        %v3117 = vpop.permute.xlu0 %3116
        %3120 = vrot.lane.b32.xlu0 %v3075, 96
        %v3121 = vpop.permute.xlu0 %3120
        %3122 = vrot.lane.b32.xlu0 %v3078, 96
        %v3123 = vpop.permute.xlu0 %3122
        %3124 = vrot.lane.b32.xlu0 %v3075, 64
        %v3125 = vpop.permute.xlu0 %3124
        %3126 = vrot.lane.b32.xlu0 %v3078, 64
        %v3127 = vpop.permute.xlu0 %3126
        %3128 = vrot.lane.b32.xlu0 %v3075, 32
        %v3129 = vpop.permute.xlu0 %3128
        %3130 = vrot.lane.b32.xlu0 %v3078, 32
        %v3131 = vpop.permute.xlu0 %3130
        %3134 = vrot.lane.b32.xlu0 %v3099, 96
        %v3135 = vpop.permute.xlu0 %3134
        %3136 = vrot.lane.b32.xlu0 %v3102, 96
        %v3137 = vpop.permute.xlu0 %3136
        %3140 = vrot.lane.b32.xlu0 %v3099, 64
        %v3141 = vpop.permute.xlu0 %3140
        %3142 = vrot.lane.b32.xlu0 %v3102, 64
        %v3143 = vpop.permute.xlu0 %3142
        %3146 = vrot.lane.b32.xlu0 %v3099, 32
        %v3147 = vpop.permute.xlu0 %3146
        %3148 = vrot.lane.b32.xlu0 %v3102, 32
        %v3149 = vpop.permute.xlu0 %3148
        %vm3152 = vcmask 261120
        %v3153 = vsel %vm3152, %v3051, 0
        %v3155 = vsel %vm3152, %v3075, 0
        %3157 = vmatpush.xpose.msra.mxu0 0.0
        %3158 = vmatpush.xpose.msra.mxu0 0.0
        %3159 = vmatpush.xpose.msra.mxu0 0.0
        %3160 = vmatpush.xpose.msra.mxu0 0.0
        %3161 = vmatpush.xpose.msra.mxu0 0.0
        %3162 = vmatpush.xpose.msra.mxu0 0.0
        %3163 = vmatpush.xpose.msra.mxu0 0.0
        %3164 = vmatpush.xpose.msra.mxu0 0.0
        %3165 = vmatpush.xpose.msra.mxu0 0.0
        %3166 = vmatpush.xpose.msra.mxu0 0.0
        %3167 = vmatpush.xpose.msra.mxu0 0.0
        %3168 = vmatpush.xpose.msra.mxu0 0.0
        %3169 = vmatpush.xpose.msra.mxu0 0.0
        %3170 = vmatpush.xpose.msra.mxu0 0.0
        %3171 = vmatpush.xpose.msra.mxu0 0.0
        %3172 = vmatpush.xpose.msra.mxu0 %v3155
        %3173 = vmatmul.f32.gmra.mxu0 %v3153
        %v3174 = vpop.f32.mrf.mxu0
        %v3175 = vadd.f32 0.0, %v3174
        %3176 = vdwg.mxu0
        %v3177 = vsel %vm3152, %v3054, 0
        %v3179 = vsel %vm3152, %v3078, 0
        %3181 = vmatpush.xpose.msra.mxu0 0.0
        %3182 = vmatpush.xpose.msra.mxu0 0.0
        %3183 = vmatpush.xpose.msra.mxu0 0.0
        %3184 = vmatpush.xpose.msra.mxu0 0.0
        %3185 = vmatpush.xpose.msra.mxu0 0.0
        %3186 = vmatpush.xpose.msra.mxu0 0.0
        %3187 = vmatpush.xpose.msra.mxu0 0.0
        %3188 = vmatpush.xpose.msra.mxu0 0.0
        %3189 = vmatpush.xpose.msra.mxu0 0.0
        %3190 = vmatpush.xpose.msra.mxu0 0.0
        %3191 = vmatpush.xpose.msra.mxu0 0.0
        %3192 = vmatpush.xpose.msra.mxu0 0.0
        %3193 = vmatpush.xpose.msra.mxu0 0.0
        %3194 = vmatpush.xpose.msra.mxu0 0.0
        %3195 = vmatpush.xpose.msra.mxu0 0.0
        %3196 = vmatpush.xpose.msra.mxu0 %v3179
        %3197 = vmatmul.f32.gmra.mxu0 %v3177
        %v3198 = vpop.f32.mrf.mxu0
        %v3199 = vadd.f32 0.0, %v3198
        %3200 = vdwg.mxu0
        %v3201 = vsel %vm3152, %v3107, 0
        %v3203 = vsel %vm3152, %v3121, 0
        %3205 = vmatpush.xpose.msra.mxu0 0.0
        %3206 = vmatpush.xpose.msra.mxu0 0.0
        %3207 = vmatpush.xpose.msra.mxu0 0.0
        %3208 = vmatpush.xpose.msra.mxu0 0.0
        %3209 = vmatpush.xpose.msra.mxu0 0.0
        %3210 = vmatpush.xpose.msra.mxu0 0.0
        %3211 = vmatpush.xpose.msra.mxu0 0.0
        %3212 = vmatpush.xpose.msra.mxu0 0.0
        %3213 = vmatpush.xpose.msra.mxu0 0.0
        %3214 = vmatpush.xpose.msra.mxu0 0.0
        %3215 = vmatpush.xpose.msra.mxu0 0.0
        %3216 = vmatpush.xpose.msra.mxu0 0.0
        %3217 = vmatpush.xpose.msra.mxu0 0.0
        %3218 = vmatpush.xpose.msra.mxu0 0.0
        %3219 = vmatpush.xpose.msra.mxu0 0.0
        %3220 = vmatpush.xpose.msra.mxu0 %v3203
        %3221 = vmatmul.f32.gmra.mxu0 %v3201
        %v3222 = vpop.f32.mrf.mxu0
        %v3223 = vadd.f32 0.0, %v3222
        %3224 = vdwg.mxu0
        %v3225 = vsel %vm3152, %v3109, 0
        %v3227 = vsel %vm3152, %v3123, 0
        %3229 = vmatpush.xpose.msra.mxu0 0.0
        %3230 = vmatpush.xpose.msra.mxu0 0.0
        %3231 = vmatpush.xpose.msra.mxu0 0.0
        %3232 = vmatpush.xpose.msra.mxu0 0.0
        %3233 = vmatpush.xpose.msra.mxu0 0.0
        %3234 = vmatpush.xpose.msra.mxu0 0.0
        %3235 = vmatpush.xpose.msra.mxu0 0.0
        %3236 = vmatpush.xpose.msra.mxu0 0.0
        %3237 = vmatpush.xpose.msra.mxu0 0.0
        %3238 = vmatpush.xpose.msra.mxu0 0.0
        %3239 = vmatpush.xpose.msra.mxu0 0.0
        %3240 = vmatpush.xpose.msra.mxu0 0.0
        %3241 = vmatpush.xpose.msra.mxu0 0.0
        %3242 = vmatpush.xpose.msra.mxu0 0.0
        %3243 = vmatpush.xpose.msra.mxu0 0.0
        %3244 = vmatpush.xpose.msra.mxu0 %v3227
        %3245 = vmatmul.f32.gmra.mxu0 %v3225
        %v3246 = vpop.f32.mrf.mxu0
        %v3247 = vadd.f32 0.0, %v3246
        %3248 = vdwg.mxu0
        %v3249 = vsel %vm3152, %v3111, 0
        %v3251 = vsel %vm3152, %v3125, 0
        %3253 = vmatpush.xpose.msra.mxu0 0.0
        %3254 = vmatpush.xpose.msra.mxu0 0.0
        %3255 = vmatpush.xpose.msra.mxu0 0.0
        %3256 = vmatpush.xpose.msra.mxu0 0.0
        %3257 = vmatpush.xpose.msra.mxu0 0.0
        %3258 = vmatpush.xpose.msra.mxu0 0.0
        %3259 = vmatpush.xpose.msra.mxu0 0.0
        %3260 = vmatpush.xpose.msra.mxu0 0.0
        %3261 = vmatpush.xpose.msra.mxu0 0.0
        %3262 = vmatpush.xpose.msra.mxu0 0.0
        %3263 = vmatpush.xpose.msra.mxu0 0.0
        %3264 = vmatpush.xpose.msra.mxu0 0.0
        %3265 = vmatpush.xpose.msra.mxu0 0.0
        %3266 = vmatpush.xpose.msra.mxu0 0.0
        %3267 = vmatpush.xpose.msra.mxu0 0.0
        %3268 = vmatpush.xpose.msra.mxu0 %v3251
        %3269 = vmatmul.f32.gmra.mxu0 %v3249
        %v3270 = vpop.f32.mrf.mxu0
        %v3271 = vadd.f32 0.0, %v3270
        %3272 = vdwg.mxu0
        %v3273 = vsel %vm3152, %v3113, 0
        %v3275 = vsel %vm3152, %v3127, 0
        %3277 = vmatpush.xpose.msra.mxu0 0.0
        %3278 = vmatpush.xpose.msra.mxu0 0.0
        %3279 = vmatpush.xpose.msra.mxu0 0.0
        %3280 = vmatpush.xpose.msra.mxu0 0.0
        %3281 = vmatpush.xpose.msra.mxu0 0.0
        %3282 = vmatpush.xpose.msra.mxu0 0.0
        %3283 = vmatpush.xpose.msra.mxu0 0.0
        %3284 = vmatpush.xpose.msra.mxu0 0.0
        %3285 = vmatpush.xpose.msra.mxu0 0.0
        %3286 = vmatpush.xpose.msra.mxu0 0.0
        %3287 = vmatpush.xpose.msra.mxu0 0.0
        %3288 = vmatpush.xpose.msra.mxu0 0.0
        %3289 = vmatpush.xpose.msra.mxu0 0.0
        %3290 = vmatpush.xpose.msra.mxu0 0.0
        %3291 = vmatpush.xpose.msra.mxu0 0.0
        %3292 = vmatpush.xpose.msra.mxu0 %v3275
        %3293 = vmatmul.f32.gmra.mxu0 %v3273
        %v3294 = vpop.f32.mrf.mxu0
        %v3295 = vadd.f32 0.0, %v3294
        %3296 = vdwg.mxu0
        %v3297 = vsel %vm3152, %v3115, 0
        %v3299 = vsel %vm3152, %v3129, 0
        %3301 = vmatpush.xpose.msra.mxu0 0.0
        %3302 = vmatpush.xpose.msra.mxu0 0.0
        %3303 = vmatpush.xpose.msra.mxu0 0.0
        %3304 = vmatpush.xpose.msra.mxu0 0.0
        %3305 = vmatpush.xpose.msra.mxu0 0.0
        %3306 = vmatpush.xpose.msra.mxu0 0.0
        %3307 = vmatpush.xpose.msra.mxu0 0.0
        %3308 = vmatpush.xpose.msra.mxu0 0.0
        %3309 = vmatpush.xpose.msra.mxu0 0.0
        %3310 = vmatpush.xpose.msra.mxu0 0.0
        %3311 = vmatpush.xpose.msra.mxu0 0.0
        %3312 = vmatpush.xpose.msra.mxu0 0.0
        %3313 = vmatpush.xpose.msra.mxu0 0.0
        %3314 = vmatpush.xpose.msra.mxu0 0.0
        %3315 = vmatpush.xpose.msra.mxu0 0.0
        %3316 = vmatpush.xpose.msra.mxu0 %v3299
        %3317 = vmatmul.f32.gmra.mxu0 %v3297
        %v3318 = vpop.f32.mrf.mxu0
        %v3319 = vadd.f32 0.0, %v3318
        %3320 = vdwg.mxu0
        %v3321 = vsel %vm3152, %v3117, 0
        %v3323 = vsel %vm3152, %v3131, 0
        %3325 = vmatpush.xpose.msra.mxu0 0.0
        %3326 = vmatpush.xpose.msra.mxu0 0.0
        %3327 = vmatpush.xpose.msra.mxu0 0.0
        %3328 = vmatpush.xpose.msra.mxu0 0.0
        %3329 = vmatpush.xpose.msra.mxu0 0.0
        %3330 = vmatpush.xpose.msra.mxu0 0.0
        %3331 = vmatpush.xpose.msra.mxu0 0.0
        %3332 = vmatpush.xpose.msra.mxu0 0.0
        %3333 = vmatpush.xpose.msra.mxu0 0.0
        %3334 = vmatpush.xpose.msra.mxu0 0.0
        %3335 = vmatpush.xpose.msra.mxu0 0.0
        %3336 = vmatpush.xpose.msra.mxu0 0.0
        %3337 = vmatpush.xpose.msra.mxu0 0.0
        %3338 = vmatpush.xpose.msra.mxu0 0.0
        %3339 = vmatpush.xpose.msra.mxu0 0.0
        %3340 = vmatpush.xpose.msra.mxu0 %v3323
        %3341 = vmatmul.f32.gmra.mxu0 %v3321
        %v3342 = vpop.f32.mrf.mxu0
        %v3343 = vadd.f32 0.0, %v3342
        %3344 = vdwg.mxu0
        %v3345 = vmul.f32 %v3175, 0.17677669
        %v3346 = vmul.f32 %v3199, 0.17677669
        %v3347 = vmul.f32 %v3223, 0.17677669
        %v3348 = vmul.f32 %v3247, 0.17677669
        %v3349 = vmul.f32 %v3271, 0.17677669
        %v3350 = vmul.f32 %v3295, 0.17677669
        %v3351 = vmul.f32 %v3319, 0.17677669
        %v3352 = vmul.f32 %v3343, 0.17677669
        %vm3353 = vcmask 64512
        %v3354 = vsel %vm3353, %v3345, -inf
        %3355 = vmax.xlane.f32.xlu0 %v3354
        %v3356 = vpop.xlane.xlu0 %3355
        %v3357 = vsel %vm3353, %v3346, -inf
        %3358 = vmax.xlane.f32.xlu0 %v3357
        %v3359 = vpop.xlane.xlu0 %3358
        %v3360 = vsel %vm3353, %v3347, -inf
        %3361 = vmax.xlane.f32.xlu0 %v3360
        %v3362 = vpop.xlane.xlu0 %3361
        %v3363 = vsel %vm3353, %v3348, -inf
        %3364 = vmax.xlane.f32.xlu0 %v3363
        %v3365 = vpop.xlane.xlu0 %3364
        %v3366 = vsel %vm3353, %v3349, -inf
        %3367 = vmax.xlane.f32.xlu0 %v3366
        %v3368 = vpop.xlane.xlu0 %3367
        %v3369 = vsel %vm3353, %v3350, -inf
        %3370 = vmax.xlane.f32.xlu0 %v3369
        %v3371 = vpop.xlane.xlu0 %3370
        %v3372 = vsel %vm3353, %v3351, -inf
        %3373 = vmax.xlane.f32.xlu0 %v3372
        %v3374 = vpop.xlane.xlu0 %3373
        %v3375 = vsel %vm3353, %v3352, -inf
        %3376 = vmax.xlane.f32.xlu0 %v3375
        %v3377 = vpop.xlane.xlu0 %3376
        %v3378 = vsub.f32 %v3345, %v3356
        %v3379 = vsub.f32 %v3346, %v3359
        %v3380 = vsub.f32 %v3347, %v3362
        %v3381 = vsub.f32 %v3348, %v3365
        %v3382 = vsub.f32 %v3349, %v3368
        %v3383 = vsub.f32 %v3350, %v3371
        %v3384 = vsub.f32 %v3351, %v3374
        %v3385 = vsub.f32 %v3352, %v3377
        %v3386 = vmul.f32 %v3378, 1.442695
        %v3387 = vpow.pop %v3386
        %v3388 = vmul.f32 %v3379, 1.442695
        %v3389 = vpow.pop %v3388
        %v3390 = vmul.f32 %v3380, 1.442695
        %v3391 = vpow.pop %v3390
        %v3392 = vmul.f32 %v3381, 1.442695
        %v3393 = vpow.pop %v3392
        %v3394 = vmul.f32 %v3382, 1.442695
        %v3395 = vpow.pop %v3394
        %v3396 = vmul.f32 %v3383, 1.442695
        %v3397 = vpow.pop %v3396
        %v3398 = vmul.f32 %v3384, 1.442695
        %v3399 = vpow.pop %v3398
        %v3400 = vmul.f32 %v3385, 1.442695
        %v3401 = vpow.pop %v3400
        %v3402 = vsel %vm3353, %v3387, 0.0
        %3403 = vadd.xlane.f32.xlu0 %v3402
        %v3404 = vpop.xlane.xlu0 %3403
        %v3405 = vsel %vm3353, %v3389, 0.0
        %3406 = vadd.xlane.f32.xlu0 %v3405
        %v3407 = vpop.xlane.xlu0 %3406
        %v3408 = vsel %vm3353, %v3391, 0.0
        %3409 = vadd.xlane.f32.xlu0 %v3408
        %v3410 = vpop.xlane.xlu0 %3409
        %v3411 = vsel %vm3353, %v3393, 0.0
        %3412 = vadd.xlane.f32.xlu0 %v3411
        %v3413 = vpop.xlane.xlu0 %3412
        %v3414 = vsel %vm3353, %v3395, 0.0
        %3415 = vadd.xlane.f32.xlu0 %v3414
        %v3416 = vpop.xlane.xlu0 %3415
        %v3417 = vsel %vm3353, %v3397, 0.0
        %3418 = vadd.xlane.f32.xlu0 %v3417
        %v3419 = vpop.xlane.xlu0 %3418
        %v3420 = vsel %vm3353, %v3399, 0.0
        %3421 = vadd.xlane.f32.xlu0 %v3420
        %v3422 = vpop.xlane.xlu0 %3421
        %v3423 = vsel %vm3353, %v3401, 0.0
        %3424 = vadd.xlane.f32.xlu0 %v3423
        %v3425 = vpop.xlane.xlu0 %3424
        %v3426 = vrcp.pop %v3404
        %v3427 = vmul.f32 %v3404, %v3426
        %v3428 = vsub.f32 1.0, %v3427
        %v3429 = vmul.f32 %v3426, %v3428
        %v3430 = vadd.f32 %v3426, %v3429
        %vm3431 = vweird.f32 %v3404
        %vm3432 = vweird.f32 %v3426
        %vm3433 = vmor %vm3431, %vm3432
        %v3434 = vsel %vm3433, %v3426, %v3430
        %v3435 = vand.u32 2147483647, %v3404
        %vm3436 = vcmp.eq.f32.partialorder %v3435, 8.507059e+37
        %v3437 = vand.u32 %v3404, 2147483648
        %v3438 = vor.u32 1.1754944e-38, %v3437
        %v3439 = vsel %vm3436, %v3438, %v3434
        %v3440 = vrcp.pop %v3407
        %v3441 = vmul.f32 %v3407, %v3440
        %v3442 = vsub.f32 1.0, %v3441
        %v3443 = vmul.f32 %v3440, %v3442
        %v3444 = vadd.f32 %v3440, %v3443
        %vm3445 = vweird.f32 %v3407
        %vm3446 = vweird.f32 %v3440
        %vm3447 = vmor %vm3445, %vm3446
        %v3448 = vsel %vm3447, %v3440, %v3444
        %v3449 = vand.u32 2147483647, %v3407
        %vm3450 = vcmp.eq.f32.partialorder %v3449, 8.507059e+37
        %v3451 = vand.u32 %v3407, 2147483648
        %v3452 = vor.u32 1.1754944e-38, %v3451
        %v3453 = vsel %vm3450, %v3452, %v3448
        %v3454 = vrcp.pop %v3410
        %v3455 = vmul.f32 %v3410, %v3454
        %v3456 = vsub.f32 1.0, %v3455
        %v3457 = vmul.f32 %v3454, %v3456
        %v3458 = vadd.f32 %v3454, %v3457
        %vm3459 = vweird.f32 %v3410
        %vm3460 = vweird.f32 %v3454
        %vm3461 = vmor %vm3459, %vm3460
        %v3462 = vsel %vm3461, %v3454, %v3458
        %v3463 = vand.u32 2147483647, %v3410
        %vm3464 = vcmp.eq.f32.partialorder %v3463, 8.507059e+37
        %v3465 = vand.u32 %v3410, 2147483648
        %v3466 = vor.u32 1.1754944e-38, %v3465
        %v3467 = vsel %vm3464, %v3466, %v3462
        %v3468 = vrcp.pop %v3413
        %v3469 = vmul.f32 %v3413, %v3468
        %v3470 = vsub.f32 1.0, %v3469
        %v3471 = vmul.f32 %v3468, %v3470
        %v3472 = vadd.f32 %v3468, %v3471
        %vm3473 = vweird.f32 %v3413
        %vm3474 = vweird.f32 %v3468
        %vm3475 = vmor %vm3473, %vm3474
        %v3476 = vsel %vm3475, %v3468, %v3472
        %v3477 = vand.u32 2147483647, %v3413
        %vm3478 = vcmp.eq.f32.partialorder %v3477, 8.507059e+37
        %v3479 = vand.u32 %v3413, 2147483648
        %v3480 = vor.u32 1.1754944e-38, %v3479
        %v3481 = vsel %vm3478, %v3480, %v3476
        %v3482 = vrcp.pop %v3416
        %v3483 = vmul.f32 %v3416, %v3482
        %v3484 = vsub.f32 1.0, %v3483
        %v3485 = vmul.f32 %v3482, %v3484
        %v3486 = vadd.f32 %v3482, %v3485
        %vm3487 = vweird.f32 %v3416
        %vm3488 = vweird.f32 %v3482
        %vm3489 = vmor %vm3487, %vm3488
        %v3490 = vsel %vm3489, %v3482, %v3486
        %v3491 = vand.u32 2147483647, %v3416
        %vm3492 = vcmp.eq.f32.partialorder %v3491, 8.507059e+37
        %v3493 = vand.u32 %v3416, 2147483648
        %v3494 = vor.u32 1.1754944e-38, %v3493
        %v3495 = vsel %vm3492, %v3494, %v3490
        %v3496 = vrcp.pop %v3419
        %v3497 = vmul.f32 %v3419, %v3496
        %v3498 = vsub.f32 1.0, %v3497
        %v3499 = vmul.f32 %v3496, %v3498
        %v3500 = vadd.f32 %v3496, %v3499
        %vm3501 = vweird.f32 %v3419
        %vm3502 = vweird.f32 %v3496
        %vm3503 = vmor %vm3501, %vm3502
        %v3504 = vsel %vm3503, %v3496, %v3500
        %v3505 = vand.u32 2147483647, %v3419
        %vm3506 = vcmp.eq.f32.partialorder %v3505, 8.507059e+37
        %v3507 = vand.u32 %v3419, 2147483648
        %v3508 = vor.u32 1.1754944e-38, %v3507
        %v3509 = vsel %vm3506, %v3508, %v3504
        %v3510 = vrcp.pop %v3422
        %v3511 = vmul.f32 %v3422, %v3510
        %v3512 = vsub.f32 1.0, %v3511
        %v3513 = vmul.f32 %v3510, %v3512
        %v3514 = vadd.f32 %v3510, %v3513
        %vm3515 = vweird.f32 %v3422
        %vm3516 = vweird.f32 %v3510
        %vm3517 = vmor %vm3515, %vm3516
        %v3518 = vsel %vm3517, %v3510, %v3514
        %v3519 = vand.u32 2147483647, %v3422
        %vm3520 = vcmp.eq.f32.partialorder %v3519, 8.507059e+37
        %v3521 = vand.u32 %v3422, 2147483648
        %v3522 = vor.u32 1.1754944e-38, %v3521
        %v3523 = vsel %vm3520, %v3522, %v3518
        %v3524 = vrcp.pop %v3425
        %v3525 = vmul.f32 %v3425, %v3524
        %v3526 = vsub.f32 1.0, %v3525
        %v3527 = vmul.f32 %v3524, %v3526
        %v3528 = vadd.f32 %v3524, %v3527
        %vm3529 = vweird.f32 %v3425
        %vm3530 = vweird.f32 %v3524
        %vm3531 = vmor %vm3529, %vm3530
        %v3532 = vsel %vm3531, %v3524, %v3528
        %v3533 = vand.u32 2147483647, %v3425
        %vm3534 = vcmp.eq.f32.partialorder %v3533, 8.507059e+37
        %v3535 = vand.u32 %v3425, 2147483648
        %v3536 = vor.u32 1.1754944e-38, %v3535
        %v3537 = vsel %vm3534, %v3536, %v3532
        %v3538 = vmul.f32 %v3387, %v3439
        %v3539 = vmul.f32 %v3389, %v3453
        %v3540 = vmul.f32 %v3391, %v3467
        %v3541 = vmul.f32 %v3393, %v3481
        %v3542 = vmul.f32 %v3395, %v3495
        %v3543 = vmul.f32 %v3397, %v3509
        %v3544 = vmul.f32 %v3399, %v3523
        %v3545 = vmul.f32 %v3401, %v3537
        %v3547 = vsel %vm3353, %v3538, 0
        %3549 = vmatpush.msra.mxu0 0.0
        %3550 = vmatpush.msra.mxu0 0.0
        %3551 = vmatpush.msra.mxu0 0.0
        %3552 = vmatpush.msra.mxu0 0.0
        %3553 = vmatpush.msra.mxu0 0.0
        %3554 = vmatpush.msra.mxu0 0.0
        %3555 = vmatpush.msra.mxu0 0.0
        %3556 = vmatpush.msra.mxu0 0.0
        %3557 = vmatpush.msra.mxu0 0.0
        %3558 = vmatpush.msra.mxu0 0.0
        %3559 = vmatpush.msra.mxu0 0.0
        %3560 = vmatpush.msra.mxu0 0.0
        %3561 = vmatpush.msra.mxu0 0.0
        %3562 = vmatpush.msra.mxu0 0.0
        %3563 = vmatpush.msra.mxu0 0.0
        %3564 = vmatpush.msra.mxu0 %v3099
        %3565 = vmatmul.f32.gmra.mxu0 %v3547
        %v3566 = vpop.f32.mrf.mxu0
        %v3567 = vadd.f32 0.0, %v3566
        %3568 = vdwg.mxu0
        %v3570 = vsel %vm3353, %v3539, 0
        %3572 = vmatpush.msra.mxu0 0.0
        %3573 = vmatpush.msra.mxu0 0.0
        %3574 = vmatpush.msra.mxu0 0.0
        %3575 = vmatpush.msra.mxu0 0.0
        %3576 = vmatpush.msra.mxu0 0.0
        %3577 = vmatpush.msra.mxu0 0.0
        %3578 = vmatpush.msra.mxu0 0.0
        %3579 = vmatpush.msra.mxu0 0.0
        %3580 = vmatpush.msra.mxu0 0.0
        %3581 = vmatpush.msra.mxu0 0.0
        %3582 = vmatpush.msra.mxu0 0.0
        %3583 = vmatpush.msra.mxu0 0.0
        %3584 = vmatpush.msra.mxu0 0.0
        %3585 = vmatpush.msra.mxu0 0.0
        %3586 = vmatpush.msra.mxu0 0.0
        %3587 = vmatpush.msra.mxu0 %v3102
        %3588 = vmatmul.f32.gmra.mxu0 %v3570
        %v3589 = vpop.f32.mrf.mxu0
        %v3590 = vadd.f32 0.0, %v3589
        %3591 = vdwg.mxu0
        %v3593 = vsel %vm3353, %v3540, 0
        %3595 = vmatpush.msra.mxu0 0.0
        %3596 = vmatpush.msra.mxu0 0.0
        %3597 = vmatpush.msra.mxu0 0.0
        %3598 = vmatpush.msra.mxu0 0.0
        %3599 = vmatpush.msra.mxu0 0.0
        %3600 = vmatpush.msra.mxu0 0.0
        %3601 = vmatpush.msra.mxu0 0.0
        %3602 = vmatpush.msra.mxu0 0.0
        %3603 = vmatpush.msra.mxu0 0.0
        %3604 = vmatpush.msra.mxu0 0.0
        %3605 = vmatpush.msra.mxu0 0.0
        %3606 = vmatpush.msra.mxu0 0.0
        %3607 = vmatpush.msra.mxu0 0.0
        %3608 = vmatpush.msra.mxu0 0.0
        %3609 = vmatpush.msra.mxu0 0.0
        %3610 = vmatpush.msra.mxu0 %v3135
        %3611 = vmatmul.f32.gmra.mxu0 %v3593
        %v3612 = vpop.f32.mrf.mxu0
        %v3613 = vadd.f32 0.0, %v3612
        %3614 = vdwg.mxu0
        %v3616 = vsel %vm3353, %v3541, 0
        %3618 = vmatpush.msra.mxu0 0.0
        %3619 = vmatpush.msra.mxu0 0.0
        %3620 = vmatpush.msra.mxu0 0.0
        %3621 = vmatpush.msra.mxu0 0.0
        %3622 = vmatpush.msra.mxu0 0.0
        %3623 = vmatpush.msra.mxu0 0.0
        %3624 = vmatpush.msra.mxu0 0.0
        %3625 = vmatpush.msra.mxu0 0.0
        %3626 = vmatpush.msra.mxu0 0.0
        %3627 = vmatpush.msra.mxu0 0.0
        %3628 = vmatpush.msra.mxu0 0.0
        %3629 = vmatpush.msra.mxu0 0.0
        %3630 = vmatpush.msra.mxu0 0.0
        %3631 = vmatpush.msra.mxu0 0.0
        %3632 = vmatpush.msra.mxu0 0.0
        %3633 = vmatpush.msra.mxu0 %v3137
        %3634 = vmatmul.f32.gmra.mxu0 %v3616
        %v3635 = vpop.f32.mrf.mxu0
        %v3636 = vadd.f32 0.0, %v3635
        %3637 = vdwg.mxu0
        %v3639 = vsel %vm3353, %v3542, 0
        %3641 = vmatpush.msra.mxu0 0.0
        %3642 = vmatpush.msra.mxu0 0.0
        %3643 = vmatpush.msra.mxu0 0.0
        %3644 = vmatpush.msra.mxu0 0.0
        %3645 = vmatpush.msra.mxu0 0.0
        %3646 = vmatpush.msra.mxu0 0.0
        %3647 = vmatpush.msra.mxu0 0.0
        %3648 = vmatpush.msra.mxu0 0.0
        %3649 = vmatpush.msra.mxu0 0.0
        %3650 = vmatpush.msra.mxu0 0.0
        %3651 = vmatpush.msra.mxu0 0.0
        %3652 = vmatpush.msra.mxu0 0.0
        %3653 = vmatpush.msra.mxu0 0.0
        %3654 = vmatpush.msra.mxu0 0.0
        %3655 = vmatpush.msra.mxu0 0.0
        %3656 = vmatpush.msra.mxu0 %v3141
        %3657 = vmatmul.f32.gmra.mxu0 %v3639
        %v3658 = vpop.f32.mrf.mxu0
        %v3659 = vadd.f32 0.0, %v3658
        %3660 = vdwg.mxu0
        %v3662 = vsel %vm3353, %v3543, 0
        %3664 = vmatpush.msra.mxu0 0.0
        %3665 = vmatpush.msra.mxu0 0.0
        %3666 = vmatpush.msra.mxu0 0.0
        %3667 = vmatpush.msra.mxu0 0.0
        %3668 = vmatpush.msra.mxu0 0.0
        %3669 = vmatpush.msra.mxu0 0.0
        %3670 = vmatpush.msra.mxu0 0.0
        %3671 = vmatpush.msra.mxu0 0.0
        %3672 = vmatpush.msra.mxu0 0.0
        %3673 = vmatpush.msra.mxu0 0.0
        %3674 = vmatpush.msra.mxu0 0.0
        %3675 = vmatpush.msra.mxu0 0.0
        %3676 = vmatpush.msra.mxu0 0.0
        %3677 = vmatpush.msra.mxu0 0.0
        %3678 = vmatpush.msra.mxu0 0.0
        %3679 = vmatpush.msra.mxu0 %v3143
        %3680 = vmatmul.f32.gmra.mxu0 %v3662
        %v3681 = vpop.f32.mrf.mxu0
        %v3682 = vadd.f32 0.0, %v3681
        %3683 = vdwg.mxu0
        %v3685 = vsel %vm3353, %v3544, 0
        %3687 = vmatpush.msra.mxu0 0.0
        %3688 = vmatpush.msra.mxu0 0.0
        %3689 = vmatpush.msra.mxu0 0.0
        %3690 = vmatpush.msra.mxu0 0.0
        %3691 = vmatpush.msra.mxu0 0.0
        %3692 = vmatpush.msra.mxu0 0.0
        %3693 = vmatpush.msra.mxu0 0.0
        %3694 = vmatpush.msra.mxu0 0.0
        %3695 = vmatpush.msra.mxu0 0.0
        %3696 = vmatpush.msra.mxu0 0.0
        %3697 = vmatpush.msra.mxu0 0.0
        %3698 = vmatpush.msra.mxu0 0.0
        %3699 = vmatpush.msra.mxu0 0.0
        %3700 = vmatpush.msra.mxu0 0.0
        %3701 = vmatpush.msra.mxu0 0.0
        %3702 = vmatpush.msra.mxu0 %v3147
        %3703 = vmatmul.f32.gmra.mxu0 %v3685
        %v3704 = vpop.f32.mrf.mxu0
        %v3705 = vadd.f32 0.0, %v3704
        %3706 = vdwg.mxu0
        %v3708 = vsel %vm3353, %v3545, 0
        %3710 = vmatpush.msra.mxu0 0.0
        %3711 = vmatpush.msra.mxu0 0.0
        %3712 = vmatpush.msra.mxu0 0.0
        %3713 = vmatpush.msra.mxu0 0.0
        %3714 = vmatpush.msra.mxu0 0.0
        %3715 = vmatpush.msra.mxu0 0.0
        %3716 = vmatpush.msra.mxu0 0.0
        %3717 = vmatpush.msra.mxu0 0.0
        %3718 = vmatpush.msra.mxu0 0.0
        %3719 = vmatpush.msra.mxu0 0.0
        %3720 = vmatpush.msra.mxu0 0.0
        %3721 = vmatpush.msra.mxu0 0.0
        %3722 = vmatpush.msra.mxu0 0.0
        %3723 = vmatpush.msra.mxu0 0.0
        %3724 = vmatpush.msra.mxu0 0.0
        %3725 = vmatpush.msra.mxu0 %v3149
        %3726 = vmatmul.f32.gmra.mxu0 %v3708
        %v3727 = vpop.f32.mrf.mxu0
        %v3728 = vadd.f32 0.0, %v3727
        %3729 = vdwg.mxu0
        %3732 = vrot.lane.b32.xlu0 %v3613, 32
        %v3733 = vpop.permute.xlu0 %3732
        %3734 = vrot.lane.b32.xlu0 %v3636, 32
        %v3735 = vpop.permute.xlu0 %3734
        %3740 = vrot.lane.b32.xlu0 %v3659, 64
        %v3741 = vpop.permute.xlu0 %3740
        %3742 = vrot.lane.b32.xlu0 %v3682, 64
        %v3743 = vpop.permute.xlu0 %3742
        %3748 = vrot.lane.b32.xlu0 %v3705, 96
        %v3749 = vpop.permute.xlu0 %3748
        %3750 = vrot.lane.b32.xlu0 %v3728, 96
        %v3751 = vpop.permute.xlu0 %3750
        %v3754 = vsel %vm3152, %v3567, %v3733
        %v3755 = vsel %vm3152, %v3590, %v3735
        %vm3756 = vcmask 523264
        %v3757 = vsel %vm3756, %v3754, %v3741
        %v3758 = vsel %vm3756, %v3755, %v3743
        %vm3759 = vcmask 785408
        %v3760 = vsel %vm3759, %v3757, %v3749
        %v3761 = vsel %vm3759, %v3758, %v3751
        %v3762 = vperm.slane %v2902, 3
        %3763 = vmatpush.msra.mxu0 %v3031
        %3764 = vmatpush.msra.mxu0 %v3030
        %3765 = vmatpush.msra.mxu0 %v3029
        %3766 = vmatpush.msra.mxu0 %v3028
        %3767 = vmatpush.msra.mxu0 %v3027
        %3768 = vmatpush.msra.mxu0 %v3026
        %3769 = vmatpush.msra.mxu0 %v3025
        %3770 = vmatpush.msra.mxu0 %v3024
        %3771 = vmatpush.msra.mxu0 %v3023
        %3772 = vmatpush.msra.mxu0 %v3022
        %3773 = vmatpush.msra.mxu0 %v3021
        %3774 = vmatpush.msra.mxu0 %v3020
        %3775 = vmatpush.msra.mxu0 %v3019
        %3776 = vmatpush.msra.mxu0 %v3018
        %3777 = vmatpush.msra.mxu0 %v3017
        %3778 = vmatpush.msra.mxu0 %v3016
        %3779 = vmatmul.f32.gmra.mxu0 %v3760
        %v3780 = vpop.f32.mrf.mxu0
        %v3781 = vadd.f32 %v3762, %v3780
        %3782 = vmatmul.f32.gmra.mxu0 %v3761
        %v3783 = vpop.f32.mrf.mxu0
        %v3784 = vadd.f32 %v3762, %v3783
        %3785 = vdwg.mxu0
        %v3786 = vadd.f32 %v2900, %v3781
        %v3787 = vadd.f32 %v2901, %v3784
        %3788 = vadd.xlane.f32.xlu0 %v3786
        %v3789 = vpop.xlane.xlu0 %3788
        %3790 = vadd.xlane.f32.xlu0 %v3787
        %v3791 = vpop.xlane.xlu0 %3790
        %v3792 = vrcp.pop 128.0
        %v3793 = vmul.f32 128.0, %v3792
        %v3794 = vsub.f32 1.0, %v3793
        %v3795 = vmul.f32 %v3792, %v3794
        %v3796 = vadd.f32 %v3792, %v3795
        %vm3797 = vweird.f32 %v3792
        %v3798 = vsel %vm3797, %v3792, %v3796
        %v3799 = vmul.f32 %v3789, %v3798
        %v3800 = vmul.f32 %v3791, %v3798
        %v3801 = vsub.f32 %v3786, %v3799
        %v3802 = vsub.f32 %v3787, %v3800
        %v3803 = vmul.f32 %v3801, %v3801
        %v3804 = vmul.f32 %v3802, %v3802
        %3805 = vadd.xlane.f32.xlu0 %v3803
        %v3806 = vpop.xlane.xlu0 %3805
        %3807 = vadd.xlane.f32.xlu0 %v3804
        %v3808 = vpop.xlane.xlu0 %3807
        %v3809 = vmul.f32 %v3806, %v3798
        %v3810 = vmul.f32 %v3808, %v3798
        %v3811 = vadd.f32 %v3809, 1e-05
        %v3812 = vadd.f32 %v3810, 1e-05
        %v3813 = vrsqrt.pop %v3811
        %v3814 = vmul.f32 %v3813, %v3811
        %v3815 = vmul.f32 %v3814, %v3813
        %v3816 = vmul.f32 0.5, %v3815
        %v3817 = vsub.f32 1.5, %v3816
        %v3818 = vmul.f32 %v3813, %v3817
        %vm3819 = vweird.f32 %v3811
        %vm3820 = vweird.f32 %v3813
        %vm3821 = vmor %vm3819, %vm3820
        %v3822 = vsel %vm3821, %v3813, %v3818
        %v3823 = vrsqrt.pop %v3812
        %v3824 = vmul.f32 %v3823, %v3812
        %v3825 = vmul.f32 %v3824, %v3823
        %v3826 = vmul.f32 0.5, %v3825
        %v3827 = vsub.f32 1.5, %v3826
        %v3828 = vmul.f32 %v3823, %v3827
        %vm3829 = vweird.f32 %v3812
        %vm3830 = vweird.f32 %v3823
        %vm3831 = vmor %vm3829, %vm3830
        %v3832 = vsel %vm3831, %v3823, %v3828
        %v3833 = vmul.f32 %v3801, %v3822
        %v3834 = vmul.f32 %v3802, %v3832
        %v3835 = vperm.slane %v2902, 4
        %v3836 = vmul.f32 %v3833, %v3835
        %v3837 = vmul.f32 %v3834, %v3835
        %v3838 = vperm.slane %v2902, 5
        %v3839 = vadd.f32 %v3836, %v3838
        %v3840 = vadd.f32 %v3837, %v3838
        %v3841 = vld [vmem:[%s670] sm:$0xff]
        %v3842 = vld [vmem:[%s670 + $0x8] sm:$0xff]
        %v3843 = vld [vmem:[%s670 + $0x10] sm:$0xff]
        %v3844 = vld [vmem:[%s670 + $0x18] sm:$0xff]
        %v3845 = vld [vmem:[%s670 + $0x20] sm:$0xff]
        %v3846 = vld [vmem:[%s670 + $0x28] sm:$0xff]
        %v3847 = vld [vmem:[%s670 + $0x30] sm:$0xff]
        %v3848 = vld [vmem:[%s670 + $0x38] sm:$0xff]
        %v3849 = vld [vmem:[%s670 + $0x40] sm:$0xff]
        %v3850 = vld [vmem:[%s670 + $0x48] sm:$0xff]
        %v3851 = vld [vmem:[%s670 + $0x50] sm:$0xff]
        %v3852 = vld [vmem:[%s670 + $0x58] sm:$0xff]
        %v3853 = vld [vmem:[%s670 + $0x60] sm:$0xff]
        %v3854 = vld [vmem:[%s670 + $0x68] sm:$0xff]
        %v3855 = vld [vmem:[%s670 + $0x70] sm:$0xff]
        %v3856 = vld [vmem:[%s670 + $0x78] sm:$0xff]
        %v3857 = vunpack.c.l.bf16 %v3841
        %v3858 = vunpack.c.h.bf16 %v3841
        %v3859 = vunpack.c.l.bf16 %v3842
        %v3860 = vunpack.c.h.bf16 %v3842
        %v3861 = vunpack.c.l.bf16 %v3843
        %v3862 = vunpack.c.h.bf16 %v3843
        %v3863 = vunpack.c.l.bf16 %v3844
        %v3864 = vunpack.c.h.bf16 %v3844
        %v3865 = vunpack.c.l.bf16 %v3845
        %v3866 = vunpack.c.h.bf16 %v3845
        %v3867 = vunpack.c.l.bf16 %v3846
        %v3868 = vunpack.c.h.bf16 %v3846
        %v3869 = vunpack.c.l.bf16 %v3847
        %v3870 = vunpack.c.h.bf16 %v3847
        %v3871 = vunpack.c.l.bf16 %v3848
        %v3872 = vunpack.c.h.bf16 %v3848
        %v3873 = vunpack.c.l.bf16 %v3849
        %v3874 = vunpack.c.h.bf16 %v3849
        %v3875 = vunpack.c.l.bf16 %v3850
        %v3876 = vunpack.c.h.bf16 %v3850
        %v3877 = vunpack.c.l.bf16 %v3851
        %v3878 = vunpack.c.h.bf16 %v3851
        %v3879 = vunpack.c.l.bf16 %v3852
        %v3880 = vunpack.c.h.bf16 %v3852
        %v3881 = vunpack.c.l.bf16 %v3853
        %v3882 = vunpack.c.h.bf16 %v3853
        %v3883 = vunpack.c.l.bf16 %v3854
        %v3884 = vunpack.c.h.bf16 %v3854
        %v3885 = vunpack.c.l.bf16 %v3855
        %v3886 = vunpack.c.h.bf16 %v3855
        %v3887 = vunpack.c.l.bf16 %v3856
        %v3888 = vunpack.c.h.bf16 %v3856
        %v3889 = vld [vmem:[%s760] sm:$0x3]
        %v3891 = vperm.slane %v3889, 0
        %v3892 = vperm.slane %v3889, 1
        %3895 = vmatpush.msra.mxu0 %v3887
        %3896 = vmatpush.msra.mxu0 %v3885
        %3897 = vmatpush.msra.mxu0 %v3883
        %3898 = vmatpush.msra.mxu0 %v3881
        %3899 = vmatpush.msra.mxu0 %v3879
        %3900 = vmatpush.msra.mxu0 %v3877
        %3901 = vmatpush.msra.mxu0 %v3875
        %3902 = vmatpush.msra.mxu0 %v3873
        %3903 = vmatpush.msra.mxu0 %v3871
        %3904 = vmatpush.msra.mxu0 %v3869
        %3905 = vmatpush.msra.mxu0 %v3867
        %3906 = vmatpush.msra.mxu0 %v3865
        %3907 = vmatpush.msra.mxu0 %v3863
        %3908 = vmatpush.msra.mxu0 %v3861
        %3909 = vmatpush.msra.mxu0 %v3859
        %3910 = vmatpush.msra.mxu0 %v3857
        %3911 = vmatmul.f32.gmra.mxu0 %v3839
        %v3912 = vpop.f32.mrf.mxu0
        %v3913 = vadd.f32 %v3891, %v3912
        %3914 = vmatmul.f32.gmra.mxu0 %v3840
        %v3915 = vpop.f32.mrf.mxu0
        %v3916 = vadd.f32 %v3891, %v3915
        %3917 = vdwg.mxu0
        %3918 = vmatpush.msra.mxu0 %v3888
        %3919 = vmatpush.msra.mxu0 %v3886
        %3920 = vmatpush.msra.mxu0 %v3884
        %3921 = vmatpush.msra.mxu0 %v3882
        %3922 = vmatpush.msra.mxu0 %v3880
        %3923 = vmatpush.msra.mxu0 %v3878
        %3924 = vmatpush.msra.mxu0 %v3876
        %3925 = vmatpush.msra.mxu0 %v3874
        %3926 = vmatpush.msra.mxu0 %v3872
        %3927 = vmatpush.msra.mxu0 %v3870
        %3928 = vmatpush.msra.mxu0 %v3868
        %3929 = vmatpush.msra.mxu0 %v3866
        %3930 = vmatpush.msra.mxu0 %v3864
        %3931 = vmatpush.msra.mxu0 %v3862
        %3932 = vmatpush.msra.mxu0 %v3860
        %3933 = vmatpush.msra.mxu0 %v3858
        %3934 = vmatmul.f32.gmra.mxu0 %v3839
        %v3935 = vpop.f32.mrf.mxu0
        %v3936 = vadd.f32 %v3892, %v3935
        %3937 = vmatmul.f32.gmra.mxu0 %v3840
        %v3938 = vpop.f32.mrf.mxu0
        %v3939 = vadd.f32 %v3892, %v3938
        %3940 = vdwg.mxu0
        %v3941 = vmax.f32 %v3913, 0.0
        %v3942 = vmax.f32 %v3936, 0.0
        %v3943 = vmax.f32 %v3916, 0.0
        %v3944 = vmax.f32 %v3939, 0.0
        %v3945 = vld [vmem:[%s680] sm:$0xf]
        %v3946 = vld [vmem:[%s680 + $0x4] sm:$0xf]
        %v3947 = vld [vmem:[%s680 + $0x8] sm:$0xf]
        %v3948 = vld [vmem:[%s680 + $0xc] sm:$0xf]
        %v3949 = vld [vmem:[%s680 + $0x10] sm:$0xf]
        %v3950 = vld [vmem:[%s680 + $0x14] sm:$0xf]
        %v3951 = vld [vmem:[%s680 + $0x18] sm:$0xf]
        %v3952 = vld [vmem:[%s680 + $0x1c] sm:$0xf]
        %v3953 = vld [vmem:[%s680 + $0x20] sm:$0xf]
        %v3954 = vld [vmem:[%s680 + $0x24] sm:$0xf]
        %v3955 = vld [vmem:[%s680 + $0x28] sm:$0xf]
        %v3956 = vld [vmem:[%s680 + $0x2c] sm:$0xf]
        %v3957 = vld [vmem:[%s680 + $0x30] sm:$0xf]
        %v3958 = vld [vmem:[%s680 + $0x34] sm:$0xf]
        %v3959 = vld [vmem:[%s680 + $0x38] sm:$0xf]
        %v3960 = vld [vmem:[%s680 + $0x3c] sm:$0xf]
        %v3961 = vld [vmem:[%s680 + $0x40] sm:$0xf]
        %v3962 = vld [vmem:[%s680 + $0x44] sm:$0xf]
        %v3963 = vld [vmem:[%s680 + $0x48] sm:$0xf]
        %v3964 = vld [vmem:[%s680 + $0x4c] sm:$0xf]
        %v3965 = vld [vmem:[%s680 + $0x50] sm:$0xf]
        %v3966 = vld [vmem:[%s680 + $0x54] sm:$0xf]
        %v3967 = vld [vmem:[%s680 + $0x58] sm:$0xf]
        %v3968 = vld [vmem:[%s680 + $0x5c] sm:$0xf]
        %v3969 = vld [vmem:[%s680 + $0x60] sm:$0xf]
        %v3970 = vld [vmem:[%s680 + $0x64] sm:$0xf]
        %v3971 = vld [vmem:[%s680 + $0x68] sm:$0xf]
        %v3972 = vld [vmem:[%s680 + $0x6c] sm:$0xf]
        %v3973 = vld [vmem:[%s680 + $0x70] sm:$0xf]
        %v3974 = vld [vmem:[%s680 + $0x74] sm:$0xf]
        %v3975 = vld [vmem:[%s680 + $0x78] sm:$0xf]
        %v3976 = vld [vmem:[%s680 + $0x7c] sm:$0xf]
        %v3977 = vunpack.c.l.bf16 %v3945
        %v3978 = vunpack.c.l.bf16 %v3946
        %v3979 = vunpack.c.l.bf16 %v3947
        %v3980 = vunpack.c.l.bf16 %v3948
        %v3981 = vunpack.c.l.bf16 %v3949
        %v3982 = vunpack.c.l.bf16 %v3950
        %v3983 = vunpack.c.l.bf16 %v3951
        %v3984 = vunpack.c.l.bf16 %v3952
        %v3985 = vunpack.c.l.bf16 %v3953
        %v3986 = vunpack.c.l.bf16 %v3954
        %v3987 = vunpack.c.l.bf16 %v3955
        %v3988 = vunpack.c.l.bf16 %v3956
        %v3989 = vunpack.c.l.bf16 %v3957
        %v3990 = vunpack.c.l.bf16 %v3958
        %v3991 = vunpack.c.l.bf16 %v3959
        %v3992 = vunpack.c.l.bf16 %v3960
        %v3993 = vunpack.c.l.bf16 %v3961
        %v3994 = vunpack.c.l.bf16 %v3962
        %v3995 = vunpack.c.l.bf16 %v3963
        %v3996 = vunpack.c.l.bf16 %v3964
        %v3997 = vunpack.c.l.bf16 %v3965
        %v3998 = vunpack.c.l.bf16 %v3966
        %v3999 = vunpack.c.l.bf16 %v3967
        %v4000 = vunpack.c.l.bf16 %v3968
        %v4001 = vunpack.c.l.bf16 %v3969
        %v4002 = vunpack.c.l.bf16 %v3970
        %v4003 = vunpack.c.l.bf16 %v3971
        %v4004 = vunpack.c.l.bf16 %v3972
        %v4005 = vunpack.c.l.bf16 %v3973
        %v4006 = vunpack.c.l.bf16 %v3974
        %v4007 = vunpack.c.l.bf16 %v3975
        %v4008 = vunpack.c.l.bf16 %v3976
        %v4009 = vperm.slane %v2902, 6
        %4010 = vmatpush.msra.mxu0 %v3992
        %4011 = vmatpush.msra.mxu0 %v3991
        %4012 = vmatpush.msra.mxu0 %v3990
        %4013 = vmatpush.msra.mxu0 %v3989
        %4014 = vmatpush.msra.mxu0 %v3988
        %4015 = vmatpush.msra.mxu0 %v3987
        %4016 = vmatpush.msra.mxu0 %v3986
        %4017 = vmatpush.msra.mxu0 %v3985
        %4018 = vmatpush.msra.mxu0 %v3984
        %4019 = vmatpush.msra.mxu0 %v3983
        %4020 = vmatpush.msra.mxu0 %v3982
        %4021 = vmatpush.msra.mxu0 %v3981
        %4022 = vmatpush.msra.mxu0 %v3980
        %4023 = vmatpush.msra.mxu0 %v3979
        %4024 = vmatpush.msra.mxu0 %v3978
        %4025 = vmatpush.msra.mxu0 %v3977
        %4026 = vmatmul.f32.gmra.mxu0 %v3941
        %v4027 = vpop.f32.mrf.mxu0
        %v4028 = vadd.f32 %v4009, %v4027
        %4029 = vmatmul.f32.gmra.mxu0 %v3943
        %v4030 = vpop.f32.mrf.mxu0
        %v4031 = vadd.f32 %v4009, %v4030
        %4032 = vdwg.mxu0
        %4033 = vmatpush.msra.mxu0 %v4008
        %4034 = vmatpush.msra.mxu0 %v4007
        %4035 = vmatpush.msra.mxu0 %v4006
        %4036 = vmatpush.msra.mxu0 %v4005
        %4037 = vmatpush.msra.mxu0 %v4004
        %4038 = vmatpush.msra.mxu0 %v4003
        %4039 = vmatpush.msra.mxu0 %v4002
        %4040 = vmatpush.msra.mxu0 %v4001
        %4041 = vmatpush.msra.mxu0 %v4000
        %4042 = vmatpush.msra.mxu0 %v3999
        %4043 = vmatpush.msra.mxu0 %v3998
        %4044 = vmatpush.msra.mxu0 %v3997
        %4045 = vmatpush.msra.mxu0 %v3996
        %4046 = vmatpush.msra.mxu0 %v3995
        %4047 = vmatpush.msra.mxu0 %v3994
        %4048 = vmatpush.msra.mxu0 %v3993
        %4049 = vmatmul.f32.gmra.mxu0 %v3942
        %v4050 = vpop.f32.mrf.mxu0
        %v4051 = vadd.f32 %v4028, %v4050
        %4052 = vmatmul.f32.gmra.mxu0 %v3944
        %v4053 = vpop.f32.mrf.mxu0
        %v4054 = vadd.f32 %v4031, %v4053
        %4055 = vdwg.mxu0
        %v4056 = vadd.f32 %v3839, %v4051
        %v4057 = vadd.f32 %v3840, %v4054
        %4058 = vadd.xlane.f32.xlu0 %v4056
        %v4059 = vpop.xlane.xlu0 %4058
        %4060 = vadd.xlane.f32.xlu0 %v4057
        %v4061 = vpop.xlane.xlu0 %4060
        %v4062 = vmul.f32 %v4059, %v3798
        %v4063 = vmul.f32 %v4061, %v3798
        %v4064 = vsub.f32 %v4056, %v4062
        %v4065 = vsub.f32 %v4057, %v4063
        %v4066 = vmul.f32 %v4064, %v4064
        %v4067 = vmul.f32 %v4065, %v4065
        %4068 = vadd.xlane.f32.xlu0 %v4066
        %v4069 = vpop.xlane.xlu0 %4068
        %4070 = vadd.xlane.f32.xlu0 %v4067
        %v4071 = vpop.xlane.xlu0 %4070
        %v4072 = vmul.f32 %v4069, %v3798
        %v4073 = vmul.f32 %v4071, %v3798
        %v4074 = vadd.f32 %v4072, 1e-05
        %v4075 = vadd.f32 %v4073, 1e-05
        %v4076 = vrsqrt.pop %v4074
        %v4077 = vmul.f32 %v4076, %v4074
        %v4078 = vmul.f32 %v4077, %v4076
        %v4079 = vmul.f32 0.5, %v4078
        %v4080 = vsub.f32 1.5, %v4079
        %v4081 = vmul.f32 %v4076, %v4080
        %vm4082 = vweird.f32 %v4074
        %vm4083 = vweird.f32 %v4076
        %vm4084 = vmor %vm4082, %vm4083
        %v4085 = vsel %vm4084, %v4076, %v4081
        %v4086 = vrsqrt.pop %v4075
        %v4087 = vmul.f32 %v4086, %v4075
        %v4088 = vmul.f32 %v4087, %v4086
        %v4089 = vmul.f32 0.5, %v4088
        %v4090 = vsub.f32 1.5, %v4089
        %v4091 = vmul.f32 %v4086, %v4090
        %vm4092 = vweird.f32 %v4075
        %vm4093 = vweird.f32 %v4086
        %vm4094 = vmor %vm4092, %vm4093
        %v4095 = vsel %vm4094, %v4086, %v4091
        %v4096 = vmul.f32 %v4064, %v4085
        %v4097 = vmul.f32 %v4065, %v4095
        %v4098 = vperm.slane %v2902, 7
        %v4099 = vmul.f32 %v4096, %v4098
        %v4100 = vmul.f32 %v4097, %v4098
        %v4101 = vperm.slane %v2903, 0
        %v4102 = vadd.f32 %v4099, %v4101
        %v4103 = vadd.f32 %v4100, %v4101
        %4104 = vst [vmem:[#allocation2] sm:$0xff] %v4102
        %4105 = vst [vmem:[#allocation2 + $0x8] sm:$0xff] %v4103
        %p4106 = scmp.eq.s32.totalorder %s29, 3
        // Predicated region
        $region117: #{forward.1} parent=79 // pred_check
          %p4107 = pneg %p4106
        $region118: #{forward.1} parent=79 // pred_check_branch
          %4109 = sbr.rel (%p4107) target = $region120
        $region119: #{forward.1} parent=79 // pred_region
          %v4110 = vld [vmem:[%s14] sm:$0xff]
          %v4111 = vld [vmem:[%s14 + $0x8] sm:$0xff]
          %v4112 = vld [vmem:[%s14 + $0x10] sm:$0xff]
          %v4113 = vld [vmem:[%s14 + $0x18] sm:$0xff]
          %v4114 = vld [vmem:[%s14 + $0x20] sm:$0xff]
          %v4115 = vld [vmem:[%s14 + $0x28] sm:$0xff]
          %v4116 = vld [vmem:[%s14 + $0x30] sm:$0xff]
          %v4117 = vld [vmem:[%s14 + $0x38] sm:$0xff]
          %v4118 = vld [vmem:[%s14 + $0x40] sm:$0xff]
          %v4119 = vld [vmem:[%s14 + $0x48] sm:$0xff]
          %v4120 = vld [vmem:[%s14 + $0x50] sm:$0xff]
          %v4121 = vld [vmem:[%s14 + $0x58] sm:$0xff]
          %v4122 = vld [vmem:[%s14 + $0x60] sm:$0xff]
          %v4123 = vld [vmem:[%s14 + $0x68] sm:$0xff]
          %v4124 = vld [vmem:[%s14 + $0x70] sm:$0xff]
          %v4125 = vld [vmem:[%s14 + $0x78] sm:$0xff]
          %v4126 = vld [vmem:[%s14 + $0x80] sm:$0xff]
          %v4127 = vld [vmem:[%s14 + $0x88] sm:$0xff]
          %v4128 = vld [vmem:[%s14 + $0x90] sm:$0xff]
          %v4129 = vld [vmem:[%s14 + $0x98] sm:$0xff]
          %v4130 = vld [vmem:[%s14 + $0xa0] sm:$0xff]
          %v4131 = vld [vmem:[%s14 + $0xa8] sm:$0xff]
          %v4132 = vld [vmem:[%s14 + $0xb0] sm:$0xff]
          %v4133 = vld [vmem:[%s14 + $0xb8] sm:$0xff]
          %v4134 = vld [vmem:[%s14 + $0xc0] sm:$0xff]
          %v4135 = vld [vmem:[%s14 + $0xc8] sm:$0xff]
          %v4136 = vld [vmem:[%s14 + $0xd0] sm:$0xff]
          %v4137 = vld [vmem:[%s14 + $0xd8] sm:$0xff]
          %v4138 = vld [vmem:[%s14 + $0xe0] sm:$0xff]
          %v4139 = vld [vmem:[%s14 + $0xe8] sm:$0xff]
          %v4140 = vld [vmem:[%s14 + $0xf0] sm:$0xff]
          %v4141 = vld [vmem:[%s14 + $0xf8] sm:$0xff]
          %v4142 = vld [vmem:[%s14 + $0x100] sm:$0x3]
          %v4143 = vrot.slane %v4102, 4
          %v4144 = vadd.f32 %v4102, %v4143
          %v4145 = vrot.slane %v4144, 2
          %v4146 = vadd.f32 %v4144, %v4145
          %v4147 = vrot.slane %v4146, 1
          %v4148 = vadd.f32 %v4146, %v4147
          %v4149 = vrot.slane %v4103, 4
          %v4150 = vadd.f32 %v4103, %v4149
          %v4151 = vrot.slane %v4150, 2
          %v4152 = vadd.f32 %v4150, %v4151
          %v4153 = vrot.slane %v4152, 1
          %v4154 = vadd.f32 %v4152, %v4153
          %v4155 = vrcp.pop 8.0
          %v4156 = vmul.f32 8.0, %v4155
          %v4157 = vsub.f32 1.0, %v4156
          %v4158 = vmul.f32 %v4155, %v4157
          %v4159 = vadd.f32 %v4155, %v4158
          %vm4160 = vweird.f32 %v4155
          %v4161 = vsel %vm4160, %v4155, %v4159
          %v4162 = vmul.f32 %v4148, %v4161
          %v4163 = vmul.f32 %v4154, %v4161
          %v4164 = vperm.slane %v4142, 0
          %vm4167 = vcmask 1041409
          %v4168 = vsel %vm4167, %v4163, %v4162
          %4170 = vmatpush.msra.mxu0 %v4125
          %4171 = vmatpush.msra.mxu0 %v4124
          %4172 = vmatpush.msra.mxu0 %v4123
          %4173 = vmatpush.msra.mxu0 %v4122
          %4174 = vmatpush.msra.mxu0 %v4121
          %4175 = vmatpush.msra.mxu0 %v4120
          %4176 = vmatpush.msra.mxu0 %v4119
          %4177 = vmatpush.msra.mxu0 %v4118
          %4178 = vmatpush.msra.mxu0 %v4117
          %4179 = vmatpush.msra.mxu0 %v4116
          %4180 = vmatpush.msra.mxu0 %v4115
          %4181 = vmatpush.msra.mxu0 %v4114
          %4182 = vmatpush.msra.mxu0 %v4113
          %4183 = vmatpush.msra.mxu0 %v4112
          %4184 = vmatpush.msra.mxu0 %v4111
          %4185 = vmatpush.msra.mxu0 %v4110
          %4186 = vmatmul.f32.gmra.mxu0 %v4168
          %v4187 = vpop.f32.mrf.mxu0
          %v4188 = vadd.f32 %v4164, %v4187
          %4189 = vdwg.mxu0
          %v4190 = vmax.f32 %v4188, 0.0
          %v4191 = vperm.slane %v4142, 1
          %4192 = vmatpush.msra.mxu0 %v4141
          %4193 = vmatpush.msra.mxu0 %v4140
          %4194 = vmatpush.msra.mxu0 %v4139
          %4195 = vmatpush.msra.mxu0 %v4138
          %4196 = vmatpush.msra.mxu0 %v4137
          %4197 = vmatpush.msra.mxu0 %v4136
          %4198 = vmatpush.msra.mxu0 %v4135
          %4199 = vmatpush.msra.mxu0 %v4134
          %4200 = vmatpush.msra.mxu0 %v4133
          %4201 = vmatpush.msra.mxu0 %v4132
          %4202 = vmatpush.msra.mxu0 %v4131
          %4203 = vmatpush.msra.mxu0 %v4130
          %4204 = vmatpush.msra.mxu0 %v4129
          %4205 = vmatpush.msra.mxu0 %v4128
          %4206 = vmatpush.msra.mxu0 %v4127
          %4207 = vmatpush.msra.mxu0 %v4126
          %4208 = vmatmul.f32.gmra.mxu0 %v4190
          %v4209 = vpop.f32.mrf.mxu0
          %v4210 = vadd.f32 %v4191, %v4209
          %4211 = vdwg.mxu0
          %vm4212 = vcmask 9216
          %4213 = vst.msk [vmem:[#allocation14] sm:$0x3] %vm4212, %v4210
        $region120: #{forward.1} parent=79 // pred_fallthru
          _
        // Predicated region
        $region121: #{forward.1} parent=79 // pred_check
          %p4214 = pneg %p397
        $region122: #{forward.1} parent=79 // pred_check_branch
          %4216 = sbr.rel (%p4214) target = $region124
        $region123: #{forward.1} parent=79 // pred_region
          %4218 = vsyncadd [#allocation5], 0
          %s4220 = sshll.u32 [#allocation14], 4
          %s4221 = int_to_ptr.vmem [resolvable:$true] %s4220
          %s4222 = sshll.u32 %s15, 4
          %s4223 = int_to_ptr.hbm [resolvable:$true] %s4222
          %4225 = dma.vmem_to_hbm [thread:$0]  %s4221, 32, %s4223, [#allocation5]
        $region124: #{forward.1} parent=79 // pred_fallthru
          _
        // Predicated region
        $region125: #{forward.1} parent=79 // pred_check
          %p4226 = pneg %p397
        $region126: #{forward.1} parent=79 // pred_check_branch
          %4228 = sbr.rel (%p4226) target = $region128
        $region127: #{forward.1} parent=79 // pred_region
          %4230 = dma.done [#allocation5], 32
        $region128: #{forward.1} parent=79 // pred_fallthru
          _
      $region80: #{forward.1} parent=5 // pred_fallthru
        _
      %p4231 = scmp.le.s32.totalorder 2, %s24
      // Predicated region
      $region129: #{forward.1} parent=5 // pred_check
        %p4232 = pneg %p4231
      $region130: #{forward.1} parent=5 // pred_check_branch
        %4234 = sbr.rel (%p4232) target = $region132
      $region131: #{forward.1} parent=5 // pred_region
        %s4235 = ssub.s32 %s24, 2
      $region132: #{forward.1} parent=5 // pred_fallthru
        _
    $region6: #{forward.1} parent=1 // loop_footer
      %s28 = sadd.s32 1, %s24
    $region7: #{forward.1} parent=1 // loop_footer_branch
      %23 = sbr.rel target = $region3
    $region8: #{forward.1} parent=1 // loop_exit
      _
    %4236 = vsyncpa [#allocation4], 1
    %s4237 = scalar_lea.sflag [#allocation4], 1
    %4238 = vsyncpa %s4237, 1
    %4239 = vsyncpa [#allocation7], 1
    %4240 = vsyncpa [#allocation5], 1
    %s4241 = scalar_lea.sflag [#allocation5], 1
    %4242 = vsyncpa %s4241, 1

</llo_original>
